<compile_context>
chip_gen: v7x
topology: tpu7x:2x2x1
jax: 0.10.0
libtpu: 0.0.40
codegen_flags: <defaults>
</compile_context>

<pallas_src>
import functools

import jax
import jax.numpy as jnp
from jax.experimental import pallas as pl
from jax.experimental.pallas import tpu as pltpu

# Normalization bounds from the reference module (7 input features total).
LB_VALUES = (0.0, 0.0, 0.0, 2.5, 0.5, 2.0, 2.5)
UB_VALUES = (5.0, 5.0, 1.767766952966369, 3.5, 1.5, 3.0, 3.5)

INPUT_WIDTH = 7   # 3 (x) + 4 (para)
LAYER_WIDTH = 32
OUT_WIDTH = 3
MAX_TILE = 8192   # per-tile [32, tileN] f32 temporaries ~1 MiB; safe on v5e/v6e/v7x


def _round_up(n, m):
    return ((n + m - 1) // m) * m


def _pinn_kernel(x_ref, p_ref,
                 w_in_x_ref, w_in_p_ref, b_in_ref,
                 w1_ref, b1_ref, w2_ref, b2_ref,
                 w3_ref, b3_ref, w4_ref, b4_ref,
                 w5_ref, b5_ref, w6_ref, b6_ref,
                 w7_ref, b7_ref, w8_ref, b8_ref,
                 w_out_ref, b_out_ref,
                 out_ref):
    """Feature-major MLP: activations are [features, tileN] (batch on lanes)."""

    def lin(w_ref, b_ref, v):
        # W: [out, in], v: [in, tileN], b: [out, 1] -> [out, tileN]
        return jnp.dot(w_ref[...], v, preferred_element_type=jnp.float32) + b_ref[...]

    # First layer: normalization folded in, concat split into two GEMMs.
    y = (jnp.dot(w_in_x_ref[...], x_ref[...], preferred_element_type=jnp.float32)
         + jnp.dot(w_in_p_ref[...], p_ref[...], preferred_element_type=jnp.float32)
         + b_in_ref[...])

    # Four sin-residual blocks.
    y = y + jnp.sin(lin(w2_ref, b2_ref, jnp.sin(lin(w1_ref, b1_ref, y))))
    y = y + jnp.sin(lin(w4_ref, b4_ref, jnp.sin(lin(w3_ref, b3_ref, y))))
    y = y + jnp.sin(lin(w6_ref, b6_ref, jnp.sin(lin(w5_ref, b5_ref, y))))
    y = y + jnp.sin(lin(w8_ref, b8_ref, jnp.sin(lin(w7_ref, b7_ref, y))))

    out_ref[...] = lin(w_out_ref, b_out_ref, y)


@functools.partial(jax.jit, static_argnames=("max_tile",))
def pinn_forward(x, para, params, max_tile=MAX_TILE):
    """x: [N, 3], para: [N, 4], params: dict of torch-layout weights/biases.

    Returns [N, 3] float32, matching Sequentialmodel.forward.
    """
    x = x.astype(jnp.float32)
    para = para.astype(jnp.float32)
    n = x.shape[0]

    lb = jnp.asarray(LB_VALUES, dtype=jnp.float32)
    ub = jnp.asarray(UB_VALUES, dtype=jnp.float32)

    # Fold the affine normalization  a -> a*s + t  into the first linear layer.
    s = 2.0 / (ub - lb)                       # [7]
    t = -2.0 * lb / (ub - lb) - 1.0           # [7]
    w_in = params["w_in"]                     # [32, 7]  (torch [out, in])
    b_in = params["b_in"]                     # [32, 1]
    w_in_f = w_in * s[None, :]
    b_in_f = b_in + (w_in @ t)[:, None]
    w_in_x = w_in_f[:, :3]                    # [32, 3]
    w_in_p = w_in_f[:, 3:]                    # [32, 4]

    # Balanced batch tiling: pad to a multiple of 128, split into equal
    # 128-aligned tiles no larger than max_tile (minimizes last-tile padding).
    n128 = _round_up(max(n, 1), 128)
    num_tiles = -(-n128 // max_tile)
    tile = _round_up(-(-n128 // num_tiles), 128)
    n_pad = tile * num_tiles
    grid = (num_tiles,)

    x_t = jnp.pad(x.T, ((0, 0), (0, n_pad - n)))       # [3, n_pad] feature-major
    p_t = jnp.pad(para.T, ((0, 0), (0, n_pad - n)))    # [4, n_pad]

    weight_inputs = [
        w_in_x, w_in_p, b_in_f,
        params["w1"], params["b1"], params["w2"], params["b2"],
        params["w3"], params["b3"], params["w4"], params["b4"],
        params["w5"], params["b5"], params["w6"], params["b6"],
        params["w7"], params["b7"], params["w8"], params["b8"],
        params["w_out"], params["b_out"],
    ]

    def const_spec(shape):
        # Weights/biases: same block every grid step -> stays VMEM-resident.
        return pl.BlockSpec(shape, lambda i: (0, 0))

    in_specs = (
        [pl.BlockSpec((3, tile), lambda i: (0, i)),
         pl.BlockSpec((4, tile), lambda i: (0, i))]
        + [const_spec(w.shape) for w in weight_inputs]
    )
    out_specs = pl.BlockSpec((OUT_WIDTH, tile), lambda i: (0, i))

    # Advisory cost hint so XLA schedules surrounding ops sensibly.
    flops = 2 * n_pad * (INPUT_WIDTH * LAYER_WIDTH
                         + 8 * LAYER_WIDTH * LAYER_WIDTH
                         + LAYER_WIDTH * OUT_WIDTH)
    weight_bytes = 4 * sum(int(w.size) for w in weight_inputs)
    cost = pl.CostEstimate(
        flops=flops,
        transcendentals=8 * LAYER_WIDTH * n_pad,
        bytes_accessed=4 * n_pad * (INPUT_WIDTH + OUT_WIDTH) + weight_bytes,
    )

    out_fm = pl.pallas_call(
        _pinn_kernel,
        out_shape=jax.ShapeDtypeStruct((OUT_WIDTH, n_pad), jnp.float32),
        grid=grid,
        in_specs=in_specs,
        out_specs=out_specs,
        compiler_params=pltpu.CompilerParams(
            dimension_semantics=("parallel",),
        ),
        cost_estimate=cost,
    )(x_t, p_t, *weight_inputs)

    return out_fm[:, :n].T                              # [N, 3]


def init_params(key, input_width=INPUT_WIDTH, layer_width=LAYER_WIDTH,
                out_width=OUT_WIDTH):
    """Mimics torch.nn.Linear default init (uniform +-1/sqrt(fan_in)).
    Weights stored in torch layout [out_features, in_features]; biases [out, 1]."""
    def linear(key, fan_in, fan_out):
        kw, kb = jax.random.split(key)
        bound = 1.0 / jnp.sqrt(fan_in)
        w = jax.random.uniform(kw, (fan_out, fan_in), jnp.float32, -bound, bound)
        b = jax.random.uniform(kb, (fan_out, 1), jnp.float32, -bound, bound)
        return w, b

    keys = jax.random.split(key, 10)
    params = {}
    params["w_in"], params["b_in"] = linear(keys[0], input_width, layer_width)
    for i in range(1, 9):
        params[f"w{i}"], params[f"b{i}"] = linear(keys[i], layer_width, layer_width)
    params["w_out"], params["b_out"] = linear(keys[9], layer_width, out_width)
    return params


def reference_forward(x, para, params):
    """Pure-JAX reference of the PyTorch forward, for correctness checking."""
    lb = jnp.asarray(LB_VALUES, dtype=jnp.float32)
    ub = jnp.asarray(UB_VALUES, dtype=jnp.float32)
    a = jnp.concatenate([x, para], axis=1).astype(jnp.float32)
    a = 2.0 * ((a - lb) / (ub - lb)) - 1.0
    lin = lambda v, w, b: v @ w.T + b[:, 0]
    y = lin(a, params["w_in"], params["b_in"])
    y = y + jnp.sin(lin(jnp.sin(lin(y, params["w1"], params["b1"])),
                        params["w2"], params["b2"]))
    y = y + jnp.sin(lin(jnp.sin(lin(y, params["w3"], params["b3"])),
                        params["w4"], params["b4"]))
    y = y + jnp.sin(lin(jnp.sin(lin(y, params["w5"], params["b5"])),
                        params["w6"], params["b6"]))
    y = y + jnp.sin(lin(jnp.sin(lin(y, params["w7"], params["b7"])),
                        params["w8"], params["b8"]))
    return lin(y, params["w_out"], params["b_out"])


def _make_inputs(key, n):
    lb = jnp.asarray(LB_VALUES, dtype=jnp.float32)
    ub = jnp.asarray(UB_VALUES, dtype=jnp.float32)
    kx, kp = jax.random.split(key)
    ux = jax.random.uniform(kx, (n, 3), jnp.float32)
    up = jax.random.uniform(kp, (n, 4), jnp.float32)
    x = lb[:3] + ux * (ub[:3] - lb[:3])
    para = lb[3:] + up * (ub[3:] - lb[3:])
    return x, para


if __name__ == "__main__":
    key = jax.random.PRNGKey(0)
    k_params, k_small, k_multi = jax.random.split(key, 3)
    params = init_params(k_params)

    # Small demo batch (single tile).
    N = 8
    x, para = _make_inputs(k_small, N)
    out = jax.block_until_ready(pinn_forward(x, para, params))
    ref = reference_forward(x, para, params)
    assert out.shape == (N, 3), out.shape
    max_err = float(jnp.max(jnp.abs(out - ref)))
    assert jnp.allclose(out, ref, atol=1e-4, rtol=1e-4), max_err

    # Non-multiple batch with a small tile cap to exercise the multi-tile grid
    # and the padded-lane slicing path.
    N2 = 200
    x2, para2 = _make_inputs(k_multi, N2)
    out2 = jax.block_until_ready(pinn_forward(x2, para2, params, max_tile=128))
    ref2 = reference_forward(x2, para2, params)
    assert out2.shape == (N2, 3), out2.shape
    max_err2 = float(jnp.max(jnp.abs(out2 - ref2)))
    assert jnp.allclose(out2, ref2, atol=1e-4, rtol=1e-4), max_err2

    print("KERNEL_OK")
</pallas_src>

<mosaic_0001>
module attributes {stable_mosaic.version = 11 : i64} {
  func.func @_pinn_kernel(%arg0: i32, %arg1: memref<3x128xf32, #tpu.memory_space<vmem>>, %arg2: memref<4x128xf32, #tpu.memory_space<vmem>>, %arg3: memref<32x3xf32, #tpu.memory_space<vmem>>, %arg4: memref<32x4xf32, #tpu.memory_space<vmem>>, %arg5: memref<32x1xf32, #tpu.memory_space<vmem>>, %arg6: memref<32x32xf32, #tpu.memory_space<vmem>>, %arg7: memref<32x1xf32, #tpu.memory_space<vmem>>, %arg8: memref<32x32xf32, #tpu.memory_space<vmem>>, %arg9: memref<32x1xf32, #tpu.memory_space<vmem>>, %arg10: memref<32x32xf32, #tpu.memory_space<vmem>>, %arg11: memref<32x1xf32, #tpu.memory_space<vmem>>, %arg12: memref<32x32xf32, #tpu.memory_space<vmem>>, %arg13: memref<32x1xf32, #tpu.memory_space<vmem>>, %arg14: memref<32x32xf32, #tpu.memory_space<vmem>>, %arg15: memref<32x1xf32, #tpu.memory_space<vmem>>, %arg16: memref<32x32xf32, #tpu.memory_space<vmem>>, %arg17: memref<32x1xf32, #tpu.memory_space<vmem>>, %arg18: memref<32x32xf32, #tpu.memory_space<vmem>>, %arg19: memref<32x1xf32, #tpu.memory_space<vmem>>, %arg20: memref<32x32xf32, #tpu.memory_space<vmem>>, %arg21: memref<32x1xf32, #tpu.memory_space<vmem>>, %arg22: memref<3x32xf32, #tpu.memory_space<vmem>>, %arg23: memref<3x1xf32, #tpu.memory_space<vmem>>, %arg24: memref<3x128xf32, #tpu.memory_space<vmem>>) attributes {dimension_semantics = [#tpu.dimension_semantics<parallel>], iteration_bounds = array<i64: 1>, scalar_prefetch = 0 : i64, scratch_operands = 0 : i64, tpu.core_type = #tpu.core_type<tc>, window_params = [{transform_indices = @transform_0, window_bounds = array<i64: 3, 128>}, {transform_indices = @transform_1, window_bounds = array<i64: 4, 128>}, {pipeline_mode = #tpu.pipeline_mode<synchronous>, transform_indices = @transform_2, window_bounds = array<i64: 32, 3>}, {pipeline_mode = #tpu.pipeline_mode<synchronous>, transform_indices = @transform_3, window_bounds = array<i64: 32, 4>}, {pipeline_mode = #tpu.pipeline_mode<synchronous>, transform_indices = @transform_4, window_bounds = array<i64: 32, 1>}, {pipeline_mode = #tpu.pipeline_mode<synchronous>, transform_indices = @transform_5, window_bounds = array<i64: 32, 32>}, {pipeline_mode = #tpu.pipeline_mode<synchronous>, transform_indices = @transform_6, window_bounds = array<i64: 32, 1>}, {pipeline_mode = #tpu.pipeline_mode<synchronous>, transform_indices = @transform_7, window_bounds = array<i64: 32, 32>}, {pipeline_mode = #tpu.pipeline_mode<synchronous>, transform_indices = @transform_8, window_bounds = array<i64: 32, 1>}, {pipeline_mode = #tpu.pipeline_mode<synchronous>, transform_indices = @transform_9, window_bounds = array<i64: 32, 32>}, {pipeline_mode = #tpu.pipeline_mode<synchronous>, transform_indices = @transform_10, window_bounds = array<i64: 32, 1>}, {pipeline_mode = #tpu.pipeline_mode<synchronous>, transform_indices = @transform_11, window_bounds = array<i64: 32, 32>}, {pipeline_mode = #tpu.pipeline_mode<synchronous>, transform_indices = @transform_12, window_bounds = array<i64: 32, 1>}, {pipeline_mode = #tpu.pipeline_mode<synchronous>, transform_indices = @transform_13, window_bounds = array<i64: 32, 32>}, {pipeline_mode = #tpu.pipeline_mode<synchronous>, transform_indices = @transform_14, window_bounds = array<i64: 32, 1>}, {pipeline_mode = #tpu.pipeline_mode<synchronous>, transform_indices = @transform_15, window_bounds = array<i64: 32, 32>}, {pipeline_mode = #tpu.pipeline_mode<synchronous>, transform_indices = @transform_16, window_bounds = array<i64: 32, 1>}, {pipeline_mode = #tpu.pipeline_mode<synchronous>, transform_indices = @transform_17, window_bounds = array<i64: 32, 32>}, {pipeline_mode = #tpu.pipeline_mode<synchronous>, transform_indices = @transform_18, window_bounds = array<i64: 32, 1>}, {pipeline_mode = #tpu.pipeline_mode<synchronous>, transform_indices = @transform_19, window_bounds = array<i64: 32, 32>}, {pipeline_mode = #tpu.pipeline_mode<synchronous>, transform_indices = @transform_20, window_bounds = array<i64: 32, 1>}, {pipeline_mode = #tpu.pipeline_mode<synchronous>, transform_indices = @transform_21, window_bounds = array<i64: 3, 32>}, {pipeline_mode = #tpu.pipeline_mode<synchronous>, transform_indices = @transform_22, window_bounds = array<i64: 3, 1>}, {transform_indices = @transform_23, window_bounds = array<i64: 3, 128>}]} {
    %c0 = arith.constant 0 : index
    %c0_0 = arith.constant 0 : index
    %0 = vector.load %arg3[%c0, %c0_0] : memref<32x3xf32, #tpu.memory_space<vmem>>, vector<32x3xf32>
    %c0_1 = arith.constant 0 : index
    %c0_2 = arith.constant 0 : index
    %1 = vector.load %arg1[%c0_1, %c0_2] : memref<3x128xf32, #tpu.memory_space<vmem>>, vector<3x128xf32>
    %cst = arith.constant dense<0.000000e+00> : vector<32x128xf32>
    %2 = tpu.matmul %0, %1, %cst {dimension_numbers = #tpu.dot_dimension_numbers<[1], [0], [0], [1], [0, 0, 1, 1], [], []>} : vector<32x3xf32>, vector<3x128xf32>, vector<32x128xf32> -> vector<32x128xf32>
    %c0_3 = arith.constant 0 : index
    %c0_4 = arith.constant 0 : index
    %3 = vector.load %arg4[%c0_3, %c0_4] : memref<32x4xf32, #tpu.memory_space<vmem>>, vector<32x4xf32>
    %c0_5 = arith.constant 0 : index
    %c0_6 = arith.constant 0 : index
    %4 = vector.load %arg2[%c0_5, %c0_6] : memref<4x128xf32, #tpu.memory_space<vmem>>, vector<4x128xf32>
    %cst_7 = arith.constant dense<0.000000e+00> : vector<32x128xf32>
    %5 = tpu.matmul %3, %4, %cst_7 {dimension_numbers = #tpu.dot_dimension_numbers<[1], [0], [0], [1], [0, 0, 1, 1], [], []>} : vector<32x4xf32>, vector<4x128xf32>, vector<32x128xf32> -> vector<32x128xf32>
    %6 = arith.addf %2, %5 : vector<32x128xf32>
    %c0_8 = arith.constant 0 : index
    %c0_9 = arith.constant 0 : index
    %7 = vector.load %arg5[%c0_8, %c0_9] : memref<32x1xf32, #tpu.memory_space<vmem>>, vector<32x1xf32>
    %8 = vector.broadcast %7 : vector<32x1xf32> to vector<32x128xf32>
    %9 = arith.addf %6, %8 : vector<32x128xf32>
    %c0_10 = arith.constant 0 : index
    %c0_11 = arith.constant 0 : index
    %10 = vector.load %arg6[%c0_10, %c0_11] : memref<32x32xf32, #tpu.memory_space<vmem>>, vector<32x32xf32>
    %cst_12 = arith.constant dense<0.000000e+00> : vector<32x128xf32>
    %11 = tpu.matmul %10, %9, %cst_12 {dimension_numbers = #tpu.dot_dimension_numbers<[1], [0], [0], [1], [0, 0, 1, 1], [], []>} : vector<32x32xf32>, vector<32x128xf32>, vector<32x128xf32> -> vector<32x128xf32>
    %c0_13 = arith.constant 0 : index
    %c0_14 = arith.constant 0 : index
    %12 = vector.load %arg7[%c0_13, %c0_14] : memref<32x1xf32, #tpu.memory_space<vmem>>, vector<32x1xf32>
    %13 = vector.broadcast %12 : vector<32x1xf32> to vector<32x128xf32>
    %14 = arith.addf %11, %13 : vector<32x128xf32>
    %15 = math.sin %14 : vector<32x128xf32>
    %c0_15 = arith.constant 0 : index
    %c0_16 = arith.constant 0 : index
    %16 = vector.load %arg8[%c0_15, %c0_16] : memref<32x32xf32, #tpu.memory_space<vmem>>, vector<32x32xf32>
    %cst_17 = arith.constant dense<0.000000e+00> : vector<32x128xf32>
    %17 = tpu.matmul %16, %15, %cst_17 {dimension_numbers = #tpu.dot_dimension_numbers<[1], [0], [0], [1], [0, 0, 1, 1], [], []>} : vector<32x32xf32>, vector<32x128xf32>, vector<32x128xf32> -> vector<32x128xf32>
    %c0_18 = arith.constant 0 : index
    %c0_19 = arith.constant 0 : index
    %18 = vector.load %arg9[%c0_18, %c0_19] : memref<32x1xf32, #tpu.memory_space<vmem>>, vector<32x1xf32>
    %19 = vector.broadcast %18 : vector<32x1xf32> to vector<32x128xf32>
    %20 = arith.addf %17, %19 : vector<32x128xf32>
    %21 = math.sin %20 : vector<32x128xf32>
    %22 = arith.addf %9, %21 : vector<32x128xf32>
    %c0_20 = arith.constant 0 : index
    %c0_21 = arith.constant 0 : index
    %23 = vector.load %arg10[%c0_20, %c0_21] : memref<32x32xf32, #tpu.memory_space<vmem>>, vector<32x32xf32>
    %cst_22 = arith.constant dense<0.000000e+00> : vector<32x128xf32>
    %24 = tpu.matmul %23, %22, %cst_22 {dimension_numbers = #tpu.dot_dimension_numbers<[1], [0], [0], [1], [0, 0, 1, 1], [], []>} : vector<32x32xf32>, vector<32x128xf32>, vector<32x128xf32> -> vector<32x128xf32>
    %c0_23 = arith.constant 0 : index
    %c0_24 = arith.constant 0 : index
    %25 = vector.load %arg11[%c0_23, %c0_24] : memref<32x1xf32, #tpu.memory_space<vmem>>, vector<32x1xf32>
    %26 = vector.broadcast %25 : vector<32x1xf32> to vector<32x128xf32>
    %27 = arith.addf %24, %26 : vector<32x128xf32>
    %28 = math.sin %27 : vector<32x128xf32>
    %c0_25 = arith.constant 0 : index
    %c0_26 = arith.constant 0 : index
    %29 = vector.load %arg12[%c0_25, %c0_26] : memref<32x32xf32, #tpu.memory_space<vmem>>, vector<32x32xf32>
    %cst_27 = arith.constant dense<0.000000e+00> : vector<32x128xf32>
    %30 = tpu.matmul %29, %28, %cst_27 {dimension_numbers = #tpu.dot_dimension_numbers<[1], [0], [0], [1], [0, 0, 1, 1], [], []>} : vector<32x32xf32>, vector<32x128xf32>, vector<32x128xf32> -> vector<32x128xf32>
    %c0_28 = arith.constant 0 : index
    %c0_29 = arith.constant 0 : index
    %31 = vector.load %arg13[%c0_28, %c0_29] : memref<32x1xf32, #tpu.memory_space<vmem>>, vector<32x1xf32>
    %32 = vector.broadcast %31 : vector<32x1xf32> to vector<32x128xf32>
    %33 = arith.addf %30, %32 : vector<32x128xf32>
    %34 = math.sin %33 : vector<32x128xf32>
    %35 = arith.addf %22, %34 : vector<32x128xf32>
    %c0_30 = arith.constant 0 : index
    %c0_31 = arith.constant 0 : index
    %36 = vector.load %arg14[%c0_30, %c0_31] : memref<32x32xf32, #tpu.memory_space<vmem>>, vector<32x32xf32>
    %cst_32 = arith.constant dense<0.000000e+00> : vector<32x128xf32>
    %37 = tpu.matmul %36, %35, %cst_32 {dimension_numbers = #tpu.dot_dimension_numbers<[1], [0], [0], [1], [0, 0, 1, 1], [], []>} : vector<32x32xf32>, vector<32x128xf32>, vector<32x128xf32> -> vector<32x128xf32>
    %c0_33 = arith.constant 0 : index
    %c0_34 = arith.constant 0 : index
    %38 = vector.load %arg15[%c0_33, %c0_34] : memref<32x1xf32, #tpu.memory_space<vmem>>, vector<32x1xf32>
    %39 = vector.broadcast %38 : vector<32x1xf32> to vector<32x128xf32>
    %40 = arith.addf %37, %39 : vector<32x128xf32>
    %41 = math.sin %40 : vector<32x128xf32>
    %c0_35 = arith.constant 0 : index
    %c0_36 = arith.constant 0 : index
    %42 = vector.load %arg16[%c0_35, %c0_36] : memref<32x32xf32, #tpu.memory_space<vmem>>, vector<32x32xf32>
    %cst_37 = arith.constant dense<0.000000e+00> : vector<32x128xf32>
    %43 = tpu.matmul %42, %41, %cst_37 {dimension_numbers = #tpu.dot_dimension_numbers<[1], [0], [0], [1], [0, 0, 1, 1], [], []>} : vector<32x32xf32>, vector<32x128xf32>, vector<32x128xf32> -> vector<32x128xf32>
    %c0_38 = arith.constant 0 : index
    %c0_39 = arith.constant 0 : index
    %44 = vector.load %arg17[%c0_38, %c0_39] : memref<32x1xf32, #tpu.memory_space<vmem>>, vector<32x1xf32>
    %45 = vector.broadcast %44 : vector<32x1xf32> to vector<32x128xf32>
    %46 = arith.addf %43, %45 : vector<32x128xf32>
    %47 = math.sin %46 : vector<32x128xf32>
    %48 = arith.addf %35, %47 : vector<32x128xf32>
    %c0_40 = arith.constant 0 : index
    %c0_41 = arith.constant 0 : index
    %49 = vector.load %arg18[%c0_40, %c0_41] : memref<32x32xf32, #tpu.memory_space<vmem>>, vector<32x32xf32>
    %cst_42 = arith.constant dense<0.000000e+00> : vector<32x128xf32>
    %50 = tpu.matmul %49, %48, %cst_42 {dimension_numbers = #tpu.dot_dimension_numbers<[1], [0], [0], [1], [0, 0, 1, 1], [], []>} : vector<32x32xf32>, vector<32x128xf32>, vector<32x128xf32> -> vector<32x128xf32>
    %c0_43 = arith.constant 0 : index
    %c0_44 = arith.constant 0 : index
    %51 = vector.load %arg19[%c0_43, %c0_44] : memref<32x1xf32, #tpu.memory_space<vmem>>, vector<32x1xf32>
    %52 = vector.broadcast %51 : vector<32x1xf32> to vector<32x128xf32>
    %53 = arith.addf %50, %52 : vector<32x128xf32>
    %54 = math.sin %53 : vector<32x128xf32>
    %c0_45 = arith.constant 0 : index
    %c0_46 = arith.constant 0 : index
    %55 = vector.load %arg20[%c0_45, %c0_46] : memref<32x32xf32, #tpu.memory_space<vmem>>, vector<32x32xf32>
    %cst_47 = arith.constant dense<0.000000e+00> : vector<32x128xf32>
    %56 = tpu.matmul %55, %54, %cst_47 {dimension_numbers = #tpu.dot_dimension_numbers<[1], [0], [0], [1], [0, 0, 1, 1], [], []>} : vector<32x32xf32>, vector<32x128xf32>, vector<32x128xf32> -> vector<32x128xf32>
    %c0_48 = arith.constant 0 : index
    %c0_49 = arith.constant 0 : index
    %57 = vector.load %arg21[%c0_48, %c0_49] : memref<32x1xf32, #tpu.memory_space<vmem>>, vector<32x1xf32>
    %58 = vector.broadcast %57 : vector<32x1xf32> to vector<32x128xf32>
    %59 = arith.addf %56, %58 : vector<32x128xf32>
    %60 = math.sin %59 : vector<32x128xf32>
    %61 = arith.addf %48, %60 : vector<32x128xf32>
    %c0_50 = arith.constant 0 : index
    %c0_51 = arith.constant 0 : index
    %62 = vector.load %arg22[%c0_50, %c0_51] : memref<3x32xf32, #tpu.memory_space<vmem>>, vector<3x32xf32>
    %cst_52 = arith.constant dense<0.000000e+00> : vector<3x128xf32>
    %63 = tpu.matmul %62, %61, %cst_52 {dimension_numbers = #tpu.dot_dimension_numbers<[1], [0], [0], [1], [0, 0, 1, 1], [], []>} : vector<3x32xf32>, vector<32x128xf32>, vector<3x128xf32> -> vector<3x128xf32>
    %c0_53 = arith.constant 0 : index
    %c0_54 = arith.constant 0 : index
    %64 = vector.load %arg23[%c0_53, %c0_54] : memref<3x1xf32, #tpu.memory_space<vmem>>, vector<3x1xf32>
    %65 = vector.broadcast %64 : vector<3x1xf32> to vector<3x128xf32>
    %66 = arith.addf %63, %65 : vector<3x128xf32>
    %c0_55 = arith.constant 0 : index
    %c0_56 = arith.constant 0 : index
    %67 = vector.load %arg24[%c0_55, %c0_56] : memref<3x128xf32, #tpu.memory_space<vmem>>, vector<3x128xf32>
    tpu.vector_store %arg24[%c0_55, %c0_56], %66 {strides = array<i32>} : memref<3x128xf32, #tpu.memory_space<vmem>>, vector<3x128xf32>,
    return
  }
  func.func @transform_0(%arg0: i32) -> (i32, i32) {
    %c0_i32 = arith.constant 0 : i32
    %c0_i32_0 = arith.constant 0 : i32
    return %c0_i32, %arg0 : i32, i32
  }
  func.func @transform_1(%arg0: i32) -> (i32, i32) {
    %c0_i32 = arith.constant 0 : i32
    %c0_i32_0 = arith.constant 0 : i32
    return %c0_i32, %arg0 : i32, i32
  }
  func.func @transform_2(%arg0: i32) -> (i32, i32) {
    %c0_i32 = arith.constant 0 : i32
    %c0_i32_0 = arith.constant 0 : i32
    %c0_i32_1 = arith.constant 0 : i32
    return %c0_i32, %c0_i32_0 : i32, i32
  }
  func.func @transform_3(%arg0: i32) -> (i32, i32) {
    %c0_i32 = arith.constant 0 : i32
    %c0_i32_0 = arith.constant 0 : i32
    %c0_i32_1 = arith.constant 0 : i32
    return %c0_i32, %c0_i32_0 : i32, i32
  }
  func.func @transform_4(%arg0: i32) -> (i32, i32) {
    %c0_i32 = arith.constant 0 : i32
    %c0_i32_0 = arith.constant 0 : i32
    %c0_i32_1 = arith.constant 0 : i32
    return %c0_i32, %c0_i32_0 : i32, i32
  }
  func.func @transform_5(%arg0: i32) -> (i32, i32) {
    %c0_i32 = arith.constant 0 : i32
    %c0_i32_0 = arith.constant 0 : i32
    %c0_i32_1 = arith.constant 0 : i32
    return %c0_i32, %c0_i32_0 : i32, i32
  }
  func.func @transform_6(%arg0: i32) -> (i32, i32) {
    %c0_i32 = arith.constant 0 : i32
    %c0_i32_0 = arith.constant 0 : i32
    %c0_i32_1 = arith.constant 0 : i32
    return %c0_i32, %c0_i32_0 : i32, i32
  }
  func.func @transform_7(%arg0: i32) -> (i32, i32) {
    %c0_i32 = arith.constant 0 : i32
    %c0_i32_0 = arith.constant 0 : i32
    %c0_i32_1 = arith.constant 0 : i32
    return %c0_i32, %c0_i32_0 : i32, i32
  }
  func.func @transform_8(%arg0: i32) -> (i32, i32) {
    %c0_i32 = arith.constant 0 : i32
    %c0_i32_0 = arith.constant 0 : i32
    %c0_i32_1 = arith.constant 0 : i32
    return %c0_i32, %c0_i32_0 : i32, i32
  }
  func.func @transform_9(%arg0: i32) -> (i32, i32) {
    %c0_i32 = arith.constant 0 : i32
    %c0_i32_0 = arith.constant 0 : i32
    %c0_i32_1 = arith.constant 0 : i32
    return %c0_i32, %c0_i32_0 : i32, i32
  }
  func.func @transform_10(%arg0: i32) -> (i32, i32) {
    %c0_i32 = arith.constant 0 : i32
    %c0_i32_0 = arith.constant 0 : i32
    %c0_i32_1 = arith.constant 0 : i32
    return %c0_i32, %c0_i32_0 : i32, i32
  }
  func.func @transform_11(%arg0: i32) -> (i32, i32) {
    %c0_i32 = arith.constant 0 : i32
    %c0_i32_0 = arith.constant 0 : i32
    %c0_i32_1 = arith.constant 0 : i32
    return %c0_i32, %c0_i32_0 : i32, i32
  }
  func.func @transform_12(%arg0: i32) -> (i32, i32) {
    %c0_i32 = arith.constant 0 : i32
    %c0_i32_0 = arith.constant 0 : i32
    %c0_i32_1 = arith.constant 0 : i32
    return %c0_i32, %c0_i32_0 : i32, i32
  }
  func.func @transform_13(%arg0: i32) -> (i32, i32) {
    %c0_i32 = arith.constant 0 : i32
    %c0_i32_0 = arith.constant 0 : i32
    %c0_i32_1 = arith.constant 0 : i32
    return %c0_i32, %c0_i32_0 : i32, i32
  }
  func.func @transform_14(%arg0: i32) -> (i32, i32) {
    %c0_i32 = arith.constant 0 : i32
    %c0_i32_0 = arith.constant 0 : i32
    %c0_i32_1 = arith.constant 0 : i32
    return %c0_i32, %c0_i32_0 : i32, i32
  }
  func.func @transform_15(%arg0: i32) -> (i32, i32) {
    %c0_i32 = arith.constant 0 : i32
    %c0_i32_0 = arith.constant 0 : i32
    %c0_i32_1 = arith.constant 0 : i32
    return %c0_i32, %c0_i32_0 : i32, i32
  }
  func.func @transform_16(%arg0: i32) -> (i32, i32) {
    %c0_i32 = arith.constant 0 : i32
    %c0_i32_0 = arith.constant 0 : i32
    %c0_i32_1 = arith.constant 0 : i32
    return %c0_i32, %c0_i32_0 : i32, i32
  }
  func.func @transform_17(%arg0: i32) -> (i32, i32) {
    %c0_i32 = arith.constant 0 : i32
    %c0_i32_0 = arith.constant 0 : i32
    %c0_i32_1 = arith.constant 0 : i32
    return %c0_i32, %c0_i32_0 : i32, i32
  }
  func.func @transform_18(%arg0: i32) -> (i32, i32) {
    %c0_i32 = arith.constant 0 : i32
    %c0_i32_0 = arith.constant 0 : i32
    %c0_i32_1 = arith.constant 0 : i32
    return %c0_i32, %c0_i32_0 : i32, i32
  }
  func.func @transform_19(%arg0: i32) -> (i32, i32) {
    %c0_i32 = arith.constant 0 : i32
    %c0_i32_0 = arith.constant 0 : i32
    %c0_i32_1 = arith.constant 0 : i32
    return %c0_i32, %c0_i32_0 : i32, i32
  }
  func.func @transform_20(%arg0: i32) -> (i32, i32) {
    %c0_i32 = arith.constant 0 : i32
    %c0_i32_0 = arith.constant 0 : i32
    %c0_i32_1 = arith.constant 0 : i32
    return %c0_i32, %c0_i32_0 : i32, i32
  }
  func.func @transform_21(%arg0: i32) -> (i32, i32) {
    %c0_i32 = arith.constant 0 : i32
    %c0_i32_0 = arith.constant 0 : i32
    %c0_i32_1 = arith.constant 0 : i32
    return %c0_i32, %c0_i32_0 : i32, i32
  }
  func.func @transform_22(%arg0: i32) -> (i32, i32) {
    %c0_i32 = arith.constant 0 : i32
    %c0_i32_0 = arith.constant 0 : i32
    %c0_i32_1 = arith.constant 0 : i32
    return %c0_i32, %c0_i32_0 : i32, i32
  }
  func.func @transform_23(%arg0: i32) -> (i32, i32) {
    %c0_i32 = arith.constant 0 : i32
    %c0_i32_0 = arith.constant 0 : i32
    return %c0_i32, %arg0 : i32, i32
  }
}

</mosaic_0001>

<llo_original>
// kernel: pinn_forward.1
$region0: #{pinn_forward.1}
  #allocation0 [shape = 'u32[]', space=smem, size = 0x4, offset = 0x4, fixed_abs, tag = 'smem constant byte address 0x4 - core index']
  #allocation1 [shape = 'u32[144,128]{1,0:T(1,128)}', space=vmem, size = 0x12000, scoped, tag = 'internal scratch']
  %s0 = inlined_call_operand.vmem [shape: f32[3,128], index: 0, kind: input, shape index: {}]
  %s1 = inlined_call_operand.vmem [shape: f32[4,128], index: 1, kind: input, shape index: {}]
  %s2 = inlined_call_operand.vmem [shape: f32[32,3], index: 2, kind: input, shape index: {}]
  %s3 = inlined_call_operand.vmem [shape: f32[32,4], index: 3, kind: input, shape index: {}]
  %s4 = inlined_call_operand.vmem [shape: f32[32,1], index: 4, kind: input, shape index: {}]
  %s5 = inlined_call_operand.vmem [shape: f32[32,32], index: 5, kind: input, shape index: {}]
  %s6 = inlined_call_operand.vmem [shape: f32[32,1], index: 6, kind: input, shape index: {}]
  %s7 = inlined_call_operand.vmem [shape: f32[32,32], index: 7, kind: input, shape index: {}]
  %s8 = inlined_call_operand.vmem [shape: f32[32,1], index: 8, kind: input, shape index: {}]
  %s9 = inlined_call_operand.vmem [shape: f32[32,32], index: 9, kind: input, shape index: {}]
  %s10 = inlined_call_operand.vmem [shape: f32[32,1], index: 10, kind: input, shape index: {}]
  %s11 = inlined_call_operand.vmem [shape: f32[32,32], index: 11, kind: input, shape index: {}]
  %s12 = inlined_call_operand.vmem [shape: f32[32,1], index: 12, kind: input, shape index: {}]
  %s13 = inlined_call_operand.vmem [shape: f32[32,32], index: 13, kind: input, shape index: {}]
  %s14 = inlined_call_operand.vmem [shape: f32[32,1], index: 14, kind: input, shape index: {}]
  %s15 = inlined_call_operand.vmem [shape: f32[32,32], index: 15, kind: input, shape index: {}]
  %s16 = inlined_call_operand.vmem [shape: f32[32,1], index: 16, kind: input, shape index: {}]
  %s17 = inlined_call_operand.vmem [shape: f32[32,32], index: 17, kind: input, shape index: {}]
  %s18 = inlined_call_operand.vmem [shape: f32[32,1], index: 18, kind: input, shape index: {}]
  %s19 = inlined_call_operand.vmem [shape: f32[32,32], index: 19, kind: input, shape index: {}]
  %s20 = inlined_call_operand.vmem [shape: f32[32,1], index: 20, kind: input, shape index: {}]
  %s21 = inlined_call_operand.vmem [shape: f32[3,32], index: 21, kind: input, shape index: {}]
  %s22 = inlined_call_operand.vmem [shape: f32[3,1], index: 22, kind: input, shape index: {}]
  %s23 = inlined_call_operand.vmem [shape: f32[3,128], index: 23, kind: output, shape index: {}]
  %s24 = sld [smem:[#allocation0]]
  $region102: #{pinn_forward.1} parent=0
    _
  %s26 = ssub.s32 1, %s24
  %s27 = scalar_select 0, %s26, %s24
  // Predicated region
  $region2: #{pinn_forward.1} parent=0 // pred_check
    _
  $region3: #{pinn_forward.1} parent=0 // pred_check_branch
    %29 = sbr.rel (0) target = $region5
  $region4: #{pinn_forward.1} parent=0 // pred_region
    _
  $region5: #{pinn_forward.1} parent=0 // pred_fallthru
    _
  // Predicated region
  $region6: #{pinn_forward.1} parent=0 // pred_check
    _
  $region7: #{pinn_forward.1} parent=0 // pred_check_branch
    %31 = sbr.rel (0) target = $region9
  $region8: #{pinn_forward.1} parent=0 // pred_region
    _
  $region9: #{pinn_forward.1} parent=0 // pred_fallthru
    _
  // Predicated region
  $region10: #{pinn_forward.1} parent=0 // pred_check
    _
  $region11: #{pinn_forward.1} parent=0 // pred_check_branch
    %33 = sbr.rel (0) target = $region13
  $region12: #{pinn_forward.1} parent=0 // pred_region
    _
  $region13: #{pinn_forward.1} parent=0 // pred_fallthru
    _
  // Predicated region
  $region14: #{pinn_forward.1} parent=0 // pred_check
    _
  $region15: #{pinn_forward.1} parent=0 // pred_check_branch
    %35 = sbr.rel (0) target = $region17
  $region16: #{pinn_forward.1} parent=0 // pred_region
    _
  $region17: #{pinn_forward.1} parent=0 // pred_fallthru
    _
  // Predicated region
  $region18: #{pinn_forward.1} parent=0 // pred_check
    _
  $region19: #{pinn_forward.1} parent=0 // pred_check_branch
    %37 = sbr.rel (0) target = $region21
  $region20: #{pinn_forward.1} parent=0 // pred_region
    _
  $region21: #{pinn_forward.1} parent=0 // pred_fallthru
    _
  // Predicated region
  $region22: #{pinn_forward.1} parent=0 // pred_check
    _
  $region23: #{pinn_forward.1} parent=0 // pred_check_branch
    %39 = sbr.rel (0) target = $region25
  $region24: #{pinn_forward.1} parent=0 // pred_region
    _
  $region25: #{pinn_forward.1} parent=0 // pred_fallthru
    _
  // Predicated region
  $region26: #{pinn_forward.1} parent=0 // pred_check
    _
  $region27: #{pinn_forward.1} parent=0 // pred_check_branch
    %41 = sbr.rel (0) target = $region29
  $region28: #{pinn_forward.1} parent=0 // pred_region
    _
  $region29: #{pinn_forward.1} parent=0 // pred_fallthru
    _
  // Predicated region
  $region30: #{pinn_forward.1} parent=0 // pred_check
    _
  $region31: #{pinn_forward.1} parent=0 // pred_check_branch
    %43 = sbr.rel (0) target = $region33
  $region32: #{pinn_forward.1} parent=0 // pred_region
    _
  $region33: #{pinn_forward.1} parent=0 // pred_fallthru
    _
  // Predicated region
  $region34: #{pinn_forward.1} parent=0 // pred_check
    _
  $region35: #{pinn_forward.1} parent=0 // pred_check_branch
    %45 = sbr.rel (0) target = $region37
  $region36: #{pinn_forward.1} parent=0 // pred_region
    _
  $region37: #{pinn_forward.1} parent=0 // pred_fallthru
    _
  // Predicated region
  $region38: #{pinn_forward.1} parent=0 // pred_check
    _
  $region39: #{pinn_forward.1} parent=0 // pred_check_branch
    %47 = sbr.rel (0) target = $region41
  $region40: #{pinn_forward.1} parent=0 // pred_region
    _
  $region41: #{pinn_forward.1} parent=0 // pred_fallthru
    _
  // Predicated region
  $region42: #{pinn_forward.1} parent=0 // pred_check
    _
  $region43: #{pinn_forward.1} parent=0 // pred_check_branch
    %49 = sbr.rel (0) target = $region45
  $region44: #{pinn_forward.1} parent=0 // pred_region
    _
  $region45: #{pinn_forward.1} parent=0 // pred_fallthru
    _
  // Predicated region
  $region46: #{pinn_forward.1} parent=0 // pred_check
    _
  $region47: #{pinn_forward.1} parent=0 // pred_check_branch
    %51 = sbr.rel (0) target = $region49
  $region48: #{pinn_forward.1} parent=0 // pred_region
    _
  $region49: #{pinn_forward.1} parent=0 // pred_fallthru
    _
  // Predicated region
  $region50: #{pinn_forward.1} parent=0 // pred_check
    _
  $region51: #{pinn_forward.1} parent=0 // pred_check_branch
    %53 = sbr.rel (0) target = $region53
  $region52: #{pinn_forward.1} parent=0 // pred_region
    _
  $region53: #{pinn_forward.1} parent=0 // pred_fallthru
    _
  // Predicated region
  $region54: #{pinn_forward.1} parent=0 // pred_check
    _
  $region55: #{pinn_forward.1} parent=0 // pred_check_branch
    %55 = sbr.rel (0) target = $region57
  $region56: #{pinn_forward.1} parent=0 // pred_region
    _
  $region57: #{pinn_forward.1} parent=0 // pred_fallthru
    _
  // Predicated region
  $region58: #{pinn_forward.1} parent=0 // pred_check
    _
  $region59: #{pinn_forward.1} parent=0 // pred_check_branch
    %57 = sbr.rel (0) target = $region61
  $region60: #{pinn_forward.1} parent=0 // pred_region
    _
  $region61: #{pinn_forward.1} parent=0 // pred_fallthru
    _
  // Predicated region
  $region62: #{pinn_forward.1} parent=0 // pred_check
    _
  $region63: #{pinn_forward.1} parent=0 // pred_check_branch
    %59 = sbr.rel (0) target = $region65
  $region64: #{pinn_forward.1} parent=0 // pred_region
    _
  $region65: #{pinn_forward.1} parent=0 // pred_fallthru
    _
  // Predicated region
  $region66: #{pinn_forward.1} parent=0 // pred_check
    _
  $region67: #{pinn_forward.1} parent=0 // pred_check_branch
    %61 = sbr.rel (0) target = $region69
  $region68: #{pinn_forward.1} parent=0 // pred_region
    _
  $region69: #{pinn_forward.1} parent=0 // pred_fallthru
    _
  // Predicated region
  $region70: #{pinn_forward.1} parent=0 // pred_check
    _
  $region71: #{pinn_forward.1} parent=0 // pred_check_branch
    %63 = sbr.rel (0) target = $region73
  $region72: #{pinn_forward.1} parent=0 // pred_region
    _
  $region73: #{pinn_forward.1} parent=0 // pred_fallthru
    _
  // Predicated region
  $region74: #{pinn_forward.1} parent=0 // pred_check
    _
  $region75: #{pinn_forward.1} parent=0 // pred_check_branch
    %65 = sbr.rel (0) target = $region77
  $region76: #{pinn_forward.1} parent=0 // pred_region
    _
  $region77: #{pinn_forward.1} parent=0 // pred_fallthru
    _
  // Predicated region
  $region78: #{pinn_forward.1} parent=0 // pred_check
    _
  $region79: #{pinn_forward.1} parent=0 // pred_check_branch
    %67 = sbr.rel (0) target = $region81
  $region80: #{pinn_forward.1} parent=0 // pred_region
    _
  $region81: #{pinn_forward.1} parent=0 // pred_fallthru
    _
  // Predicated region
  $region82: #{pinn_forward.1} parent=0 // pred_check
    _
  $region83: #{pinn_forward.1} parent=0 // pred_check_branch
    %69 = sbr.rel (0) target = $region85
  $region84: #{pinn_forward.1} parent=0 // pred_region
    _
  $region85: #{pinn_forward.1} parent=0 // pred_fallthru
    _
  // Predicated region
  $region86: #{pinn_forward.1} parent=0 // pred_check
    _
  $region87: #{pinn_forward.1} parent=0 // pred_check_branch
    %71 = sbr.rel (0) target = $region89
  $region88: #{pinn_forward.1} parent=0 // pred_region
    _
  $region89: #{pinn_forward.1} parent=0 // pred_fallthru
    _
  // Predicated region
  $region90: #{pinn_forward.1} parent=0 // pred_check
    _
  $region91: #{pinn_forward.1} parent=0 // pred_check_branch
    %73 = sbr.rel (0) target = $region93
  $region92: #{pinn_forward.1} parent=0 // pred_region
    _
  $region93: #{pinn_forward.1} parent=0 // pred_fallthru
    _
  %v74 = vld [vmem:[%s2] sm:$0xff]
  %v75 = vld [vmem:[%s2 + $0x8] sm:$0xff]
  %v76 = vld [vmem:[%s2 + $0x10] sm:$0xff]
  %v77 = vld [vmem:[%s2 + $0x18] sm:$0xff]
  %v78 = vld [vmem:[%s0] sm:$0x7]
  %v79 = vld [vmem:[%s3] sm:$0xff]
  %v80 = vld [vmem:[%s3 + $0x8] sm:$0xff]
  %v81 = vld [vmem:[%s3 + $0x10] sm:$0xff]
  %v82 = vld [vmem:[%s3 + $0x18] sm:$0xff]
  %v83 = vld [vmem:[%s1] sm:$0xf]
  %vm84 = vcmask 31744
  %v86 = vsel %vm84, %v79, 0
  %v89 = vsel %vm84, %v80, 0
  %v92 = vsel %vm84, %v81, 0
  %v95 = vsel %vm84, %v82, 0
  %vm97 = vcmask 1043456
  %v99 = vsel %vm97, %v83, 0
  %101 = vmatprep.subr.mxu0 0.0
  %102 = vmatpush1.msra.mxu0 %v99
  %103 = vmatprep.subr.mxu0 0.0
  %104 = vmatpush1.msra.mxu0 0.0
  %105 = vmatprep.subr.mxu0 0.0
  %106 = vmatpush1.msra.mxu0 0.0
  %107 = vmatprep.subr.mxu0 0.0
  %108 = vmatpush1.msra.mxu0 0.0
  %109 = vmatprep.subr.mxu0 0.0
  %110 = vmatpush1.msra.mxu0 0.0
  %111 = vmatprep.subr.mxu0 0.0
  %112 = vmatpush1.msra.mxu0 0.0
  %113 = vmatprep.subr.mxu0 0.0
  %114 = vmatpush1.msra.mxu0 0.0
  %115 = vmatprep.subr.mxu0 0.0
  %116 = vmatpush1.msra.mxu0 0.0
  %117 = vmatprep.subr.mxu0 0.0
  %118 = vmatpush1.msra.mxu0 0.0
  %119 = vmatprep.subr.mxu0 0.0
  %120 = vmatpush1.msra.mxu0 0.0
  %121 = vmatprep.subr.mxu0 0.0
  %122 = vmatpush1.msra.mxu0 0.0
  %123 = vmatprep.subr.mxu0 0.0
  %124 = vmatpush1.msra.mxu0 0.0
  %125 = vmatprep.subr.mxu0 0.0
  %126 = vmatpush1.msra.mxu0 0.0
  %127 = vmatprep.subr.mxu0 0.0
  %128 = vmatpush1.msra.mxu0 0.0
  %129 = vmatprep.subr.mxu0 0.0
  %130 = vmatpush1.msra.mxu0 0.0
  %131 = vmatprep.subr.mxu0 0.0
  %132 = vmatpush1.msra.mxu0 0.0
  %133 = vmatprep.subr.mxu0 0.0
  %134 = vmatpush1.msra.mxu0 0.0
  %135 = vmatprep.subr.mxu0 0.0
  %136 = vmatpush1.msra.mxu0 0.0
  %137 = vmatprep.subr.mxu0 0.0
  %138 = vmatpush1.msra.mxu0 0.0
  %139 = vmatprep.subr.mxu0 0.0
  %140 = vmatpush1.msra.mxu0 0.0
  %141 = vmatprep.subr.mxu0 0.0
  %142 = vmatpush1.msra.mxu0 0.0
  %143 = vmatprep.subr.mxu0 0.0
  %144 = vmatpush1.msra.mxu0 0.0
  %145 = vmatprep.subr.mxu0 0.0
  %146 = vmatpush1.msra.mxu0 0.0
  %147 = vmatprep.subr.mxu0 0.0
  %148 = vmatpush1.msra.mxu0 0.0
  %149 = vmatprep.subr.mxu0 0.0
  %150 = vmatpush1.msra.mxu0 0.0
  %151 = vmatprep.subr.mxu0 0.0
  %152 = vmatpush1.msra.mxu0 0.0
  %153 = vmatprep.subr.mxu0 0.0
  %154 = vmatpush1.msra.mxu0 0.0
  %155 = vmatprep.subr.mxu0 0.0
  %156 = vmatpush1.msra.mxu0 0.0
  %157 = vmatprep.subr.mxu0 0.0
  %158 = vmatpush1.msra.mxu0 0.0
  %159 = vmatprep.subr.mxu0 0.0
  %160 = vmatpush1.msra.mxu0 0.0
  %161 = vmatprep.subr.mxu0 0.0
  %162 = vmatpush1.msra.mxu0 0.0
  %163 = vmatprep.subr.mxu0 0.0
  %164 = vmatpush1.msra.mxu0 0.0
  %165 = vmatprep.mubr.f32.mxu0 0.0
  %166 = vmatmul.mubr.f32.gmra.mrb[0].mxu0 %v86
  %v167 = vpop.f32.mrb[0].mxu0
  %v168 = vadd.f32 0.0, %v167
  %v169 = vpop.f32.mrb[0].mxu0
  %170 = vmatprep.mubr.f32.mxu0 0.0
  %171 = vmatmul.mubr.f32.gmra.mrb[0].mxu0 %v89
  %v172 = vpop.f32.mrb[0].mxu0
  %v173 = vadd.f32 0.0, %v172
  %v174 = vpop.f32.mrb[0].mxu0
  %175 = vmatprep.mubr.f32.mxu0 0.0
  %176 = vmatmul.mubr.f32.gmra.mrb[0].mxu0 %v92
  %v177 = vpop.f32.mrb[0].mxu0
  %v178 = vadd.f32 0.0, %v177
  %v179 = vpop.f32.mrb[0].mxu0
  %180 = vmatprep.mubr.f32.mxu0 0.0
  %181 = vmatmul.mubr.f32.gmra.mrb[0].mxu0 %v95
  %v182 = vpop.f32.mrb[0].mxu0
  %v183 = vadd.f32 0.0, %v182
  %v184 = vpop.f32.mrb[0].mxu0
  %185 = vdwg.mxu0
  %vm186 = vcmask 23552
  %v188 = vsel %vm186, %v74, 0
  %v191 = vsel %vm186, %v75, 0
  %v194 = vsel %vm186, %v76, 0
  %v197 = vsel %vm186, %v77, 0
  %vm199 = vcmask 1042432
  %v201 = vsel %vm199, %v78, 0
  %203 = vmatprep.subr.mxu0 0.0
  %204 = vmatpush1.msra.mxu0 %v201
  %205 = vmatprep.subr.mxu0 0.0
  %206 = vmatpush1.msra.mxu0 0.0
  %207 = vmatprep.subr.mxu0 0.0
  %208 = vmatpush1.msra.mxu0 0.0
  %209 = vmatprep.subr.mxu0 0.0
  %210 = vmatpush1.msra.mxu0 0.0
  %211 = vmatprep.subr.mxu0 0.0
  %212 = vmatpush1.msra.mxu0 0.0
  %213 = vmatprep.subr.mxu0 0.0
  %214 = vmatpush1.msra.mxu0 0.0
  %215 = vmatprep.subr.mxu0 0.0
  %216 = vmatpush1.msra.mxu0 0.0
  %217 = vmatprep.subr.mxu0 0.0
  %218 = vmatpush1.msra.mxu0 0.0
  %219 = vmatprep.subr.mxu0 0.0
  %220 = vmatpush1.msra.mxu0 0.0
  %221 = vmatprep.subr.mxu0 0.0
  %222 = vmatpush1.msra.mxu0 0.0
  %223 = vmatprep.subr.mxu0 0.0
  %224 = vmatpush1.msra.mxu0 0.0
  %225 = vmatprep.subr.mxu0 0.0
  %226 = vmatpush1.msra.mxu0 0.0
  %227 = vmatprep.subr.mxu0 0.0
  %228 = vmatpush1.msra.mxu0 0.0
  %229 = vmatprep.subr.mxu0 0.0
  %230 = vmatpush1.msra.mxu0 0.0
  %231 = vmatprep.subr.mxu0 0.0
  %232 = vmatpush1.msra.mxu0 0.0
  %233 = vmatprep.subr.mxu0 0.0
  %234 = vmatpush1.msra.mxu0 0.0
  %235 = vmatprep.subr.mxu0 0.0
  %236 = vmatpush1.msra.mxu0 0.0
  %237 = vmatprep.subr.mxu0 0.0
  %238 = vmatpush1.msra.mxu0 0.0
  %239 = vmatprep.subr.mxu0 0.0
  %240 = vmatpush1.msra.mxu0 0.0
  %241 = vmatprep.subr.mxu0 0.0
  %242 = vmatpush1.msra.mxu0 0.0
  %243 = vmatprep.subr.mxu0 0.0
  %244 = vmatpush1.msra.mxu0 0.0
  %245 = vmatprep.subr.mxu0 0.0
  %246 = vmatpush1.msra.mxu0 0.0
  %247 = vmatprep.subr.mxu0 0.0
  %248 = vmatpush1.msra.mxu0 0.0
  %249 = vmatprep.subr.mxu0 0.0
  %250 = vmatpush1.msra.mxu0 0.0
  %251 = vmatprep.subr.mxu0 0.0
  %252 = vmatpush1.msra.mxu0 0.0
  %253 = vmatprep.subr.mxu0 0.0
  %254 = vmatpush1.msra.mxu0 0.0
  %255 = vmatprep.subr.mxu0 0.0
  %256 = vmatpush1.msra.mxu0 0.0
  %257 = vmatprep.subr.mxu0 0.0
  %258 = vmatpush1.msra.mxu0 0.0
  %259 = vmatprep.subr.mxu0 0.0
  %260 = vmatpush1.msra.mxu0 0.0
  %261 = vmatprep.subr.mxu0 0.0
  %262 = vmatpush1.msra.mxu0 0.0
  %263 = vmatprep.subr.mxu0 0.0
  %264 = vmatpush1.msra.mxu0 0.0
  %265 = vmatprep.subr.mxu0 0.0
  %266 = vmatpush1.msra.mxu0 0.0
  %267 = vmatprep.mubr.f32.mxu0 0.0
  %268 = vmatmul.mubr.f32.gmra.mrb[0].mxu0 %v188
  %v269 = vpop.f32.mrb[0].mxu0
  %v270 = vadd.f32 %v168, %v269
  %v271 = vpop.f32.mrb[0].mxu0
  %272 = vmatprep.mubr.f32.mxu0 0.0
  %273 = vmatmul.mubr.f32.gmra.mrb[0].mxu0 %v191
  %v274 = vpop.f32.mrb[0].mxu0
  %v275 = vadd.f32 %v173, %v274
  %v276 = vpop.f32.mrb[0].mxu0
  %277 = vmatprep.mubr.f32.mxu0 0.0
  %278 = vmatmul.mubr.f32.gmra.mrb[0].mxu0 %v194
  %v279 = vpop.f32.mrb[0].mxu0
  %v280 = vadd.f32 %v178, %v279
  %v281 = vpop.f32.mrb[0].mxu0
  %282 = vmatprep.mubr.f32.mxu0 0.0
  %283 = vmatmul.mubr.f32.gmra.mrb[0].mxu0 %v197
  %v284 = vpop.f32.mrb[0].mxu0
  %v285 = vadd.f32 %v183, %v284
  %v286 = vpop.f32.mrb[0].mxu0
  %287 = vdwg.mxu0
  %v288 = vld [vmem:[%s4] sm:$0xff]
  %v289 = vld [vmem:[%s4 + $0x8] sm:$0xff]
  %v290 = vld [vmem:[%s4 + $0x10] sm:$0xff]
  %v291 = vld [vmem:[%s4 + $0x18] sm:$0xff]
  %293 = vset.pattern.permute.xlu0 0
  %294 = vperm.xlu0 %293, %v288
  %v295 = vpop.permute.xlu0 %294
  %298 = vset.pattern.permute.xlu0 0
  %299 = vperm.xlu0 %298, %v289
  %v300 = vpop.permute.xlu0 %299
  %303 = vset.pattern.permute.xlu0 0
  %304 = vperm.xlu0 %303, %v290
  %v305 = vpop.permute.xlu0 %304
  %308 = vset.pattern.permute.xlu0 0
  %309 = vperm.xlu0 %308, %v291
  %v310 = vpop.permute.xlu0 %309
  %v312 = vadd.f32 %v270, %v295
  %v313 = vadd.f32 %v275, %v300
  %v314 = vadd.f32 %v280, %v305
  %v315 = vadd.f32 %v285, %v310
  %v316 = vld [vmem:[%s5] sm:$0xff]
  %v317 = vld [vmem:[%s5 + $0x8] sm:$0xff]
  %v318 = vld [vmem:[%s5 + $0x10] sm:$0xff]
  %v319 = vld [vmem:[%s5 + $0x18] sm:$0xff]
  %v320 = vld [vmem:[%s6] sm:$0xff]
  %v321 = vld [vmem:[%s6 + $0x8] sm:$0xff]
  %v322 = vld [vmem:[%s6 + $0x10] sm:$0xff]
  %v323 = vld [vmem:[%s6 + $0x18] sm:$0xff]
  %325 = vset.pattern.permute.xlu0 0
  %326 = vperm.xlu0 %325, %v320
  %v327 = vpop.permute.xlu0 %326
  %330 = vset.pattern.permute.xlu0 0
  %331 = vperm.xlu0 %330, %v321
  %v332 = vpop.permute.xlu0 %331
  %335 = vset.pattern.permute.xlu0 0
  %336 = vperm.xlu0 %335, %v322
  %v337 = vpop.permute.xlu0 %336
  %340 = vset.pattern.permute.xlu0 0
  %341 = vperm.xlu0 %340, %v323
  %v342 = vpop.permute.xlu0 %341
  %vm344 = vcmask 261120
  %v346 = vsel %vm344, %v316, 0
  %v349 = vsel %vm344, %v317, 0
  %v352 = vsel %vm344, %v318, 0
  %v355 = vsel %vm344, %v319, 0
  %357 = vmatprep.subr.mxu0 0.0
  %358 = vmatpush1.msra.mxu0 %v312
  %359 = vmatprep.subr.mxu0 0.0
  %360 = vmatpush1.msra.mxu0 %v313
  %361 = vmatprep.subr.mxu0 0.0
  %362 = vmatpush1.msra.mxu0 %v314
  %363 = vmatprep.subr.mxu0 0.0
  %364 = vmatpush1.msra.mxu0 %v315
  %365 = vmatprep.subr.mxu0 0.0
  %366 = vmatpush1.msra.mxu0 0.0
  %367 = vmatprep.subr.mxu0 0.0
  %368 = vmatpush1.msra.mxu0 0.0
  %369 = vmatprep.subr.mxu0 0.0
  %370 = vmatpush1.msra.mxu0 0.0
  %371 = vmatprep.subr.mxu0 0.0
  %372 = vmatpush1.msra.mxu0 0.0
  %373 = vmatprep.subr.mxu0 0.0
  %374 = vmatpush1.msra.mxu0 0.0
  %375 = vmatprep.subr.mxu0 0.0
  %376 = vmatpush1.msra.mxu0 0.0
  %377 = vmatprep.subr.mxu0 0.0
  %378 = vmatpush1.msra.mxu0 0.0
  %379 = vmatprep.subr.mxu0 0.0
  %380 = vmatpush1.msra.mxu0 0.0
  %381 = vmatprep.subr.mxu0 0.0
  %382 = vmatpush1.msra.mxu0 0.0
  %383 = vmatprep.subr.mxu0 0.0
  %384 = vmatpush1.msra.mxu0 0.0
  %385 = vmatprep.subr.mxu0 0.0
  %386 = vmatpush1.msra.mxu0 0.0
  %387 = vmatprep.subr.mxu0 0.0
  %388 = vmatpush1.msra.mxu0 0.0
  %389 = vmatprep.subr.mxu0 0.0
  %390 = vmatpush1.msra.mxu0 0.0
  %391 = vmatprep.subr.mxu0 0.0
  %392 = vmatpush1.msra.mxu0 0.0
  %393 = vmatprep.subr.mxu0 0.0
  %394 = vmatpush1.msra.mxu0 0.0
  %395 = vmatprep.subr.mxu0 0.0
  %396 = vmatpush1.msra.mxu0 0.0
  %397 = vmatprep.subr.mxu0 0.0
  %398 = vmatpush1.msra.mxu0 0.0
  %399 = vmatprep.subr.mxu0 0.0
  %400 = vmatpush1.msra.mxu0 0.0
  %401 = vmatprep.subr.mxu0 0.0
  %402 = vmatpush1.msra.mxu0 0.0
  %403 = vmatprep.subr.mxu0 0.0
  %404 = vmatpush1.msra.mxu0 0.0
  %405 = vmatprep.subr.mxu0 0.0
  %406 = vmatpush1.msra.mxu0 0.0
  %407 = vmatprep.subr.mxu0 0.0
  %408 = vmatpush1.msra.mxu0 0.0
  %409 = vmatprep.subr.mxu0 0.0
  %410 = vmatpush1.msra.mxu0 0.0
  %411 = vmatprep.subr.mxu0 0.0
  %412 = vmatpush1.msra.mxu0 0.0
  %413 = vmatprep.subr.mxu0 0.0
  %414 = vmatpush1.msra.mxu0 0.0
  %415 = vmatprep.subr.mxu0 0.0
  %416 = vmatpush1.msra.mxu0 0.0
  %417 = vmatprep.subr.mxu0 0.0
  %418 = vmatpush1.msra.mxu0 0.0
  %419 = vmatprep.subr.mxu0 0.0
  %420 = vmatpush1.msra.mxu0 0.0
  %421 = vmatprep.mubr.f32.mxu0 0.0
  %422 = vmatmul.mubr.f32.gmra.mrb[0].mxu0 %v346
  %v423 = vpop.f32.mrb[0].mxu0
  %v424 = vadd.f32 %v327, %v423
  %v425 = vpop.f32.mrb[0].mxu0
  %426 = vmatprep.mubr.f32.mxu0 0.0
  %427 = vmatmul.mubr.f32.gmra.mrb[0].mxu0 %v349
  %v428 = vpop.f32.mrb[0].mxu0
  %v429 = vadd.f32 %v332, %v428
  %v430 = vpop.f32.mrb[0].mxu0
  %431 = vmatprep.mubr.f32.mxu0 0.0
  %432 = vmatmul.mubr.f32.gmra.mrb[0].mxu0 %v352
  %v433 = vpop.f32.mrb[0].mxu0
  %v434 = vadd.f32 %v337, %v433
  %v435 = vpop.f32.mrb[0].mxu0
  %436 = vmatprep.mubr.f32.mxu0 0.0
  %437 = vmatmul.mubr.f32.gmra.mrb[0].mxu0 %v355
  %v438 = vpop.f32.mrb[0].mxu0
  %v439 = vadd.f32 %v342, %v438
  %v440 = vpop.f32.mrb[0].mxu0
  %441 = vdwg.mxu0
  %v442 = vand.u32 2147483647, %v424
  %vm443 = vcmp.le.f32.partialorder %v442, 0.7853982
  %vm444 = vcmp.lt.s32.totalorder %v424, 0
  %v445 = vand.u32 %v424, 2139095040
  %v446 = vshrl.u32 %v445, 23
  %v447 = vsub.s32 %v446, 127
  %v448 = vand.u32 2147483647, %v424
  %v449 = vand.u32 %v448, 8388607
  %v450 = vor.u32 %v449, 8388608
  %v451 = vsub.s32 0, %v450
  %v452 = vadd.s32 %v447, 1
  %vm453 = vcmp.gt.s32.totalorder %v452, 0
  %v454 = vsel %vm453, %v452, 0
  %v455 = vshrl.u32 %v454, 5
  %v456 = vand.u32 %v454, 31
  %v457 = vsub.s32 32, %v456
  %v458 = vshrl.u32 683565275, %v457
  %v459 = vshll.u32 683565275, %v456
  %v460 = vshrl.u32 2475754826, %v457
  %v461 = vor.u32 %v459, %v460
  %v462 = vshll.u32 2475754826, %v456
  %v463 = vshrl.u32 2131351028, %v457
  %v464 = vor.u32 %v462, %v463
  %v465 = vshll.u32 2131351028, %v456
  %v466 = vshrl.u32 2102212464, %v457
  %v467 = vor.u32 %v465, %v466
  %v468 = vshll.u32 2102212464, %v456
  %v469 = vshrl.u32 920167782, %v457
  %v470 = vor.u32 %v468, %v469
  %v471 = vshll.u32 920167782, %v456
  %v472 = vshrl.u32 1326507024, %v457
  %v473 = vor.u32 %v471, %v472
  %vm474 = vcmp.lt.s32.totalorder %v455, 1
  %vm475 = vcmp.lt.s32.totalorder %v455, 2
  %vm476 = vcmp.lt.s32.totalorder %v455, 3
  %vm477 = vcmp.lt.s32.totalorder %v455, 4
  %v478 = vsel %vm474, %v458, %v461
  %v479 = vsel %vm477, %v467, 2102212464
  %v480 = vsel %vm476, %v464, %v479
  %v481 = vsel %vm475, %v478, %v480
  %v482 = vsel %vm474, %v461, %v464
  %v483 = vsel %vm477, %v470, 920167782
  %v484 = vsel %vm476, %v467, %v483
  %v485 = vsel %vm475, %v482, %v484
  %v486 = vsel %vm474, %v464, %v467
  %v487 = vsel %vm477, %v473, 1326507024
  %v488 = vsel %vm476, %v470, %v487
  %v489 = vsel %vm475, %v486, %v488
  %v490 = vshll.u32 %v450, 8
  %v491 = vmul.u32.u64.compose %v490, %v489
  %v492 = vextract.low.u32 %v491
  %v493 = vextract.high.u32 %v491
  %v494 = vmul.u32.u64.compose %v490, %v485
  %v495 = vextract.low.u32 %v494
  %v496 = vextract.high.u32 %v494
  %v497 = vmul.u32 %v490, %v481
  %v498 = vadd.s32 %v493, %v495
  %vm499 = vc.u32 %v493, %v495
  %v500 = vadd.s32 %v496, 1
  %v501 = vsel %vm499, %v500, %v496
  %v502 = vadd.s32 %v497, %v501
  %v503 = vadd.s32 %v502, 536870912
  %v504 = vshrl.u32 %v503, 30
  %v505 = vshll.u32 %v504, 30
  %v506 = vsub.s32 %v502, %v505
  %vm507 = vcmp.lt.s32.totalorder %v506, 0
  %v508 = vsub.s32 0, %v506
  %v509 = vsel %vm507, %v508, %v506
  %v510 = vclz %v509
  %v511 = vsub.s32 %v510, 2
  %vm512 = vcmp.gt.s32.totalorder 0, %v511
  %v513 = vsel %vm512, 0, %v511
  %v514 = vsub.s32 32, %v513
  %v515 = vshll.u32 %v506, %v513
  %v516 = vshrl.u32 %v498, %v514
  %v517 = vor.u32 %v515, %v516
  %v518 = vsub.s32 4294967266, %v513
  %v519 = vadd.s32 %v518, 127
  %v520 = vshll.u32 %v519, 23
  %v521 = vor.u32 4788187, %v520
  %v522 = vand.u32 2147483647, %v521
  %v524 = vcvt.s32.f32 %v517
  %v525 = vmul.f32 %v524, %v522
  %v526 = vxor.u32 %v525, 2147483648
  %v527 = vsel %vm444, %v526, %v525
  %v528 = vsub.s32 4, %v504
  %v529 = vsel %vm444, %v528, %v504
  %v530 = vsel %vm443, %v424, %v527
  %v531 = vsel %vm443, 0, %v529
  %v532 = vcosq.f32.pop %v530
  %v533 = vsinq.f32.pop %v530
  %vm534 = vweird.f32 %v424
  %v535 = vadd.s32 %v531, 3
  %v536 = vand.u32 %v535, 3
  %vm537 = vcmp.lt.s32.totalorder %v536, 2
  %vm538 = vcmp.eq.s32.totalorder %v536, 0
  %v539 = vxor.u32 %v533, 2147483648
  %v540 = vsel %vm538, %v532, %v539
  %vm541 = vcmp.eq.s32.totalorder %v536, 2
  %v542 = vxor.u32 %v532, 2147483648
  %v543 = vsel %vm541, %v542, %v533
  %v544 = vsel %vm537, %v540, %v543
  %v545 = vsel %vm534, nan, %v544
  %v546 = vand.u32 2147483647, %v429
  %vm547 = vcmp.le.f32.partialorder %v546, 0.7853982
  %vm548 = vcmp.lt.s32.totalorder %v429, 0
  %v549 = vand.u32 %v429, 2139095040
  %v550 = vshrl.u32 %v549, 23
  %v551 = vsub.s32 %v550, 127
  %v552 = vand.u32 2147483647, %v429
  %v553 = vand.u32 %v552, 8388607
  %v554 = vor.u32 %v553, 8388608
  %v555 = vsub.s32 0, %v554
  %v556 = vadd.s32 %v551, 1
  %vm557 = vcmp.gt.s32.totalorder %v556, 0
  %v558 = vsel %vm557, %v556, 0
  %v559 = vshrl.u32 %v558, 5
  %v560 = vand.u32 %v558, 31
  %v561 = vsub.s32 32, %v560
  %v562 = vshrl.u32 683565275, %v561
  %v563 = vshll.u32 683565275, %v560
  %v564 = vshrl.u32 2475754826, %v561
  %v565 = vor.u32 %v563, %v564
  %v566 = vshll.u32 2475754826, %v560
  %v567 = vshrl.u32 2131351028, %v561
  %v568 = vor.u32 %v566, %v567
  %v569 = vshll.u32 2131351028, %v560
  %v570 = vshrl.u32 2102212464, %v561
  %v571 = vor.u32 %v569, %v570
  %v572 = vshll.u32 2102212464, %v560
  %v573 = vshrl.u32 920167782, %v561
  %v574 = vor.u32 %v572, %v573
  %v575 = vshll.u32 920167782, %v560
  %v576 = vshrl.u32 1326507024, %v561
  %v577 = vor.u32 %v575, %v576
  %vm578 = vcmp.lt.s32.totalorder %v559, 1
  %vm579 = vcmp.lt.s32.totalorder %v559, 2
  %vm580 = vcmp.lt.s32.totalorder %v559, 3
  %vm581 = vcmp.lt.s32.totalorder %v559, 4
  %v582 = vsel %vm578, %v562, %v565
  %v583 = vsel %vm581, %v571, 2102212464
  %v584 = vsel %vm580, %v568, %v583
  %v585 = vsel %vm579, %v582, %v584
  %v586 = vsel %vm578, %v565, %v568
  %v587 = vsel %vm581, %v574, 920167782
  %v588 = vsel %vm580, %v571, %v587
  %v589 = vsel %vm579, %v586, %v588
  %v590 = vsel %vm578, %v568, %v571
  %v591 = vsel %vm581, %v577, 1326507024
  %v592 = vsel %vm580, %v574, %v591
  %v593 = vsel %vm579, %v590, %v592
  %v594 = vshll.u32 %v554, 8
  %v595 = vmul.u32.u64.compose %v594, %v593
  %v596 = vextract.low.u32 %v595
  %v597 = vextract.high.u32 %v595
  %v598 = vmul.u32.u64.compose %v594, %v589
  %v599 = vextract.low.u32 %v598
  %v600 = vextract.high.u32 %v598
  %v601 = vmul.u32 %v594, %v585
  %v602 = vadd.s32 %v597, %v599
  %vm603 = vc.u32 %v597, %v599
  %v604 = vadd.s32 %v600, 1
  %v605 = vsel %vm603, %v604, %v600
  %v606 = vadd.s32 %v601, %v605
  %v607 = vadd.s32 %v606, 536870912
  %v608 = vshrl.u32 %v607, 30
  %v609 = vshll.u32 %v608, 30
  %v610 = vsub.s32 %v606, %v609
  %vm611 = vcmp.lt.s32.totalorder %v610, 0
  %v612 = vsub.s32 0, %v610
  %v613 = vsel %vm611, %v612, %v610
  %v614 = vclz %v613
  %v615 = vsub.s32 %v614, 2
  %vm616 = vcmp.gt.s32.totalorder 0, %v615
  %v617 = vsel %vm616, 0, %v615
  %v618 = vsub.s32 32, %v617
  %v619 = vshll.u32 %v610, %v617
  %v620 = vshrl.u32 %v602, %v618
  %v621 = vor.u32 %v619, %v620
  %v622 = vsub.s32 4294967266, %v617
  %v623 = vadd.s32 %v622, 127
  %v624 = vshll.u32 %v623, 23
  %v625 = vor.u32 4788187, %v624
  %v626 = vand.u32 2147483647, %v625
  %v628 = vcvt.s32.f32 %v621
  %v629 = vmul.f32 %v628, %v626
  %v630 = vxor.u32 %v629, 2147483648
  %v631 = vsel %vm548, %v630, %v629
  %v632 = vsub.s32 4, %v608
  %v633 = vsel %vm548, %v632, %v608
  %v634 = vsel %vm547, %v429, %v631
  %v635 = vsel %vm547, 0, %v633
  %v636 = vcosq.f32.pop %v634
  %v637 = vsinq.f32.pop %v634
  %vm638 = vweird.f32 %v429
  %v639 = vadd.s32 %v635, 3
  %v640 = vand.u32 %v639, 3
  %vm641 = vcmp.lt.s32.totalorder %v640, 2
  %vm642 = vcmp.eq.s32.totalorder %v640, 0
  %v643 = vxor.u32 %v637, 2147483648
  %v644 = vsel %vm642, %v636, %v643
  %vm645 = vcmp.eq.s32.totalorder %v640, 2
  %v646 = vxor.u32 %v636, 2147483648
  %v647 = vsel %vm645, %v646, %v637
  %v648 = vsel %vm641, %v644, %v647
  %v649 = vsel %vm638, nan, %v648
  %v650 = vand.u32 2147483647, %v434
  %vm651 = vcmp.le.f32.partialorder %v650, 0.7853982
  %vm652 = vcmp.lt.s32.totalorder %v434, 0
  %v653 = vand.u32 %v434, 2139095040
  %v654 = vshrl.u32 %v653, 23
  %v655 = vsub.s32 %v654, 127
  %v656 = vand.u32 2147483647, %v434
  %v657 = vand.u32 %v656, 8388607
  %v658 = vor.u32 %v657, 8388608
  %v659 = vsub.s32 0, %v658
  %v660 = vadd.s32 %v655, 1
  %vm661 = vcmp.gt.s32.totalorder %v660, 0
  %v662 = vsel %vm661, %v660, 0
  %v663 = vshrl.u32 %v662, 5
  %v664 = vand.u32 %v662, 31
  %v665 = vsub.s32 32, %v664
  %v666 = vshrl.u32 683565275, %v665
  %v667 = vshll.u32 683565275, %v664
  %v668 = vshrl.u32 2475754826, %v665
  %v669 = vor.u32 %v667, %v668
  %v670 = vshll.u32 2475754826, %v664
  %v671 = vshrl.u32 2131351028, %v665
  %v672 = vor.u32 %v670, %v671
  %v673 = vshll.u32 2131351028, %v664
  %v674 = vshrl.u32 2102212464, %v665
  %v675 = vor.u32 %v673, %v674
  %v676 = vshll.u32 2102212464, %v664
  %v677 = vshrl.u32 920167782, %v665
  %v678 = vor.u32 %v676, %v677
  %v679 = vshll.u32 920167782, %v664
  %v680 = vshrl.u32 1326507024, %v665
  %v681 = vor.u32 %v679, %v680
  %vm682 = vcmp.lt.s32.totalorder %v663, 1
  %vm683 = vcmp.lt.s32.totalorder %v663, 2
  %vm684 = vcmp.lt.s32.totalorder %v663, 3
  %vm685 = vcmp.lt.s32.totalorder %v663, 4
  %v686 = vsel %vm682, %v666, %v669
  %v687 = vsel %vm685, %v675, 2102212464
  %v688 = vsel %vm684, %v672, %v687
  %v689 = vsel %vm683, %v686, %v688
  %v690 = vsel %vm682, %v669, %v672
  %v691 = vsel %vm685, %v678, 920167782
  %v692 = vsel %vm684, %v675, %v691
  %v693 = vsel %vm683, %v690, %v692
  %v694 = vsel %vm682, %v672, %v675
  %v695 = vsel %vm685, %v681, 1326507024
  %v696 = vsel %vm684, %v678, %v695
  %v697 = vsel %vm683, %v694, %v696
  %v698 = vshll.u32 %v658, 8
  %v699 = vmul.u32.u64.compose %v698, %v697
  %v700 = vextract.low.u32 %v699
  %v701 = vextract.high.u32 %v699
  %v702 = vmul.u32.u64.compose %v698, %v693
  %v703 = vextract.low.u32 %v702
  %v704 = vextract.high.u32 %v702
  %v705 = vmul.u32 %v698, %v689
  %v706 = vadd.s32 %v701, %v703
  %vm707 = vc.u32 %v701, %v703
  %v708 = vadd.s32 %v704, 1
  %v709 = vsel %vm707, %v708, %v704
  %v710 = vadd.s32 %v705, %v709
  %v711 = vadd.s32 %v710, 536870912
  %v712 = vshrl.u32 %v711, 30
  %v713 = vshll.u32 %v712, 30
  %v714 = vsub.s32 %v710, %v713
  %vm715 = vcmp.lt.s32.totalorder %v714, 0
  %v716 = vsub.s32 0, %v714
  %v717 = vsel %vm715, %v716, %v714
  %v718 = vclz %v717
  %v719 = vsub.s32 %v718, 2
  %vm720 = vcmp.gt.s32.totalorder 0, %v719
  %v721 = vsel %vm720, 0, %v719
  %v722 = vsub.s32 32, %v721
  %v723 = vshll.u32 %v714, %v721
  %v724 = vshrl.u32 %v706, %v722
  %v725 = vor.u32 %v723, %v724
  %v726 = vsub.s32 4294967266, %v721
  %v727 = vadd.s32 %v726, 127
  %v728 = vshll.u32 %v727, 23
  %v729 = vor.u32 4788187, %v728
  %v730 = vand.u32 2147483647, %v729
  %v732 = vcvt.s32.f32 %v725
  %v733 = vmul.f32 %v732, %v730
  %v734 = vxor.u32 %v733, 2147483648
  %v735 = vsel %vm652, %v734, %v733
  %v736 = vsub.s32 4, %v712
  %v737 = vsel %vm652, %v736, %v712
  %v738 = vsel %vm651, %v434, %v735
  %v739 = vsel %vm651, 0, %v737
  %v740 = vcosq.f32.pop %v738
  %v741 = vsinq.f32.pop %v738
  %vm742 = vweird.f32 %v434
  %v743 = vadd.s32 %v739, 3
  %v744 = vand.u32 %v743, 3
  %vm745 = vcmp.lt.s32.totalorder %v744, 2
  %vm746 = vcmp.eq.s32.totalorder %v744, 0
  %v747 = vxor.u32 %v741, 2147483648
  %v748 = vsel %vm746, %v740, %v747
  %vm749 = vcmp.eq.s32.totalorder %v744, 2
  %v750 = vxor.u32 %v740, 2147483648
  %v751 = vsel %vm749, %v750, %v741
  %v752 = vsel %vm745, %v748, %v751
  %v753 = vsel %vm742, nan, %v752
  %v754 = vand.u32 2147483647, %v439
  %vm755 = vcmp.le.f32.partialorder %v754, 0.7853982
  %vm756 = vcmp.lt.s32.totalorder %v439, 0
  %v757 = vand.u32 %v439, 2139095040
  %v758 = vshrl.u32 %v757, 23
  %v759 = vsub.s32 %v758, 127
  %v760 = vand.u32 2147483647, %v439
  %v761 = vand.u32 %v760, 8388607
  %v762 = vor.u32 %v761, 8388608
  %v763 = vsub.s32 0, %v762
  %v764 = vadd.s32 %v759, 1
  %vm765 = vcmp.gt.s32.totalorder %v764, 0
  %v766 = vsel %vm765, %v764, 0
  %v767 = vshrl.u32 %v766, 5
  %v768 = vand.u32 %v766, 31
  %v769 = vsub.s32 32, %v768
  %v770 = vshrl.u32 683565275, %v769
  %v771 = vshll.u32 683565275, %v768
  %v772 = vshrl.u32 2475754826, %v769
  %v773 = vor.u32 %v771, %v772
  %v774 = vshll.u32 2475754826, %v768
  %v775 = vshrl.u32 2131351028, %v769
  %v776 = vor.u32 %v774, %v775
  %v777 = vshll.u32 2131351028, %v768
  %v778 = vshrl.u32 2102212464, %v769
  %v779 = vor.u32 %v777, %v778
  %v780 = vshll.u32 2102212464, %v768
  %v781 = vshrl.u32 920167782, %v769
  %v782 = vor.u32 %v780, %v781
  %v783 = vshll.u32 920167782, %v768
  %v784 = vshrl.u32 1326507024, %v769
  %v785 = vor.u32 %v783, %v784
  %vm786 = vcmp.lt.s32.totalorder %v767, 1
  %vm787 = vcmp.lt.s32.totalorder %v767, 2
  %vm788 = vcmp.lt.s32.totalorder %v767, 3
  %vm789 = vcmp.lt.s32.totalorder %v767, 4
  %v790 = vsel %vm786, %v770, %v773
  %v791 = vsel %vm789, %v779, 2102212464
  %v792 = vsel %vm788, %v776, %v791
  %v793 = vsel %vm787, %v790, %v792
  %v794 = vsel %vm786, %v773, %v776
  %v795 = vsel %vm789, %v782, 920167782
  %v796 = vsel %vm788, %v779, %v795
  %v797 = vsel %vm787, %v794, %v796
  %v798 = vsel %vm786, %v776, %v779
  %v799 = vsel %vm789, %v785, 1326507024
  %v800 = vsel %vm788, %v782, %v799
  %v801 = vsel %vm787, %v798, %v800
  %v802 = vshll.u32 %v762, 8
  %v803 = vmul.u32.u64.compose %v802, %v801
  %v804 = vextract.low.u32 %v803
  %v805 = vextract.high.u32 %v803
  %v806 = vmul.u32.u64.compose %v802, %v797
  %v807 = vextract.low.u32 %v806
  %v808 = vextract.high.u32 %v806
  %v809 = vmul.u32 %v802, %v793
  %v810 = vadd.s32 %v805, %v807
  %vm811 = vc.u32 %v805, %v807
  %v812 = vadd.s32 %v808, 1
  %v813 = vsel %vm811, %v812, %v808
  %v814 = vadd.s32 %v809, %v813
  %v815 = vadd.s32 %v814, 536870912
  %v816 = vshrl.u32 %v815, 30
  %v817 = vshll.u32 %v816, 30
  %v818 = vsub.s32 %v814, %v817
  %vm819 = vcmp.lt.s32.totalorder %v818, 0
  %v820 = vsub.s32 0, %v818
  %v821 = vsel %vm819, %v820, %v818
  %v822 = vclz %v821
  %v823 = vsub.s32 %v822, 2
  %vm824 = vcmp.gt.s32.totalorder 0, %v823
  %v825 = vsel %vm824, 0, %v823
  %v826 = vsub.s32 32, %v825
  %v827 = vshll.u32 %v818, %v825
  %v828 = vshrl.u32 %v810, %v826
  %v829 = vor.u32 %v827, %v828
  %v830 = vsub.s32 4294967266, %v825
  %v831 = vadd.s32 %v830, 127
  %v832 = vshll.u32 %v831, 23
  %v833 = vor.u32 4788187, %v832
  %v834 = vand.u32 2147483647, %v833
  %v836 = vcvt.s32.f32 %v829
  %v837 = vmul.f32 %v836, %v834
  %v838 = vxor.u32 %v837, 2147483648
  %v839 = vsel %vm756, %v838, %v837
  %v840 = vsub.s32 4, %v816
  %v841 = vsel %vm756, %v840, %v816
  %v842 = vsel %vm755, %v439, %v839
  %v843 = vsel %vm755, 0, %v841
  %v844 = vcosq.f32.pop %v842
  %v845 = vsinq.f32.pop %v842
  %vm846 = vweird.f32 %v439
  %v847 = vadd.s32 %v843, 3
  %v848 = vand.u32 %v847, 3
  %vm849 = vcmp.lt.s32.totalorder %v848, 2
  %vm850 = vcmp.eq.s32.totalorder %v848, 0
  %v851 = vxor.u32 %v845, 2147483648
  %v852 = vsel %vm850, %v844, %v851
  %vm853 = vcmp.eq.s32.totalorder %v848, 2
  %v854 = vxor.u32 %v844, 2147483648
  %v855 = vsel %vm853, %v854, %v845
  %v856 = vsel %vm849, %v852, %v855
  %v857 = vsel %vm846, nan, %v856
  %v858 = vld [vmem:[%s7] sm:$0xff]
  %v859 = vld [vmem:[%s7 + $0x8] sm:$0xff]
  %v860 = vld [vmem:[%s7 + $0x10] sm:$0xff]
  %v861 = vld [vmem:[%s7 + $0x18] sm:$0xff]
  %v862 = vld [vmem:[%s8] sm:$0xff]
  %v863 = vld [vmem:[%s8 + $0x8] sm:$0xff]
  %v864 = vld [vmem:[%s8 + $0x10] sm:$0xff]
  %v865 = vld [vmem:[%s8 + $0x18] sm:$0xff]
  %867 = vset.pattern.permute.xlu0 0
  %868 = vperm.xlu0 %867, %v862
  %v869 = vpop.permute.xlu0 %868
  %872 = vset.pattern.permute.xlu0 0
  %873 = vperm.xlu0 %872, %v863
  %v874 = vpop.permute.xlu0 %873
  %877 = vset.pattern.permute.xlu0 0
  %878 = vperm.xlu0 %877, %v864
  %v879 = vpop.permute.xlu0 %878
  %882 = vset.pattern.permute.xlu0 0
  %883 = vperm.xlu0 %882, %v865
  %v884 = vpop.permute.xlu0 %883
  %v887 = vsel %vm344, %v858, 0
  %v890 = vsel %vm344, %v859, 0
  %v893 = vsel %vm344, %v860, 0
  %v896 = vsel %vm344, %v861, 0
  %898 = vmatprep.subr.mxu0 0.0
  %899 = vmatpush1.msra.mxu0 %v545
  %900 = vmatprep.subr.mxu0 0.0
  %901 = vmatpush1.msra.mxu0 %v649
  %902 = vmatprep.subr.mxu0 0.0
  %903 = vmatpush1.msra.mxu0 %v753
  %904 = vmatprep.subr.mxu0 0.0
  %905 = vmatpush1.msra.mxu0 %v857
  %906 = vmatprep.subr.mxu0 0.0
  %907 = vmatpush1.msra.mxu0 0.0
  %908 = vmatprep.subr.mxu0 0.0
  %909 = vmatpush1.msra.mxu0 0.0
  %910 = vmatprep.subr.mxu0 0.0
  %911 = vmatpush1.msra.mxu0 0.0
  %912 = vmatprep.subr.mxu0 0.0
  %913 = vmatpush1.msra.mxu0 0.0
  %914 = vmatprep.subr.mxu0 0.0
  %915 = vmatpush1.msra.mxu0 0.0
  %916 = vmatprep.subr.mxu0 0.0
  %917 = vmatpush1.msra.mxu0 0.0
  %918 = vmatprep.subr.mxu0 0.0
  %919 = vmatpush1.msra.mxu0 0.0
  %920 = vmatprep.subr.mxu0 0.0
  %921 = vmatpush1.msra.mxu0 0.0
  %922 = vmatprep.subr.mxu0 0.0
  %923 = vmatpush1.msra.mxu0 0.0
  %924 = vmatprep.subr.mxu0 0.0
  %925 = vmatpush1.msra.mxu0 0.0
  %926 = vmatprep.subr.mxu0 0.0
  %927 = vmatpush1.msra.mxu0 0.0
  %928 = vmatprep.subr.mxu0 0.0
  %929 = vmatpush1.msra.mxu0 0.0
  %930 = vmatprep.subr.mxu0 0.0
  %931 = vmatpush1.msra.mxu0 0.0
  %932 = vmatprep.subr.mxu0 0.0
  %933 = vmatpush1.msra.mxu0 0.0
  %934 = vmatprep.subr.mxu0 0.0
  %935 = vmatpush1.msra.mxu0 0.0
  %936 = vmatprep.subr.mxu0 0.0
  %937 = vmatpush1.msra.mxu0 0.0
  %938 = vmatprep.subr.mxu0 0.0
  %939 = vmatpush1.msra.mxu0 0.0
  %940 = vmatprep.subr.mxu0 0.0
  %941 = vmatpush1.msra.mxu0 0.0
  %942 = vmatprep.subr.mxu0 0.0
  %943 = vmatpush1.msra.mxu0 0.0
  %944 = vmatprep.subr.mxu0 0.0
  %945 = vmatpush1.msra.mxu0 0.0
  %946 = vmatprep.subr.mxu0 0.0
  %947 = vmatpush1.msra.mxu0 0.0
  %948 = vmatprep.subr.mxu0 0.0
  %949 = vmatpush1.msra.mxu0 0.0
  %950 = vmatprep.subr.mxu0 0.0
  %951 = vmatpush1.msra.mxu0 0.0
  %952 = vmatprep.subr.mxu0 0.0
  %953 = vmatpush1.msra.mxu0 0.0
  %954 = vmatprep.subr.mxu0 0.0
  %955 = vmatpush1.msra.mxu0 0.0
  %956 = vmatprep.subr.mxu0 0.0
  %957 = vmatpush1.msra.mxu0 0.0
  %958 = vmatprep.subr.mxu0 0.0
  %959 = vmatpush1.msra.mxu0 0.0
  %960 = vmatprep.subr.mxu0 0.0
  %961 = vmatpush1.msra.mxu0 0.0
  %962 = vmatprep.mubr.f32.mxu0 0.0
  %963 = vmatmul.mubr.f32.gmra.mrb[0].mxu0 %v887
  %v964 = vpop.f32.mrb[0].mxu0
  %v965 = vadd.f32 %v869, %v964
  %v966 = vpop.f32.mrb[0].mxu0
  %967 = vmatprep.mubr.f32.mxu0 0.0
  %968 = vmatmul.mubr.f32.gmra.mrb[0].mxu0 %v890
  %v969 = vpop.f32.mrb[0].mxu0
  %v970 = vadd.f32 %v874, %v969
  %v971 = vpop.f32.mrb[0].mxu0
  %972 = vmatprep.mubr.f32.mxu0 0.0
  %973 = vmatmul.mubr.f32.gmra.mrb[0].mxu0 %v893
  %v974 = vpop.f32.mrb[0].mxu0
  %v975 = vadd.f32 %v879, %v974
  %v976 = vpop.f32.mrb[0].mxu0
  %977 = vmatprep.mubr.f32.mxu0 0.0
  %978 = vmatmul.mubr.f32.gmra.mrb[0].mxu0 %v896
  %v979 = vpop.f32.mrb[0].mxu0
  %v980 = vadd.f32 %v884, %v979
  %v981 = vpop.f32.mrb[0].mxu0
  %982 = vdwg.mxu0
  %v983 = vand.u32 2147483647, %v965
  %vm984 = vcmp.le.f32.partialorder %v983, 0.7853982
  %vm985 = vcmp.lt.s32.totalorder %v965, 0
  %v986 = vand.u32 %v965, 2139095040
  %v987 = vshrl.u32 %v986, 23
  %v988 = vsub.s32 %v987, 127
  %v989 = vand.u32 2147483647, %v965
  %v990 = vand.u32 %v989, 8388607
  %v991 = vor.u32 %v990, 8388608
  %v992 = vsub.s32 0, %v991
  %v993 = vadd.s32 %v988, 1
  %vm994 = vcmp.gt.s32.totalorder %v993, 0
  %v995 = vsel %vm994, %v993, 0
  %v996 = vshrl.u32 %v995, 5
  %v997 = vand.u32 %v995, 31
  %v998 = vsub.s32 32, %v997
  %v999 = vshrl.u32 683565275, %v998
  %v1000 = vshll.u32 683565275, %v997
  %v1001 = vshrl.u32 2475754826, %v998
  %v1002 = vor.u32 %v1000, %v1001
  %v1003 = vshll.u32 2475754826, %v997
  %v1004 = vshrl.u32 2131351028, %v998
  %v1005 = vor.u32 %v1003, %v1004
  %v1006 = vshll.u32 2131351028, %v997
  %v1007 = vshrl.u32 2102212464, %v998
  %v1008 = vor.u32 %v1006, %v1007
  %v1009 = vshll.u32 2102212464, %v997
  %v1010 = vshrl.u32 920167782, %v998
  %v1011 = vor.u32 %v1009, %v1010
  %v1012 = vshll.u32 920167782, %v997
  %v1013 = vshrl.u32 1326507024, %v998
  %v1014 = vor.u32 %v1012, %v1013
  %vm1015 = vcmp.lt.s32.totalorder %v996, 1
  %vm1016 = vcmp.lt.s32.totalorder %v996, 2
  %vm1017 = vcmp.lt.s32.totalorder %v996, 3
  %vm1018 = vcmp.lt.s32.totalorder %v996, 4
  %v1019 = vsel %vm1015, %v999, %v1002
  %v1020 = vsel %vm1018, %v1008, 2102212464
  %v1021 = vsel %vm1017, %v1005, %v1020
  %v1022 = vsel %vm1016, %v1019, %v1021
  %v1023 = vsel %vm1015, %v1002, %v1005
  %v1024 = vsel %vm1018, %v1011, 920167782
  %v1025 = vsel %vm1017, %v1008, %v1024
  %v1026 = vsel %vm1016, %v1023, %v1025
  %v1027 = vsel %vm1015, %v1005, %v1008
  %v1028 = vsel %vm1018, %v1014, 1326507024
  %v1029 = vsel %vm1017, %v1011, %v1028
  %v1030 = vsel %vm1016, %v1027, %v1029
  %v1031 = vshll.u32 %v991, 8
  %v1032 = vmul.u32.u64.compose %v1031, %v1030
  %v1033 = vextract.low.u32 %v1032
  %v1034 = vextract.high.u32 %v1032
  %v1035 = vmul.u32.u64.compose %v1031, %v1026
  %v1036 = vextract.low.u32 %v1035
  %v1037 = vextract.high.u32 %v1035
  %v1038 = vmul.u32 %v1031, %v1022
  %v1039 = vadd.s32 %v1034, %v1036
  %vm1040 = vc.u32 %v1034, %v1036
  %v1041 = vadd.s32 %v1037, 1
  %v1042 = vsel %vm1040, %v1041, %v1037
  %v1043 = vadd.s32 %v1038, %v1042
  %v1044 = vadd.s32 %v1043, 536870912
  %v1045 = vshrl.u32 %v1044, 30
  %v1046 = vshll.u32 %v1045, 30
  %v1047 = vsub.s32 %v1043, %v1046
  %vm1048 = vcmp.lt.s32.totalorder %v1047, 0
  %v1049 = vsub.s32 0, %v1047
  %v1050 = vsel %vm1048, %v1049, %v1047
  %v1051 = vclz %v1050
  %v1052 = vsub.s32 %v1051, 2
  %vm1053 = vcmp.gt.s32.totalorder 0, %v1052
  %v1054 = vsel %vm1053, 0, %v1052
  %v1055 = vsub.s32 32, %v1054
  %v1056 = vshll.u32 %v1047, %v1054
  %v1057 = vshrl.u32 %v1039, %v1055
  %v1058 = vor.u32 %v1056, %v1057
  %v1059 = vsub.s32 4294967266, %v1054
  %v1060 = vadd.s32 %v1059, 127
  %v1061 = vshll.u32 %v1060, 23
  %v1062 = vor.u32 4788187, %v1061
  %v1063 = vand.u32 2147483647, %v1062
  %v1065 = vcvt.s32.f32 %v1058
  %v1066 = vmul.f32 %v1065, %v1063
  %v1067 = vxor.u32 %v1066, 2147483648
  %v1068 = vsel %vm985, %v1067, %v1066
  %v1069 = vsub.s32 4, %v1045
  %v1070 = vsel %vm985, %v1069, %v1045
  %v1071 = vsel %vm984, %v965, %v1068
  %v1072 = vsel %vm984, 0, %v1070
  %v1073 = vcosq.f32.pop %v1071
  %v1074 = vsinq.f32.pop %v1071
  %vm1075 = vweird.f32 %v965
  %v1076 = vadd.s32 %v1072, 3
  %v1077 = vand.u32 %v1076, 3
  %vm1078 = vcmp.lt.s32.totalorder %v1077, 2
  %vm1079 = vcmp.eq.s32.totalorder %v1077, 0
  %v1080 = vxor.u32 %v1074, 2147483648
  %v1081 = vsel %vm1079, %v1073, %v1080
  %vm1082 = vcmp.eq.s32.totalorder %v1077, 2
  %v1083 = vxor.u32 %v1073, 2147483648
  %v1084 = vsel %vm1082, %v1083, %v1074
  %v1085 = vsel %vm1078, %v1081, %v1084
  %v1086 = vsel %vm1075, nan, %v1085
  %v1087 = vand.u32 2147483647, %v970
  %vm1088 = vcmp.le.f32.partialorder %v1087, 0.7853982
  %vm1089 = vcmp.lt.s32.totalorder %v970, 0
  %v1090 = vand.u32 %v970, 2139095040
  %v1091 = vshrl.u32 %v1090, 23
  %v1092 = vsub.s32 %v1091, 127
  %v1093 = vand.u32 2147483647, %v970
  %v1094 = vand.u32 %v1093, 8388607
  %v1095 = vor.u32 %v1094, 8388608
  %v1096 = vsub.s32 0, %v1095
  %v1097 = vadd.s32 %v1092, 1
  %vm1098 = vcmp.gt.s32.totalorder %v1097, 0
  %v1099 = vsel %vm1098, %v1097, 0
  %v1100 = vshrl.u32 %v1099, 5
  %v1101 = vand.u32 %v1099, 31
  %v1102 = vsub.s32 32, %v1101
  %v1103 = vshrl.u32 683565275, %v1102
  %v1104 = vshll.u32 683565275, %v1101
  %v1105 = vshrl.u32 2475754826, %v1102
  %v1106 = vor.u32 %v1104, %v1105
  %v1107 = vshll.u32 2475754826, %v1101
  %v1108 = vshrl.u32 2131351028, %v1102
  %v1109 = vor.u32 %v1107, %v1108
  %v1110 = vshll.u32 2131351028, %v1101
  %v1111 = vshrl.u32 2102212464, %v1102
  %v1112 = vor.u32 %v1110, %v1111
  %v1113 = vshll.u32 2102212464, %v1101
  %v1114 = vshrl.u32 920167782, %v1102
  %v1115 = vor.u32 %v1113, %v1114
  %v1116 = vshll.u32 920167782, %v1101
  %v1117 = vshrl.u32 1326507024, %v1102
  %v1118 = vor.u32 %v1116, %v1117
  %vm1119 = vcmp.lt.s32.totalorder %v1100, 1
  %vm1120 = vcmp.lt.s32.totalorder %v1100, 2
  %vm1121 = vcmp.lt.s32.totalorder %v1100, 3
  %vm1122 = vcmp.lt.s32.totalorder %v1100, 4
  %v1123 = vsel %vm1119, %v1103, %v1106
  %v1124 = vsel %vm1122, %v1112, 2102212464
  %v1125 = vsel %vm1121, %v1109, %v1124
  %v1126 = vsel %vm1120, %v1123, %v1125
  %v1127 = vsel %vm1119, %v1106, %v1109
  %v1128 = vsel %vm1122, %v1115, 920167782
  %v1129 = vsel %vm1121, %v1112, %v1128
  %v1130 = vsel %vm1120, %v1127, %v1129
  %v1131 = vsel %vm1119, %v1109, %v1112
  %v1132 = vsel %vm1122, %v1118, 1326507024
  %v1133 = vsel %vm1121, %v1115, %v1132
  %v1134 = vsel %vm1120, %v1131, %v1133
  %v1135 = vshll.u32 %v1095, 8
  %v1136 = vmul.u32.u64.compose %v1135, %v1134
  %v1137 = vextract.low.u32 %v1136
  %v1138 = vextract.high.u32 %v1136
  %v1139 = vmul.u32.u64.compose %v1135, %v1130
  %v1140 = vextract.low.u32 %v1139
  %v1141 = vextract.high.u32 %v1139
  %v1142 = vmul.u32 %v1135, %v1126
  %v1143 = vadd.s32 %v1138, %v1140
  %vm1144 = vc.u32 %v1138, %v1140
  %v1145 = vadd.s32 %v1141, 1
  %v1146 = vsel %vm1144, %v1145, %v1141
  %v1147 = vadd.s32 %v1142, %v1146
  %v1148 = vadd.s32 %v1147, 536870912
  %v1149 = vshrl.u32 %v1148, 30
  %v1150 = vshll.u32 %v1149, 30
  %v1151 = vsub.s32 %v1147, %v1150
  %vm1152 = vcmp.lt.s32.totalorder %v1151, 0
  %v1153 = vsub.s32 0, %v1151
  %v1154 = vsel %vm1152, %v1153, %v1151
  %v1155 = vclz %v1154
  %v1156 = vsub.s32 %v1155, 2
  %vm1157 = vcmp.gt.s32.totalorder 0, %v1156
  %v1158 = vsel %vm1157, 0, %v1156
  %v1159 = vsub.s32 32, %v1158
  %v1160 = vshll.u32 %v1151, %v1158
  %v1161 = vshrl.u32 %v1143, %v1159
  %v1162 = vor.u32 %v1160, %v1161
  %v1163 = vsub.s32 4294967266, %v1158
  %v1164 = vadd.s32 %v1163, 127
  %v1165 = vshll.u32 %v1164, 23
  %v1166 = vor.u32 4788187, %v1165
  %v1167 = vand.u32 2147483647, %v1166
  %v1169 = vcvt.s32.f32 %v1162
  %v1170 = vmul.f32 %v1169, %v1167
  %v1171 = vxor.u32 %v1170, 2147483648
  %v1172 = vsel %vm1089, %v1171, %v1170
  %v1173 = vsub.s32 4, %v1149
  %v1174 = vsel %vm1089, %v1173, %v1149
  %v1175 = vsel %vm1088, %v970, %v1172
  %v1176 = vsel %vm1088, 0, %v1174
  %v1177 = vcosq.f32.pop %v1175
  %v1178 = vsinq.f32.pop %v1175
  %vm1179 = vweird.f32 %v970
  %v1180 = vadd.s32 %v1176, 3
  %v1181 = vand.u32 %v1180, 3
  %vm1182 = vcmp.lt.s32.totalorder %v1181, 2
  %vm1183 = vcmp.eq.s32.totalorder %v1181, 0
  %v1184 = vxor.u32 %v1178, 2147483648
  %v1185 = vsel %vm1183, %v1177, %v1184
  %vm1186 = vcmp.eq.s32.totalorder %v1181, 2
  %v1187 = vxor.u32 %v1177, 2147483648
  %v1188 = vsel %vm1186, %v1187, %v1178
  %v1189 = vsel %vm1182, %v1185, %v1188
  %v1190 = vsel %vm1179, nan, %v1189
  %v1191 = vand.u32 2147483647, %v975
  %vm1192 = vcmp.le.f32.partialorder %v1191, 0.7853982
  %vm1193 = vcmp.lt.s32.totalorder %v975, 0
  %v1194 = vand.u32 %v975, 2139095040
  %v1195 = vshrl.u32 %v1194, 23
  %v1196 = vsub.s32 %v1195, 127
  %v1197 = vand.u32 2147483647, %v975
  %v1198 = vand.u32 %v1197, 8388607
  %v1199 = vor.u32 %v1198, 8388608
  %v1200 = vsub.s32 0, %v1199
  %v1201 = vadd.s32 %v1196, 1
  %vm1202 = vcmp.gt.s32.totalorder %v1201, 0
  %v1203 = vsel %vm1202, %v1201, 0
  %v1204 = vshrl.u32 %v1203, 5
  %v1205 = vand.u32 %v1203, 31
  %v1206 = vsub.s32 32, %v1205
  %v1207 = vshrl.u32 683565275, %v1206
  %v1208 = vshll.u32 683565275, %v1205
  %v1209 = vshrl.u32 2475754826, %v1206
  %v1210 = vor.u32 %v1208, %v1209
  %v1211 = vshll.u32 2475754826, %v1205
  %v1212 = vshrl.u32 2131351028, %v1206
  %v1213 = vor.u32 %v1211, %v1212
  %v1214 = vshll.u32 2131351028, %v1205
  %v1215 = vshrl.u32 2102212464, %v1206
  %v1216 = vor.u32 %v1214, %v1215
  %v1217 = vshll.u32 2102212464, %v1205
  %v1218 = vshrl.u32 920167782, %v1206
  %v1219 = vor.u32 %v1217, %v1218
  %v1220 = vshll.u32 920167782, %v1205
  %v1221 = vshrl.u32 1326507024, %v1206
  %v1222 = vor.u32 %v1220, %v1221
  %vm1223 = vcmp.lt.s32.totalorder %v1204, 1
  %vm1224 = vcmp.lt.s32.totalorder %v1204, 2
  %vm1225 = vcmp.lt.s32.totalorder %v1204, 3
  %vm1226 = vcmp.lt.s32.totalorder %v1204, 4
  %v1227 = vsel %vm1223, %v1207, %v1210
  %v1228 = vsel %vm1226, %v1216, 2102212464
  %v1229 = vsel %vm1225, %v1213, %v1228
  %v1230 = vsel %vm1224, %v1227, %v1229
  %v1231 = vsel %vm1223, %v1210, %v1213
  %v1232 = vsel %vm1226, %v1219, 920167782
  %v1233 = vsel %vm1225, %v1216, %v1232
  %v1234 = vsel %vm1224, %v1231, %v1233
  %v1235 = vsel %vm1223, %v1213, %v1216
  %v1236 = vsel %vm1226, %v1222, 1326507024
  %v1237 = vsel %vm1225, %v1219, %v1236
  %v1238 = vsel %vm1224, %v1235, %v1237
  %v1239 = vshll.u32 %v1199, 8
  %v1240 = vmul.u32.u64.compose %v1239, %v1238
  %v1241 = vextract.low.u32 %v1240
  %v1242 = vextract.high.u32 %v1240
  %v1243 = vmul.u32.u64.compose %v1239, %v1234
  %v1244 = vextract.low.u32 %v1243
  %v1245 = vextract.high.u32 %v1243
  %v1246 = vmul.u32 %v1239, %v1230
  %v1247 = vadd.s32 %v1242, %v1244
  %vm1248 = vc.u32 %v1242, %v1244
  %v1249 = vadd.s32 %v1245, 1
  %v1250 = vsel %vm1248, %v1249, %v1245
  %v1251 = vadd.s32 %v1246, %v1250
  %v1252 = vadd.s32 %v1251, 536870912
  %v1253 = vshrl.u32 %v1252, 30
  %v1254 = vshll.u32 %v1253, 30
  %v1255 = vsub.s32 %v1251, %v1254
  %vm1256 = vcmp.lt.s32.totalorder %v1255, 0
  %v1257 = vsub.s32 0, %v1255
  %v1258 = vsel %vm1256, %v1257, %v1255
  %v1259 = vclz %v1258
  %v1260 = vsub.s32 %v1259, 2
  %vm1261 = vcmp.gt.s32.totalorder 0, %v1260
  %v1262 = vsel %vm1261, 0, %v1260
  %v1263 = vsub.s32 32, %v1262
  %v1264 = vshll.u32 %v1255, %v1262
  %v1265 = vshrl.u32 %v1247, %v1263
  %v1266 = vor.u32 %v1264, %v1265
  %v1267 = vsub.s32 4294967266, %v1262
  %v1268 = vadd.s32 %v1267, 127
  %v1269 = vshll.u32 %v1268, 23
  %v1270 = vor.u32 4788187, %v1269
  %v1271 = vand.u32 2147483647, %v1270
  %v1273 = vcvt.s32.f32 %v1266
  %v1274 = vmul.f32 %v1273, %v1271
  %v1275 = vxor.u32 %v1274, 2147483648
  %v1276 = vsel %vm1193, %v1275, %v1274
  %v1277 = vsub.s32 4, %v1253
  %v1278 = vsel %vm1193, %v1277, %v1253
  %v1279 = vsel %vm1192, %v975, %v1276
  %v1280 = vsel %vm1192, 0, %v1278
  %v1281 = vcosq.f32.pop %v1279
  %v1282 = vsinq.f32.pop %v1279
  %vm1283 = vweird.f32 %v975
  %v1284 = vadd.s32 %v1280, 3
  %v1285 = vand.u32 %v1284, 3
  %vm1286 = vcmp.lt.s32.totalorder %v1285, 2
  %vm1287 = vcmp.eq.s32.totalorder %v1285, 0
  %v1288 = vxor.u32 %v1282, 2147483648
  %v1289 = vsel %vm1287, %v1281, %v1288
  %vm1290 = vcmp.eq.s32.totalorder %v1285, 2
  %v1291 = vxor.u32 %v1281, 2147483648
  %v1292 = vsel %vm1290, %v1291, %v1282
  %v1293 = vsel %vm1286, %v1289, %v1292
  %v1294 = vsel %vm1283, nan, %v1293
  %v1295 = vand.u32 2147483647, %v980
  %vm1296 = vcmp.le.f32.partialorder %v1295, 0.7853982
  %vm1297 = vcmp.lt.s32.totalorder %v980, 0
  %v1298 = vand.u32 %v980, 2139095040
  %v1299 = vshrl.u32 %v1298, 23
  %v1300 = vsub.s32 %v1299, 127
  %v1301 = vand.u32 2147483647, %v980
  %v1302 = vand.u32 %v1301, 8388607
  %v1303 = vor.u32 %v1302, 8388608
  %v1304 = vsub.s32 0, %v1303
  %v1305 = vadd.s32 %v1300, 1
  %vm1306 = vcmp.gt.s32.totalorder %v1305, 0
  %v1307 = vsel %vm1306, %v1305, 0
  %v1308 = vshrl.u32 %v1307, 5
  %v1309 = vand.u32 %v1307, 31
  %v1310 = vsub.s32 32, %v1309
  %v1311 = vshrl.u32 683565275, %v1310
  %v1312 = vshll.u32 683565275, %v1309
  %v1313 = vshrl.u32 2475754826, %v1310
  %v1314 = vor.u32 %v1312, %v1313
  %v1315 = vshll.u32 2475754826, %v1309
  %v1316 = vshrl.u32 2131351028, %v1310
  %v1317 = vor.u32 %v1315, %v1316
  %v1318 = vshll.u32 2131351028, %v1309
  %v1319 = vshrl.u32 2102212464, %v1310
  %v1320 = vor.u32 %v1318, %v1319
  %v1321 = vshll.u32 2102212464, %v1309
  %v1322 = vshrl.u32 920167782, %v1310
  %v1323 = vor.u32 %v1321, %v1322
  %v1324 = vshll.u32 920167782, %v1309
  %v1325 = vshrl.u32 1326507024, %v1310
  %v1326 = vor.u32 %v1324, %v1325
  %vm1327 = vcmp.lt.s32.totalorder %v1308, 1
  %vm1328 = vcmp.lt.s32.totalorder %v1308, 2
  %vm1329 = vcmp.lt.s32.totalorder %v1308, 3
  %vm1330 = vcmp.lt.s32.totalorder %v1308, 4
  %v1331 = vsel %vm1327, %v1311, %v1314
  %v1332 = vsel %vm1330, %v1320, 2102212464
  %v1333 = vsel %vm1329, %v1317, %v1332
  %v1334 = vsel %vm1328, %v1331, %v1333
  %v1335 = vsel %vm1327, %v1314, %v1317
  %v1336 = vsel %vm1330, %v1323, 920167782
  %v1337 = vsel %vm1329, %v1320, %v1336
  %v1338 = vsel %vm1328, %v1335, %v1337
  %v1339 = vsel %vm1327, %v1317, %v1320
  %v1340 = vsel %vm1330, %v1326, 1326507024
  %v1341 = vsel %vm1329, %v1323, %v1340
  %v1342 = vsel %vm1328, %v1339, %v1341
  %v1343 = vshll.u32 %v1303, 8
  %v1344 = vmul.u32.u64.compose %v1343, %v1342
  %v1345 = vextract.low.u32 %v1344
  %v1346 = vextract.high.u32 %v1344
  %v1347 = vmul.u32.u64.compose %v1343, %v1338
  %v1348 = vextract.low.u32 %v1347
  %v1349 = vextract.high.u32 %v1347
  %v1350 = vmul.u32 %v1343, %v1334
  %v1351 = vadd.s32 %v1346, %v1348
  %vm1352 = vc.u32 %v1346, %v1348
  %v1353 = vadd.s32 %v1349, 1
  %v1354 = vsel %vm1352, %v1353, %v1349
  %v1355 = vadd.s32 %v1350, %v1354
  %v1356 = vadd.s32 %v1355, 536870912
  %v1357 = vshrl.u32 %v1356, 30
  %v1358 = vshll.u32 %v1357, 30
  %v1359 = vsub.s32 %v1355, %v1358
  %vm1360 = vcmp.lt.s32.totalorder %v1359, 0
  %v1361 = vsub.s32 0, %v1359
  %v1362 = vsel %vm1360, %v1361, %v1359
  %v1363 = vclz %v1362
  %v1364 = vsub.s32 %v1363, 2
  %vm1365 = vcmp.gt.s32.totalorder 0, %v1364
  %v1366 = vsel %vm1365, 0, %v1364
  %v1367 = vsub.s32 32, %v1366
  %v1368 = vshll.u32 %v1359, %v1366
  %v1369 = vshrl.u32 %v1351, %v1367
  %v1370 = vor.u32 %v1368, %v1369
  %v1371 = vsub.s32 4294967266, %v1366
  %v1372 = vadd.s32 %v1371, 127
  %v1373 = vshll.u32 %v1372, 23
  %v1374 = vor.u32 4788187, %v1373
  %v1375 = vand.u32 2147483647, %v1374
  %v1377 = vcvt.s32.f32 %v1370
  %v1378 = vmul.f32 %v1377, %v1375
  %v1379 = vxor.u32 %v1378, 2147483648
  %v1380 = vsel %vm1297, %v1379, %v1378
  %v1381 = vsub.s32 4, %v1357
  %v1382 = vsel %vm1297, %v1381, %v1357
  %v1383 = vsel %vm1296, %v980, %v1380
  %v1384 = vsel %vm1296, 0, %v1382
  %v1385 = vcosq.f32.pop %v1383
  %v1386 = vsinq.f32.pop %v1383
  %vm1387 = vweird.f32 %v980
  %v1388 = vadd.s32 %v1384, 3
  %v1389 = vand.u32 %v1388, 3
  %vm1390 = vcmp.lt.s32.totalorder %v1389, 2
  %vm1391 = vcmp.eq.s32.totalorder %v1389, 0
  %v1392 = vxor.u32 %v1386, 2147483648
  %v1393 = vsel %vm1391, %v1385, %v1392
  %vm1394 = vcmp.eq.s32.totalorder %v1389, 2
  %v1395 = vxor.u32 %v1385, 2147483648
  %v1396 = vsel %vm1394, %v1395, %v1386
  %v1397 = vsel %vm1390, %v1393, %v1396
  %v1398 = vsel %vm1387, nan, %v1397
  %v1399 = vadd.f32 %v312, %v1086
  %v1400 = vadd.f32 %v313, %v1190
  %v1401 = vadd.f32 %v314, %v1294
  %v1402 = vadd.f32 %v315, %v1398
  %v1403 = vld [vmem:[%s9] sm:$0xff]
  %v1404 = vld [vmem:[%s9 + $0x8] sm:$0xff]
  %v1405 = vld [vmem:[%s9 + $0x10] sm:$0xff]
  %v1406 = vld [vmem:[%s9 + $0x18] sm:$0xff]
  %v1407 = vld [vmem:[%s10] sm:$0xff]
  %v1408 = vld [vmem:[%s10 + $0x8] sm:$0xff]
  %v1409 = vld [vmem:[%s10 + $0x10] sm:$0xff]
  %v1410 = vld [vmem:[%s10 + $0x18] sm:$0xff]
  %1412 = vset.pattern.permute.xlu0 0
  %1413 = vperm.xlu0 %1412, %v1407
  %v1414 = vpop.permute.xlu0 %1413
  %1417 = vset.pattern.permute.xlu0 0
  %1418 = vperm.xlu0 %1417, %v1408
  %v1419 = vpop.permute.xlu0 %1418
  %1422 = vset.pattern.permute.xlu0 0
  %1423 = vperm.xlu0 %1422, %v1409
  %v1424 = vpop.permute.xlu0 %1423
  %1427 = vset.pattern.permute.xlu0 0
  %1428 = vperm.xlu0 %1427, %v1410
  %v1429 = vpop.permute.xlu0 %1428
  %v1432 = vsel %vm344, %v1403, 0
  %v1435 = vsel %vm344, %v1404, 0
  %v1438 = vsel %vm344, %v1405, 0
  %v1441 = vsel %vm344, %v1406, 0
  %1443 = vmatprep.subr.mxu0 0.0
  %1444 = vmatpush1.msra.mxu0 %v1399
  %1445 = vmatprep.subr.mxu0 0.0
  %1446 = vmatpush1.msra.mxu0 %v1400
  %1447 = vmatprep.subr.mxu0 0.0
  %1448 = vmatpush1.msra.mxu0 %v1401
  %1449 = vmatprep.subr.mxu0 0.0
  %1450 = vmatpush1.msra.mxu0 %v1402
  %1451 = vmatprep.subr.mxu0 0.0
  %1452 = vmatpush1.msra.mxu0 0.0
  %1453 = vmatprep.subr.mxu0 0.0
  %1454 = vmatpush1.msra.mxu0 0.0
  %1455 = vmatprep.subr.mxu0 0.0
  %1456 = vmatpush1.msra.mxu0 0.0
  %1457 = vmatprep.subr.mxu0 0.0
  %1458 = vmatpush1.msra.mxu0 0.0
  %1459 = vmatprep.subr.mxu0 0.0
  %1460 = vmatpush1.msra.mxu0 0.0
  %1461 = vmatprep.subr.mxu0 0.0
  %1462 = vmatpush1.msra.mxu0 0.0
  %1463 = vmatprep.subr.mxu0 0.0
  %1464 = vmatpush1.msra.mxu0 0.0
  %1465 = vmatprep.subr.mxu0 0.0
  %1466 = vmatpush1.msra.mxu0 0.0
  %1467 = vmatprep.subr.mxu0 0.0
  %1468 = vmatpush1.msra.mxu0 0.0
  %1469 = vmatprep.subr.mxu0 0.0
  %1470 = vmatpush1.msra.mxu0 0.0
  %1471 = vmatprep.subr.mxu0 0.0
  %1472 = vmatpush1.msra.mxu0 0.0
  %1473 = vmatprep.subr.mxu0 0.0
  %1474 = vmatpush1.msra.mxu0 0.0
  %1475 = vmatprep.subr.mxu0 0.0
  %1476 = vmatpush1.msra.mxu0 0.0
  %1477 = vmatprep.subr.mxu0 0.0
  %1478 = vmatpush1.msra.mxu0 0.0
  %1479 = vmatprep.subr.mxu0 0.0
  %1480 = vmatpush1.msra.mxu0 0.0
  %1481 = vmatprep.subr.mxu0 0.0
  %1482 = vmatpush1.msra.mxu0 0.0
  %1483 = vmatprep.subr.mxu0 0.0
  %1484 = vmatpush1.msra.mxu0 0.0
  %1485 = vmatprep.subr.mxu0 0.0
  %1486 = vmatpush1.msra.mxu0 0.0
  %1487 = vmatprep.subr.mxu0 0.0
  %1488 = vmatpush1.msra.mxu0 0.0
  %1489 = vmatprep.subr.mxu0 0.0
  %1490 = vmatpush1.msra.mxu0 0.0
  %1491 = vmatprep.subr.mxu0 0.0
  %1492 = vmatpush1.msra.mxu0 0.0
  %1493 = vmatprep.subr.mxu0 0.0
  %1494 = vmatpush1.msra.mxu0 0.0
  %1495 = vmatprep.subr.mxu0 0.0
  %1496 = vmatpush1.msra.mxu0 0.0
  %1497 = vmatprep.subr.mxu0 0.0
  %1498 = vmatpush1.msra.mxu0 0.0
  %1499 = vmatprep.subr.mxu0 0.0
  %1500 = vmatpush1.msra.mxu0 0.0
  %1501 = vmatprep.subr.mxu0 0.0
  %1502 = vmatpush1.msra.mxu0 0.0
  %1503 = vmatprep.subr.mxu0 0.0
  %1504 = vmatpush1.msra.mxu0 0.0
  %1505 = vmatprep.subr.mxu0 0.0
  %1506 = vmatpush1.msra.mxu0 0.0
  %1507 = vmatprep.mubr.f32.mxu0 0.0
  %1508 = vmatmul.mubr.f32.gmra.mrb[0].mxu0 %v1432
  %v1509 = vpop.f32.mrb[0].mxu0
  %v1510 = vadd.f32 %v1414, %v1509
  %v1511 = vpop.f32.mrb[0].mxu0
  %1512 = vmatprep.mubr.f32.mxu0 0.0
  %1513 = vmatmul.mubr.f32.gmra.mrb[0].mxu0 %v1435
  %v1514 = vpop.f32.mrb[0].mxu0
  %v1515 = vadd.f32 %v1419, %v1514
  %v1516 = vpop.f32.mrb[0].mxu0
  %1517 = vmatprep.mubr.f32.mxu0 0.0
  %1518 = vmatmul.mubr.f32.gmra.mrb[0].mxu0 %v1438
  %v1519 = vpop.f32.mrb[0].mxu0
  %v1520 = vadd.f32 %v1424, %v1519
  %v1521 = vpop.f32.mrb[0].mxu0
  %1522 = vmatprep.mubr.f32.mxu0 0.0
  %1523 = vmatmul.mubr.f32.gmra.mrb[0].mxu0 %v1441
  %v1524 = vpop.f32.mrb[0].mxu0
  %v1525 = vadd.f32 %v1429, %v1524
  %v1526 = vpop.f32.mrb[0].mxu0
  %1527 = vdwg.mxu0
  %v1528 = vand.u32 2147483647, %v1510
  %vm1529 = vcmp.le.f32.partialorder %v1528, 0.7853982
  %vm1530 = vcmp.lt.s32.totalorder %v1510, 0
  %v1531 = vand.u32 %v1510, 2139095040
  %v1532 = vshrl.u32 %v1531, 23
  %v1533 = vsub.s32 %v1532, 127
  %v1534 = vand.u32 2147483647, %v1510
  %v1535 = vand.u32 %v1534, 8388607
  %v1536 = vor.u32 %v1535, 8388608
  %v1537 = vsub.s32 0, %v1536
  %v1538 = vadd.s32 %v1533, 1
  %vm1539 = vcmp.gt.s32.totalorder %v1538, 0
  %v1540 = vsel %vm1539, %v1538, 0
  %v1541 = vshrl.u32 %v1540, 5
  %v1542 = vand.u32 %v1540, 31
  %v1543 = vsub.s32 32, %v1542
  %v1544 = vshrl.u32 683565275, %v1543
  %v1545 = vshll.u32 683565275, %v1542
  %v1546 = vshrl.u32 2475754826, %v1543
  %v1547 = vor.u32 %v1545, %v1546
  %v1548 = vshll.u32 2475754826, %v1542
  %v1549 = vshrl.u32 2131351028, %v1543
  %v1550 = vor.u32 %v1548, %v1549
  %v1551 = vshll.u32 2131351028, %v1542
  %v1552 = vshrl.u32 2102212464, %v1543
  %v1553 = vor.u32 %v1551, %v1552
  %v1554 = vshll.u32 2102212464, %v1542
  %v1555 = vshrl.u32 920167782, %v1543
  %v1556 = vor.u32 %v1554, %v1555
  %v1557 = vshll.u32 920167782, %v1542
  %v1558 = vshrl.u32 1326507024, %v1543
  %v1559 = vor.u32 %v1557, %v1558
  %vm1560 = vcmp.lt.s32.totalorder %v1541, 1
  %vm1561 = vcmp.lt.s32.totalorder %v1541, 2
  %vm1562 = vcmp.lt.s32.totalorder %v1541, 3
  %vm1563 = vcmp.lt.s32.totalorder %v1541, 4
  %v1564 = vsel %vm1560, %v1544, %v1547
  %v1565 = vsel %vm1563, %v1553, 2102212464
  %v1566 = vsel %vm1562, %v1550, %v1565
  %v1567 = vsel %vm1561, %v1564, %v1566
  %v1568 = vsel %vm1560, %v1547, %v1550
  %v1569 = vsel %vm1563, %v1556, 920167782
  %v1570 = vsel %vm1562, %v1553, %v1569
  %v1571 = vsel %vm1561, %v1568, %v1570
  %v1572 = vsel %vm1560, %v1550, %v1553
  %v1573 = vsel %vm1563, %v1559, 1326507024
  %v1574 = vsel %vm1562, %v1556, %v1573
  %v1575 = vsel %vm1561, %v1572, %v1574
  %v1576 = vshll.u32 %v1536, 8
  %v1577 = vmul.u32.u64.compose %v1576, %v1575
  %v1578 = vextract.low.u32 %v1577
  %v1579 = vextract.high.u32 %v1577
  %v1580 = vmul.u32.u64.compose %v1576, %v1571
  %v1581 = vextract.low.u32 %v1580
  %v1582 = vextract.high.u32 %v1580
  %v1583 = vmul.u32 %v1576, %v1567
  %v1584 = vadd.s32 %v1579, %v1581
  %vm1585 = vc.u32 %v1579, %v1581
  %v1586 = vadd.s32 %v1582, 1
  %v1587 = vsel %vm1585, %v1586, %v1582
  %v1588 = vadd.s32 %v1583, %v1587
  %v1589 = vadd.s32 %v1588, 536870912
  %v1590 = vshrl.u32 %v1589, 30
  %v1591 = vshll.u32 %v1590, 30
  %v1592 = vsub.s32 %v1588, %v1591
  %vm1593 = vcmp.lt.s32.totalorder %v1592, 0
  %v1594 = vsub.s32 0, %v1592
  %v1595 = vsel %vm1593, %v1594, %v1592
  %v1596 = vclz %v1595
  %v1597 = vsub.s32 %v1596, 2
  %vm1598 = vcmp.gt.s32.totalorder 0, %v1597
  %v1599 = vsel %vm1598, 0, %v1597
  %v1600 = vsub.s32 32, %v1599
  %v1601 = vshll.u32 %v1592, %v1599
  %v1602 = vshrl.u32 %v1584, %v1600
  %v1603 = vor.u32 %v1601, %v1602
  %v1604 = vsub.s32 4294967266, %v1599
  %v1605 = vadd.s32 %v1604, 127
  %v1606 = vshll.u32 %v1605, 23
  %v1607 = vor.u32 4788187, %v1606
  %v1608 = vand.u32 2147483647, %v1607
  %v1610 = vcvt.s32.f32 %v1603
  %v1611 = vmul.f32 %v1610, %v1608
  %v1612 = vxor.u32 %v1611, 2147483648
  %v1613 = vsel %vm1530, %v1612, %v1611
  %v1614 = vsub.s32 4, %v1590
  %v1615 = vsel %vm1530, %v1614, %v1590
  %v1616 = vsel %vm1529, %v1510, %v1613
  %v1617 = vsel %vm1529, 0, %v1615
  %v1618 = vcosq.f32.pop %v1616
  %v1619 = vsinq.f32.pop %v1616
  %vm1620 = vweird.f32 %v1510
  %v1621 = vadd.s32 %v1617, 3
  %v1622 = vand.u32 %v1621, 3
  %vm1623 = vcmp.lt.s32.totalorder %v1622, 2
  %vm1624 = vcmp.eq.s32.totalorder %v1622, 0
  %v1625 = vxor.u32 %v1619, 2147483648
  %v1626 = vsel %vm1624, %v1618, %v1625
  %vm1627 = vcmp.eq.s32.totalorder %v1622, 2
  %v1628 = vxor.u32 %v1618, 2147483648
  %v1629 = vsel %vm1627, %v1628, %v1619
  %v1630 = vsel %vm1623, %v1626, %v1629
  %v1631 = vsel %vm1620, nan, %v1630
  %v1632 = vand.u32 2147483647, %v1515
  %vm1633 = vcmp.le.f32.partialorder %v1632, 0.7853982
  %vm1634 = vcmp.lt.s32.totalorder %v1515, 0
  %v1635 = vand.u32 %v1515, 2139095040
  %v1636 = vshrl.u32 %v1635, 23
  %v1637 = vsub.s32 %v1636, 127
  %v1638 = vand.u32 2147483647, %v1515
  %v1639 = vand.u32 %v1638, 8388607
  %v1640 = vor.u32 %v1639, 8388608
  %v1641 = vsub.s32 0, %v1640
  %v1642 = vadd.s32 %v1637, 1
  %vm1643 = vcmp.gt.s32.totalorder %v1642, 0
  %v1644 = vsel %vm1643, %v1642, 0
  %v1645 = vshrl.u32 %v1644, 5
  %v1646 = vand.u32 %v1644, 31
  %v1647 = vsub.s32 32, %v1646
  %v1648 = vshrl.u32 683565275, %v1647
  %v1649 = vshll.u32 683565275, %v1646
  %v1650 = vshrl.u32 2475754826, %v1647
  %v1651 = vor.u32 %v1649, %v1650
  %v1652 = vshll.u32 2475754826, %v1646
  %v1653 = vshrl.u32 2131351028, %v1647
  %v1654 = vor.u32 %v1652, %v1653
  %v1655 = vshll.u32 2131351028, %v1646
  %v1656 = vshrl.u32 2102212464, %v1647
  %v1657 = vor.u32 %v1655, %v1656
  %v1658 = vshll.u32 2102212464, %v1646
  %v1659 = vshrl.u32 920167782, %v1647
  %v1660 = vor.u32 %v1658, %v1659
  %v1661 = vshll.u32 920167782, %v1646
  %v1662 = vshrl.u32 1326507024, %v1647
  %v1663 = vor.u32 %v1661, %v1662
  %vm1664 = vcmp.lt.s32.totalorder %v1645, 1
  %vm1665 = vcmp.lt.s32.totalorder %v1645, 2
  %vm1666 = vcmp.lt.s32.totalorder %v1645, 3
  %vm1667 = vcmp.lt.s32.totalorder %v1645, 4
  %v1668 = vsel %vm1664, %v1648, %v1651
  %v1669 = vsel %vm1667, %v1657, 2102212464
  %v1670 = vsel %vm1666, %v1654, %v1669
  %v1671 = vsel %vm1665, %v1668, %v1670
  %v1672 = vsel %vm1664, %v1651, %v1654
  %v1673 = vsel %vm1667, %v1660, 920167782
  %v1674 = vsel %vm1666, %v1657, %v1673
  %v1675 = vsel %vm1665, %v1672, %v1674
  %v1676 = vsel %vm1664, %v1654, %v1657
  %v1677 = vsel %vm1667, %v1663, 1326507024
  %v1678 = vsel %vm1666, %v1660, %v1677
  %v1679 = vsel %vm1665, %v1676, %v1678
  %v1680 = vshll.u32 %v1640, 8
  %v1681 = vmul.u32.u64.compose %v1680, %v1679
  %v1682 = vextract.low.u32 %v1681
  %v1683 = vextract.high.u32 %v1681
  %v1684 = vmul.u32.u64.compose %v1680, %v1675
  %v1685 = vextract.low.u32 %v1684
  %v1686 = vextract.high.u32 %v1684
  %v1687 = vmul.u32 %v1680, %v1671
  %v1688 = vadd.s32 %v1683, %v1685
  %vm1689 = vc.u32 %v1683, %v1685
  %v1690 = vadd.s32 %v1686, 1
  %v1691 = vsel %vm1689, %v1690, %v1686
  %v1692 = vadd.s32 %v1687, %v1691
  %v1693 = vadd.s32 %v1692, 536870912
  %v1694 = vshrl.u32 %v1693, 30
  %v1695 = vshll.u32 %v1694, 30
  %v1696 = vsub.s32 %v1692, %v1695
  %vm1697 = vcmp.lt.s32.totalorder %v1696, 0
  %v1698 = vsub.s32 0, %v1696
  %v1699 = vsel %vm1697, %v1698, %v1696
  %v1700 = vclz %v1699
  %v1701 = vsub.s32 %v1700, 2
  %vm1702 = vcmp.gt.s32.totalorder 0, %v1701
  %v1703 = vsel %vm1702, 0, %v1701
  %v1704 = vsub.s32 32, %v1703
  %v1705 = vshll.u32 %v1696, %v1703
  %v1706 = vshrl.u32 %v1688, %v1704
  %v1707 = vor.u32 %v1705, %v1706
  %v1708 = vsub.s32 4294967266, %v1703
  %v1709 = vadd.s32 %v1708, 127
  %v1710 = vshll.u32 %v1709, 23
  %v1711 = vor.u32 4788187, %v1710
  %v1712 = vand.u32 2147483647, %v1711
  %v1714 = vcvt.s32.f32 %v1707
  %v1715 = vmul.f32 %v1714, %v1712
  %v1716 = vxor.u32 %v1715, 2147483648
  %v1717 = vsel %vm1634, %v1716, %v1715
  %v1718 = vsub.s32 4, %v1694
  %v1719 = vsel %vm1634, %v1718, %v1694
  %v1720 = vsel %vm1633, %v1515, %v1717
  %v1721 = vsel %vm1633, 0, %v1719
  %v1722 = vcosq.f32.pop %v1720
  %v1723 = vsinq.f32.pop %v1720
  %vm1724 = vweird.f32 %v1515
  %v1725 = vadd.s32 %v1721, 3
  %v1726 = vand.u32 %v1725, 3
  %vm1727 = vcmp.lt.s32.totalorder %v1726, 2
  %vm1728 = vcmp.eq.s32.totalorder %v1726, 0
  %v1729 = vxor.u32 %v1723, 2147483648
  %v1730 = vsel %vm1728, %v1722, %v1729
  %vm1731 = vcmp.eq.s32.totalorder %v1726, 2
  %v1732 = vxor.u32 %v1722, 2147483648
  %v1733 = vsel %vm1731, %v1732, %v1723
  %v1734 = vsel %vm1727, %v1730, %v1733
  %v1735 = vsel %vm1724, nan, %v1734
  %v1736 = vand.u32 2147483647, %v1520
  %vm1737 = vcmp.le.f32.partialorder %v1736, 0.7853982
  %vm1738 = vcmp.lt.s32.totalorder %v1520, 0
  %v1739 = vand.u32 %v1520, 2139095040
  %v1740 = vshrl.u32 %v1739, 23
  %v1741 = vsub.s32 %v1740, 127
  %v1742 = vand.u32 2147483647, %v1520
  %v1743 = vand.u32 %v1742, 8388607
  %v1744 = vor.u32 %v1743, 8388608
  %v1745 = vsub.s32 0, %v1744
  %v1746 = vadd.s32 %v1741, 1
  %vm1747 = vcmp.gt.s32.totalorder %v1746, 0
  %v1748 = vsel %vm1747, %v1746, 0
  %v1749 = vshrl.u32 %v1748, 5
  %v1750 = vand.u32 %v1748, 31
  %v1751 = vsub.s32 32, %v1750
  %v1752 = vshrl.u32 683565275, %v1751
  %v1753 = vshll.u32 683565275, %v1750
  %v1754 = vshrl.u32 2475754826, %v1751
  %v1755 = vor.u32 %v1753, %v1754
  %v1756 = vshll.u32 2475754826, %v1750
  %v1757 = vshrl.u32 2131351028, %v1751
  %v1758 = vor.u32 %v1756, %v1757
  %v1759 = vshll.u32 2131351028, %v1750
  %v1760 = vshrl.u32 2102212464, %v1751
  %v1761 = vor.u32 %v1759, %v1760
  %v1762 = vshll.u32 2102212464, %v1750
  %v1763 = vshrl.u32 920167782, %v1751
  %v1764 = vor.u32 %v1762, %v1763
  %v1765 = vshll.u32 920167782, %v1750
  %v1766 = vshrl.u32 1326507024, %v1751
  %v1767 = vor.u32 %v1765, %v1766
  %vm1768 = vcmp.lt.s32.totalorder %v1749, 1
  %vm1769 = vcmp.lt.s32.totalorder %v1749, 2
  %vm1770 = vcmp.lt.s32.totalorder %v1749, 3
  %vm1771 = vcmp.lt.s32.totalorder %v1749, 4
  %v1772 = vsel %vm1768, %v1752, %v1755
  %v1773 = vsel %vm1771, %v1761, 2102212464
  %v1774 = vsel %vm1770, %v1758, %v1773
  %v1775 = vsel %vm1769, %v1772, %v1774
  %v1776 = vsel %vm1768, %v1755, %v1758
  %v1777 = vsel %vm1771, %v1764, 920167782
  %v1778 = vsel %vm1770, %v1761, %v1777
  %v1779 = vsel %vm1769, %v1776, %v1778
  %v1780 = vsel %vm1768, %v1758, %v1761
  %v1781 = vsel %vm1771, %v1767, 1326507024
  %v1782 = vsel %vm1770, %v1764, %v1781
  %v1783 = vsel %vm1769, %v1780, %v1782
  %v1784 = vshll.u32 %v1744, 8
  %v1785 = vmul.u32.u64.compose %v1784, %v1783
  %v1786 = vextract.low.u32 %v1785
  %v1787 = vextract.high.u32 %v1785
  %v1788 = vmul.u32.u64.compose %v1784, %v1779
  %v1789 = vextract.low.u32 %v1788
  %v1790 = vextract.high.u32 %v1788
  %v1791 = vmul.u32 %v1784, %v1775
  %v1792 = vadd.s32 %v1787, %v1789
  %vm1793 = vc.u32 %v1787, %v1789
  %v1794 = vadd.s32 %v1790, 1
  %v1795 = vsel %vm1793, %v1794, %v1790
  %v1796 = vadd.s32 %v1791, %v1795
  %v1797 = vadd.s32 %v1796, 536870912
  %v1798 = vshrl.u32 %v1797, 30
  %v1799 = vshll.u32 %v1798, 30
  %v1800 = vsub.s32 %v1796, %v1799
  %vm1801 = vcmp.lt.s32.totalorder %v1800, 0
  %v1802 = vsub.s32 0, %v1800
  %v1803 = vsel %vm1801, %v1802, %v1800
  %v1804 = vclz %v1803
  %v1805 = vsub.s32 %v1804, 2
  %vm1806 = vcmp.gt.s32.totalorder 0, %v1805
  %v1807 = vsel %vm1806, 0, %v1805
  %v1808 = vsub.s32 32, %v1807
  %v1809 = vshll.u32 %v1800, %v1807
  %v1810 = vshrl.u32 %v1792, %v1808
  %v1811 = vor.u32 %v1809, %v1810
  %v1812 = vsub.s32 4294967266, %v1807
  %v1813 = vadd.s32 %v1812, 127
  %v1814 = vshll.u32 %v1813, 23
  %v1815 = vor.u32 4788187, %v1814
  %v1816 = vand.u32 2147483647, %v1815
  %v1818 = vcvt.s32.f32 %v1811
  %v1819 = vmul.f32 %v1818, %v1816
  %v1820 = vxor.u32 %v1819, 2147483648
  %v1821 = vsel %vm1738, %v1820, %v1819
  %v1822 = vsub.s32 4, %v1798
  %v1823 = vsel %vm1738, %v1822, %v1798
  %v1824 = vsel %vm1737, %v1520, %v1821
  %v1825 = vsel %vm1737, 0, %v1823
  %v1826 = vcosq.f32.pop %v1824
  %v1827 = vsinq.f32.pop %v1824
  %vm1828 = vweird.f32 %v1520
  %v1829 = vadd.s32 %v1825, 3
  %v1830 = vand.u32 %v1829, 3
  %vm1831 = vcmp.lt.s32.totalorder %v1830, 2
  %vm1832 = vcmp.eq.s32.totalorder %v1830, 0
  %v1833 = vxor.u32 %v1827, 2147483648
  %v1834 = vsel %vm1832, %v1826, %v1833
  %vm1835 = vcmp.eq.s32.totalorder %v1830, 2
  %v1836 = vxor.u32 %v1826, 2147483648
  %v1837 = vsel %vm1835, %v1836, %v1827
  %v1838 = vsel %vm1831, %v1834, %v1837
  %v1839 = vsel %vm1828, nan, %v1838
  %v1840 = vand.u32 2147483647, %v1525
  %vm1841 = vcmp.le.f32.partialorder %v1840, 0.7853982
  %vm1842 = vcmp.lt.s32.totalorder %v1525, 0
  %v1843 = vand.u32 %v1525, 2139095040
  %v1844 = vshrl.u32 %v1843, 23
  %v1845 = vsub.s32 %v1844, 127
  %v1846 = vand.u32 2147483647, %v1525
  %v1847 = vand.u32 %v1846, 8388607
  %v1848 = vor.u32 %v1847, 8388608
  %v1849 = vsub.s32 0, %v1848
  %v1850 = vadd.s32 %v1845, 1
  %vm1851 = vcmp.gt.s32.totalorder %v1850, 0
  %v1852 = vsel %vm1851, %v1850, 0
  %v1853 = vshrl.u32 %v1852, 5
  %v1854 = vand.u32 %v1852, 31
  %v1855 = vsub.s32 32, %v1854
  %v1856 = vshrl.u32 683565275, %v1855
  %v1857 = vshll.u32 683565275, %v1854
  %v1858 = vshrl.u32 2475754826, %v1855
  %v1859 = vor.u32 %v1857, %v1858
  %v1860 = vshll.u32 2475754826, %v1854
  %v1861 = vshrl.u32 2131351028, %v1855
  %v1862 = vor.u32 %v1860, %v1861
  %v1863 = vshll.u32 2131351028, %v1854
  %v1864 = vshrl.u32 2102212464, %v1855
  %v1865 = vor.u32 %v1863, %v1864
  %v1866 = vshll.u32 2102212464, %v1854
  %v1867 = vshrl.u32 920167782, %v1855
  %v1868 = vor.u32 %v1866, %v1867
  %v1869 = vshll.u32 920167782, %v1854
  %v1870 = vshrl.u32 1326507024, %v1855
  %v1871 = vor.u32 %v1869, %v1870
  %vm1872 = vcmp.lt.s32.totalorder %v1853, 1
  %vm1873 = vcmp.lt.s32.totalorder %v1853, 2
  %vm1874 = vcmp.lt.s32.totalorder %v1853, 3
  %vm1875 = vcmp.lt.s32.totalorder %v1853, 4
  %v1876 = vsel %vm1872, %v1856, %v1859
  %v1877 = vsel %vm1875, %v1865, 2102212464
  %v1878 = vsel %vm1874, %v1862, %v1877
  %v1879 = vsel %vm1873, %v1876, %v1878
  %v1880 = vsel %vm1872, %v1859, %v1862
  %v1881 = vsel %vm1875, %v1868, 920167782
  %v1882 = vsel %vm1874, %v1865, %v1881
  %v1883 = vsel %vm1873, %v1880, %v1882
  %v1884 = vsel %vm1872, %v1862, %v1865
  %v1885 = vsel %vm1875, %v1871, 1326507024
  %v1886 = vsel %vm1874, %v1868, %v1885
  %v1887 = vsel %vm1873, %v1884, %v1886
  %v1888 = vshll.u32 %v1848, 8
  %v1889 = vmul.u32.u64.compose %v1888, %v1887
  %v1890 = vextract.low.u32 %v1889
  %v1891 = vextract.high.u32 %v1889
  %v1892 = vmul.u32.u64.compose %v1888, %v1883
  %v1893 = vextract.low.u32 %v1892
  %v1894 = vextract.high.u32 %v1892
  %v1895 = vmul.u32 %v1888, %v1879
  %v1896 = vadd.s32 %v1891, %v1893
  %vm1897 = vc.u32 %v1891, %v1893
  %v1898 = vadd.s32 %v1894, 1
  %v1899 = vsel %vm1897, %v1898, %v1894
  %v1900 = vadd.s32 %v1895, %v1899
  %v1901 = vadd.s32 %v1900, 536870912
  %v1902 = vshrl.u32 %v1901, 30
  %v1903 = vshll.u32 %v1902, 30
  %v1904 = vsub.s32 %v1900, %v1903
  %vm1905 = vcmp.lt.s32.totalorder %v1904, 0
  %v1906 = vsub.s32 0, %v1904
  %v1907 = vsel %vm1905, %v1906, %v1904
  %v1908 = vclz %v1907
  %v1909 = vsub.s32 %v1908, 2
  %vm1910 = vcmp.gt.s32.totalorder 0, %v1909
  %v1911 = vsel %vm1910, 0, %v1909
  %v1912 = vsub.s32 32, %v1911
  %v1913 = vshll.u32 %v1904, %v1911
  %v1914 = vshrl.u32 %v1896, %v1912
  %v1915 = vor.u32 %v1913, %v1914
  %v1916 = vsub.s32 4294967266, %v1911
  %v1917 = vadd.s32 %v1916, 127
  %v1918 = vshll.u32 %v1917, 23
  %v1919 = vor.u32 4788187, %v1918
  %v1920 = vand.u32 2147483647, %v1919
  %v1922 = vcvt.s32.f32 %v1915
  %v1923 = vmul.f32 %v1922, %v1920
  %v1924 = vxor.u32 %v1923, 2147483648
  %v1925 = vsel %vm1842, %v1924, %v1923
  %v1926 = vsub.s32 4, %v1902
  %v1927 = vsel %vm1842, %v1926, %v1902
  %v1928 = vsel %vm1841, %v1525, %v1925
  %v1929 = vsel %vm1841, 0, %v1927
  %v1930 = vcosq.f32.pop %v1928
  %v1931 = vsinq.f32.pop %v1928
  %vm1932 = vweird.f32 %v1525
  %v1933 = vadd.s32 %v1929, 3
  %v1934 = vand.u32 %v1933, 3
  %vm1935 = vcmp.lt.s32.totalorder %v1934, 2
  %vm1936 = vcmp.eq.s32.totalorder %v1934, 0
  %v1937 = vxor.u32 %v1931, 2147483648
  %v1938 = vsel %vm1936, %v1930, %v1937
  %vm1939 = vcmp.eq.s32.totalorder %v1934, 2
  %v1940 = vxor.u32 %v1930, 2147483648
  %v1941 = vsel %vm1939, %v1940, %v1931
  %v1942 = vsel %vm1935, %v1938, %v1941
  %v1943 = vsel %vm1932, nan, %v1942
  %v1944 = vld [vmem:[%s11] sm:$0xff]
  %v1945 = vld [vmem:[%s11 + $0x8] sm:$0xff]
  %v1946 = vld [vmem:[%s11 + $0x10] sm:$0xff]
  %v1947 = vld [vmem:[%s11 + $0x18] sm:$0xff]
  %v1948 = vld [vmem:[%s12] sm:$0xff]
  %v1949 = vld [vmem:[%s12 + $0x8] sm:$0xff]
  %v1950 = vld [vmem:[%s12 + $0x10] sm:$0xff]
  %v1951 = vld [vmem:[%s12 + $0x18] sm:$0xff]
  %1953 = vset.pattern.permute.xlu0 0
  %1954 = vperm.xlu0 %1953, %v1948
  %v1955 = vpop.permute.xlu0 %1954
  %1958 = vset.pattern.permute.xlu0 0
  %1959 = vperm.xlu0 %1958, %v1949
  %v1960 = vpop.permute.xlu0 %1959
  %1963 = vset.pattern.permute.xlu0 0
  %1964 = vperm.xlu0 %1963, %v1950
  %v1965 = vpop.permute.xlu0 %1964
  %1968 = vset.pattern.permute.xlu0 0
  %1969 = vperm.xlu0 %1968, %v1951
  %v1970 = vpop.permute.xlu0 %1969
  %v1973 = vsel %vm344, %v1944, 0
  %v1976 = vsel %vm344, %v1945, 0
  %v1979 = vsel %vm344, %v1946, 0
  %v1982 = vsel %vm344, %v1947, 0
  %1984 = vmatprep.subr.mxu0 0.0
  %1985 = vmatpush1.msra.mxu0 %v1631
  %1986 = vmatprep.subr.mxu0 0.0
  %1987 = vmatpush1.msra.mxu0 %v1735
  %1988 = vmatprep.subr.mxu0 0.0
  %1989 = vmatpush1.msra.mxu0 %v1839
  %1990 = vmatprep.subr.mxu0 0.0
  %1991 = vmatpush1.msra.mxu0 %v1943
  %1992 = vmatprep.subr.mxu0 0.0
  %1993 = vmatpush1.msra.mxu0 0.0
  %1994 = vmatprep.subr.mxu0 0.0
  %1995 = vmatpush1.msra.mxu0 0.0
  %1996 = vmatprep.subr.mxu0 0.0
  %1997 = vmatpush1.msra.mxu0 0.0
  %1998 = vmatprep.subr.mxu0 0.0
  %1999 = vmatpush1.msra.mxu0 0.0
  %2000 = vmatprep.subr.mxu0 0.0
  %2001 = vmatpush1.msra.mxu0 0.0
  %2002 = vmatprep.subr.mxu0 0.0
  %2003 = vmatpush1.msra.mxu0 0.0
  %2004 = vmatprep.subr.mxu0 0.0
  %2005 = vmatpush1.msra.mxu0 0.0
  %2006 = vmatprep.subr.mxu0 0.0
  %2007 = vmatpush1.msra.mxu0 0.0
  %2008 = vmatprep.subr.mxu0 0.0
  %2009 = vmatpush1.msra.mxu0 0.0
  %2010 = vmatprep.subr.mxu0 0.0
  %2011 = vmatpush1.msra.mxu0 0.0
  %2012 = vmatprep.subr.mxu0 0.0
  %2013 = vmatpush1.msra.mxu0 0.0
  %2014 = vmatprep.subr.mxu0 0.0
  %2015 = vmatpush1.msra.mxu0 0.0
  %2016 = vmatprep.subr.mxu0 0.0
  %2017 = vmatpush1.msra.mxu0 0.0
  %2018 = vmatprep.subr.mxu0 0.0
  %2019 = vmatpush1.msra.mxu0 0.0
  %2020 = vmatprep.subr.mxu0 0.0
  %2021 = vmatpush1.msra.mxu0 0.0
  %2022 = vmatprep.subr.mxu0 0.0
  %2023 = vmatpush1.msra.mxu0 0.0
  %2024 = vmatprep.subr.mxu0 0.0
  %2025 = vmatpush1.msra.mxu0 0.0
  %2026 = vmatprep.subr.mxu0 0.0
  %2027 = vmatpush1.msra.mxu0 0.0
  %2028 = vmatprep.subr.mxu0 0.0
  %2029 = vmatpush1.msra.mxu0 0.0
  %2030 = vmatprep.subr.mxu0 0.0
  %2031 = vmatpush1.msra.mxu0 0.0
  %2032 = vmatprep.subr.mxu0 0.0
  %2033 = vmatpush1.msra.mxu0 0.0
  %2034 = vmatprep.subr.mxu0 0.0
  %2035 = vmatpush1.msra.mxu0 0.0
  %2036 = vmatprep.subr.mxu0 0.0
  %2037 = vmatpush1.msra.mxu0 0.0
  %2038 = vmatprep.subr.mxu0 0.0
  %2039 = vmatpush1.msra.mxu0 0.0
  %2040 = vmatprep.subr.mxu0 0.0
  %2041 = vmatpush1.msra.mxu0 0.0
  %2042 = vmatprep.subr.mxu0 0.0
  %2043 = vmatpush1.msra.mxu0 0.0
  %2044 = vmatprep.subr.mxu0 0.0
  %2045 = vmatpush1.msra.mxu0 0.0
  %2046 = vmatprep.subr.mxu0 0.0
  %2047 = vmatpush1.msra.mxu0 0.0
  %2048 = vmatprep.mubr.f32.mxu0 0.0
  %2049 = vmatmul.mubr.f32.gmra.mrb[0].mxu0 %v1973
  %v2050 = vpop.f32.mrb[0].mxu0
  %v2051 = vadd.f32 %v1955, %v2050
  %v2052 = vpop.f32.mrb[0].mxu0
  %2053 = vmatprep.mubr.f32.mxu0 0.0
  %2054 = vmatmul.mubr.f32.gmra.mrb[0].mxu0 %v1976
  %v2055 = vpop.f32.mrb[0].mxu0
  %v2056 = vadd.f32 %v1960, %v2055
  %v2057 = vpop.f32.mrb[0].mxu0
  %2058 = vmatprep.mubr.f32.mxu0 0.0
  %2059 = vmatmul.mubr.f32.gmra.mrb[0].mxu0 %v1979
  %v2060 = vpop.f32.mrb[0].mxu0
  %v2061 = vadd.f32 %v1965, %v2060
  %v2062 = vpop.f32.mrb[0].mxu0
  %2063 = vmatprep.mubr.f32.mxu0 0.0
  %2064 = vmatmul.mubr.f32.gmra.mrb[0].mxu0 %v1982
  %v2065 = vpop.f32.mrb[0].mxu0
  %v2066 = vadd.f32 %v1970, %v2065
  %v2067 = vpop.f32.mrb[0].mxu0
  %2068 = vdwg.mxu0
  %v2069 = vand.u32 2147483647, %v2051
  %vm2070 = vcmp.le.f32.partialorder %v2069, 0.7853982
  %vm2071 = vcmp.lt.s32.totalorder %v2051, 0
  %v2072 = vand.u32 %v2051, 2139095040
  %v2073 = vshrl.u32 %v2072, 23
  %v2074 = vsub.s32 %v2073, 127
  %v2075 = vand.u32 2147483647, %v2051
  %v2076 = vand.u32 %v2075, 8388607
  %v2077 = vor.u32 %v2076, 8388608
  %v2078 = vsub.s32 0, %v2077
  %v2079 = vadd.s32 %v2074, 1
  %vm2080 = vcmp.gt.s32.totalorder %v2079, 0
  %v2081 = vsel %vm2080, %v2079, 0
  %v2082 = vshrl.u32 %v2081, 5
  %v2083 = vand.u32 %v2081, 31
  %v2084 = vsub.s32 32, %v2083
  %v2085 = vshrl.u32 683565275, %v2084
  %v2086 = vshll.u32 683565275, %v2083
  %v2087 = vshrl.u32 2475754826, %v2084
  %v2088 = vor.u32 %v2086, %v2087
  %v2089 = vshll.u32 2475754826, %v2083
  %v2090 = vshrl.u32 2131351028, %v2084
  %v2091 = vor.u32 %v2089, %v2090
  %v2092 = vshll.u32 2131351028, %v2083
  %v2093 = vshrl.u32 2102212464, %v2084
  %v2094 = vor.u32 %v2092, %v2093
  %v2095 = vshll.u32 2102212464, %v2083
  %v2096 = vshrl.u32 920167782, %v2084
  %v2097 = vor.u32 %v2095, %v2096
  %v2098 = vshll.u32 920167782, %v2083
  %v2099 = vshrl.u32 1326507024, %v2084
  %v2100 = vor.u32 %v2098, %v2099
  %vm2101 = vcmp.lt.s32.totalorder %v2082, 1
  %vm2102 = vcmp.lt.s32.totalorder %v2082, 2
  %vm2103 = vcmp.lt.s32.totalorder %v2082, 3
  %vm2104 = vcmp.lt.s32.totalorder %v2082, 4
  %v2105 = vsel %vm2101, %v2085, %v2088
  %v2106 = vsel %vm2104, %v2094, 2102212464
  %v2107 = vsel %vm2103, %v2091, %v2106
  %v2108 = vsel %vm2102, %v2105, %v2107
  %v2109 = vsel %vm2101, %v2088, %v2091
  %v2110 = vsel %vm2104, %v2097, 920167782
  %v2111 = vsel %vm2103, %v2094, %v2110
  %v2112 = vsel %vm2102, %v2109, %v2111
  %v2113 = vsel %vm2101, %v2091, %v2094
  %v2114 = vsel %vm2104, %v2100, 1326507024
  %v2115 = vsel %vm2103, %v2097, %v2114
  %v2116 = vsel %vm2102, %v2113, %v2115
  %v2117 = vshll.u32 %v2077, 8
  %v2118 = vmul.u32.u64.compose %v2117, %v2116
  %v2119 = vextract.low.u32 %v2118
  %v2120 = vextract.high.u32 %v2118
  %v2121 = vmul.u32.u64.compose %v2117, %v2112
  %v2122 = vextract.low.u32 %v2121
  %v2123 = vextract.high.u32 %v2121
  %v2124 = vmul.u32 %v2117, %v2108
  %v2125 = vadd.s32 %v2120, %v2122
  %vm2126 = vc.u32 %v2120, %v2122
  %v2127 = vadd.s32 %v2123, 1
  %v2128 = vsel %vm2126, %v2127, %v2123
  %v2129 = vadd.s32 %v2124, %v2128
  %v2130 = vadd.s32 %v2129, 536870912
  %v2131 = vshrl.u32 %v2130, 30
  %v2132 = vshll.u32 %v2131, 30
  %v2133 = vsub.s32 %v2129, %v2132
  %vm2134 = vcmp.lt.s32.totalorder %v2133, 0
  %v2135 = vsub.s32 0, %v2133
  %v2136 = vsel %vm2134, %v2135, %v2133
  %v2137 = vclz %v2136
  %v2138 = vsub.s32 %v2137, 2
  %vm2139 = vcmp.gt.s32.totalorder 0, %v2138
  %v2140 = vsel %vm2139, 0, %v2138
  %v2141 = vsub.s32 32, %v2140
  %v2142 = vshll.u32 %v2133, %v2140
  %v2143 = vshrl.u32 %v2125, %v2141
  %v2144 = vor.u32 %v2142, %v2143
  %v2145 = vsub.s32 4294967266, %v2140
  %v2146 = vadd.s32 %v2145, 127
  %v2147 = vshll.u32 %v2146, 23
  %v2148 = vor.u32 4788187, %v2147
  %v2149 = vand.u32 2147483647, %v2148
  %v2151 = vcvt.s32.f32 %v2144
  %v2152 = vmul.f32 %v2151, %v2149
  %v2153 = vxor.u32 %v2152, 2147483648
  %v2154 = vsel %vm2071, %v2153, %v2152
  %v2155 = vsub.s32 4, %v2131
  %v2156 = vsel %vm2071, %v2155, %v2131
  %v2157 = vsel %vm2070, %v2051, %v2154
  %v2158 = vsel %vm2070, 0, %v2156
  %v2159 = vcosq.f32.pop %v2157
  %v2160 = vsinq.f32.pop %v2157
  %vm2161 = vweird.f32 %v2051
  %v2162 = vadd.s32 %v2158, 3
  %v2163 = vand.u32 %v2162, 3
  %vm2164 = vcmp.lt.s32.totalorder %v2163, 2
  %vm2165 = vcmp.eq.s32.totalorder %v2163, 0
  %v2166 = vxor.u32 %v2160, 2147483648
  %v2167 = vsel %vm2165, %v2159, %v2166
  %vm2168 = vcmp.eq.s32.totalorder %v2163, 2
  %v2169 = vxor.u32 %v2159, 2147483648
  %v2170 = vsel %vm2168, %v2169, %v2160
  %v2171 = vsel %vm2164, %v2167, %v2170
  %v2172 = vsel %vm2161, nan, %v2171
  %v2173 = vand.u32 2147483647, %v2056
  %vm2174 = vcmp.le.f32.partialorder %v2173, 0.7853982
  %vm2175 = vcmp.lt.s32.totalorder %v2056, 0
  %v2176 = vand.u32 %v2056, 2139095040
  %v2177 = vshrl.u32 %v2176, 23
  %v2178 = vsub.s32 %v2177, 127
  %v2179 = vand.u32 2147483647, %v2056
  %v2180 = vand.u32 %v2179, 8388607
  %v2181 = vor.u32 %v2180, 8388608
  %v2182 = vsub.s32 0, %v2181
  %v2183 = vadd.s32 %v2178, 1
  %vm2184 = vcmp.gt.s32.totalorder %v2183, 0
  %v2185 = vsel %vm2184, %v2183, 0
  %v2186 = vshrl.u32 %v2185, 5
  %v2187 = vand.u32 %v2185, 31
  %v2188 = vsub.s32 32, %v2187
  %v2189 = vshrl.u32 683565275, %v2188
  %v2190 = vshll.u32 683565275, %v2187
  %v2191 = vshrl.u32 2475754826, %v2188
  %v2192 = vor.u32 %v2190, %v2191
  %v2193 = vshll.u32 2475754826, %v2187
  %v2194 = vshrl.u32 2131351028, %v2188
  %v2195 = vor.u32 %v2193, %v2194
  %v2196 = vshll.u32 2131351028, %v2187
  %v2197 = vshrl.u32 2102212464, %v2188
  %v2198 = vor.u32 %v2196, %v2197
  %v2199 = vshll.u32 2102212464, %v2187
  %v2200 = vshrl.u32 920167782, %v2188
  %v2201 = vor.u32 %v2199, %v2200
  %v2202 = vshll.u32 920167782, %v2187
  %v2203 = vshrl.u32 1326507024, %v2188
  %v2204 = vor.u32 %v2202, %v2203
  %vm2205 = vcmp.lt.s32.totalorder %v2186, 1
  %vm2206 = vcmp.lt.s32.totalorder %v2186, 2
  %vm2207 = vcmp.lt.s32.totalorder %v2186, 3
  %vm2208 = vcmp.lt.s32.totalorder %v2186, 4
  %v2209 = vsel %vm2205, %v2189, %v2192
  %v2210 = vsel %vm2208, %v2198, 2102212464
  %v2211 = vsel %vm2207, %v2195, %v2210
  %v2212 = vsel %vm2206, %v2209, %v2211
  %v2213 = vsel %vm2205, %v2192, %v2195
  %v2214 = vsel %vm2208, %v2201, 920167782
  %v2215 = vsel %vm2207, %v2198, %v2214
  %v2216 = vsel %vm2206, %v2213, %v2215
  %v2217 = vsel %vm2205, %v2195, %v2198
  %v2218 = vsel %vm2208, %v2204, 1326507024
  %v2219 = vsel %vm2207, %v2201, %v2218
  %v2220 = vsel %vm2206, %v2217, %v2219
  %v2221 = vshll.u32 %v2181, 8
  %v2222 = vmul.u32.u64.compose %v2221, %v2220
  %v2223 = vextract.low.u32 %v2222
  %v2224 = vextract.high.u32 %v2222
  %v2225 = vmul.u32.u64.compose %v2221, %v2216
  %v2226 = vextract.low.u32 %v2225
  %v2227 = vextract.high.u32 %v2225
  %v2228 = vmul.u32 %v2221, %v2212
  %v2229 = vadd.s32 %v2224, %v2226
  %vm2230 = vc.u32 %v2224, %v2226
  %v2231 = vadd.s32 %v2227, 1
  %v2232 = vsel %vm2230, %v2231, %v2227
  %v2233 = vadd.s32 %v2228, %v2232
  %v2234 = vadd.s32 %v2233, 536870912
  %v2235 = vshrl.u32 %v2234, 30
  %v2236 = vshll.u32 %v2235, 30
  %v2237 = vsub.s32 %v2233, %v2236
  %vm2238 = vcmp.lt.s32.totalorder %v2237, 0
  %v2239 = vsub.s32 0, %v2237
  %v2240 = vsel %vm2238, %v2239, %v2237
  %v2241 = vclz %v2240
  %v2242 = vsub.s32 %v2241, 2
  %vm2243 = vcmp.gt.s32.totalorder 0, %v2242
  %v2244 = vsel %vm2243, 0, %v2242
  %v2245 = vsub.s32 32, %v2244
  %v2246 = vshll.u32 %v2237, %v2244
  %v2247 = vshrl.u32 %v2229, %v2245
  %v2248 = vor.u32 %v2246, %v2247
  %v2249 = vsub.s32 4294967266, %v2244
  %v2250 = vadd.s32 %v2249, 127
  %v2251 = vshll.u32 %v2250, 23
  %v2252 = vor.u32 4788187, %v2251
  %v2253 = vand.u32 2147483647, %v2252
  %v2255 = vcvt.s32.f32 %v2248
  %v2256 = vmul.f32 %v2255, %v2253
  %v2257 = vxor.u32 %v2256, 2147483648
  %v2258 = vsel %vm2175, %v2257, %v2256
  %v2259 = vsub.s32 4, %v2235
  %v2260 = vsel %vm2175, %v2259, %v2235
  %v2261 = vsel %vm2174, %v2056, %v2258
  %v2262 = vsel %vm2174, 0, %v2260
  %v2263 = vcosq.f32.pop %v2261
  %v2264 = vsinq.f32.pop %v2261
  %vm2265 = vweird.f32 %v2056
  %v2266 = vadd.s32 %v2262, 3
  %v2267 = vand.u32 %v2266, 3
  %vm2268 = vcmp.lt.s32.totalorder %v2267, 2
  %vm2269 = vcmp.eq.s32.totalorder %v2267, 0
  %v2270 = vxor.u32 %v2264, 2147483648
  %v2271 = vsel %vm2269, %v2263, %v2270
  %vm2272 = vcmp.eq.s32.totalorder %v2267, 2
  %v2273 = vxor.u32 %v2263, 2147483648
  %v2274 = vsel %vm2272, %v2273, %v2264
  %v2275 = vsel %vm2268, %v2271, %v2274
  %v2276 = vsel %vm2265, nan, %v2275
  %v2277 = vand.u32 2147483647, %v2061
  %vm2278 = vcmp.le.f32.partialorder %v2277, 0.7853982
  %vm2279 = vcmp.lt.s32.totalorder %v2061, 0
  %v2280 = vand.u32 %v2061, 2139095040
  %v2281 = vshrl.u32 %v2280, 23
  %v2282 = vsub.s32 %v2281, 127
  %v2283 = vand.u32 2147483647, %v2061
  %v2284 = vand.u32 %v2283, 8388607
  %v2285 = vor.u32 %v2284, 8388608
  %v2286 = vsub.s32 0, %v2285
  %v2287 = vadd.s32 %v2282, 1
  %vm2288 = vcmp.gt.s32.totalorder %v2287, 0
  %v2289 = vsel %vm2288, %v2287, 0
  %v2290 = vshrl.u32 %v2289, 5
  %v2291 = vand.u32 %v2289, 31
  %v2292 = vsub.s32 32, %v2291
  %v2293 = vshrl.u32 683565275, %v2292
  %v2294 = vshll.u32 683565275, %v2291
  %v2295 = vshrl.u32 2475754826, %v2292
  %v2296 = vor.u32 %v2294, %v2295
  %v2297 = vshll.u32 2475754826, %v2291
  %v2298 = vshrl.u32 2131351028, %v2292
  %v2299 = vor.u32 %v2297, %v2298
  %v2300 = vshll.u32 2131351028, %v2291
  %v2301 = vshrl.u32 2102212464, %v2292
  %v2302 = vor.u32 %v2300, %v2301
  %v2303 = vshll.u32 2102212464, %v2291
  %v2304 = vshrl.u32 920167782, %v2292
  %v2305 = vor.u32 %v2303, %v2304
  %v2306 = vshll.u32 920167782, %v2291
  %v2307 = vshrl.u32 1326507024, %v2292
  %v2308 = vor.u32 %v2306, %v2307
  %vm2309 = vcmp.lt.s32.totalorder %v2290, 1
  %vm2310 = vcmp.lt.s32.totalorder %v2290, 2
  %vm2311 = vcmp.lt.s32.totalorder %v2290, 3
  %vm2312 = vcmp.lt.s32.totalorder %v2290, 4
  %v2313 = vsel %vm2309, %v2293, %v2296
  %v2314 = vsel %vm2312, %v2302, 2102212464
  %v2315 = vsel %vm2311, %v2299, %v2314
  %v2316 = vsel %vm2310, %v2313, %v2315
  %v2317 = vsel %vm2309, %v2296, %v2299
  %v2318 = vsel %vm2312, %v2305, 920167782
  %v2319 = vsel %vm2311, %v2302, %v2318
  %v2320 = vsel %vm2310, %v2317, %v2319
  %v2321 = vsel %vm2309, %v2299, %v2302
  %v2322 = vsel %vm2312, %v2308, 1326507024
  %v2323 = vsel %vm2311, %v2305, %v2322
  %v2324 = vsel %vm2310, %v2321, %v2323
  %v2325 = vshll.u32 %v2285, 8
  %v2326 = vmul.u32.u64.compose %v2325, %v2324
  %v2327 = vextract.low.u32 %v2326
  %v2328 = vextract.high.u32 %v2326
  %v2329 = vmul.u32.u64.compose %v2325, %v2320
  %v2330 = vextract.low.u32 %v2329
  %v2331 = vextract.high.u32 %v2329
  %v2332 = vmul.u32 %v2325, %v2316
  %v2333 = vadd.s32 %v2328, %v2330
  %vm2334 = vc.u32 %v2328, %v2330
  %v2335 = vadd.s32 %v2331, 1
  %v2336 = vsel %vm2334, %v2335, %v2331
  %v2337 = vadd.s32 %v2332, %v2336
  %v2338 = vadd.s32 %v2337, 536870912
  %v2339 = vshrl.u32 %v2338, 30
  %v2340 = vshll.u32 %v2339, 30
  %v2341 = vsub.s32 %v2337, %v2340
  %vm2342 = vcmp.lt.s32.totalorder %v2341, 0
  %v2343 = vsub.s32 0, %v2341
  %v2344 = vsel %vm2342, %v2343, %v2341
  %v2345 = vclz %v2344
  %v2346 = vsub.s32 %v2345, 2
  %vm2347 = vcmp.gt.s32.totalorder 0, %v2346
  %v2348 = vsel %vm2347, 0, %v2346
  %v2349 = vsub.s32 32, %v2348
  %v2350 = vshll.u32 %v2341, %v2348
  %v2351 = vshrl.u32 %v2333, %v2349
  %v2352 = vor.u32 %v2350, %v2351
  %v2353 = vsub.s32 4294967266, %v2348
  %v2354 = vadd.s32 %v2353, 127
  %v2355 = vshll.u32 %v2354, 23
  %v2356 = vor.u32 4788187, %v2355
  %v2357 = vand.u32 2147483647, %v2356
  %v2359 = vcvt.s32.f32 %v2352
  %v2360 = vmul.f32 %v2359, %v2357
  %v2361 = vxor.u32 %v2360, 2147483648
  %v2362 = vsel %vm2279, %v2361, %v2360
  %v2363 = vsub.s32 4, %v2339
  %v2364 = vsel %vm2279, %v2363, %v2339
  %v2365 = vsel %vm2278, %v2061, %v2362
  %v2366 = vsel %vm2278, 0, %v2364
  %v2367 = vcosq.f32.pop %v2365
  %v2368 = vsinq.f32.pop %v2365
  %vm2369 = vweird.f32 %v2061
  %v2370 = vadd.s32 %v2366, 3
  %v2371 = vand.u32 %v2370, 3
  %vm2372 = vcmp.lt.s32.totalorder %v2371, 2
  %vm2373 = vcmp.eq.s32.totalorder %v2371, 0
  %v2374 = vxor.u32 %v2368, 2147483648
  %v2375 = vsel %vm2373, %v2367, %v2374
  %vm2376 = vcmp.eq.s32.totalorder %v2371, 2
  %v2377 = vxor.u32 %v2367, 2147483648
  %v2378 = vsel %vm2376, %v2377, %v2368
  %v2379 = vsel %vm2372, %v2375, %v2378
  %v2380 = vsel %vm2369, nan, %v2379
  %v2381 = vand.u32 2147483647, %v2066
  %vm2382 = vcmp.le.f32.partialorder %v2381, 0.7853982
  %vm2383 = vcmp.lt.s32.totalorder %v2066, 0
  %v2384 = vand.u32 %v2066, 2139095040
  %v2385 = vshrl.u32 %v2384, 23
  %v2386 = vsub.s32 %v2385, 127
  %v2387 = vand.u32 2147483647, %v2066
  %v2388 = vand.u32 %v2387, 8388607
  %v2389 = vor.u32 %v2388, 8388608
  %v2390 = vsub.s32 0, %v2389
  %v2391 = vadd.s32 %v2386, 1
  %vm2392 = vcmp.gt.s32.totalorder %v2391, 0
  %v2393 = vsel %vm2392, %v2391, 0
  %v2394 = vshrl.u32 %v2393, 5
  %v2395 = vand.u32 %v2393, 31
  %v2396 = vsub.s32 32, %v2395
  %v2397 = vshrl.u32 683565275, %v2396
  %v2398 = vshll.u32 683565275, %v2395
  %v2399 = vshrl.u32 2475754826, %v2396
  %v2400 = vor.u32 %v2398, %v2399
  %v2401 = vshll.u32 2475754826, %v2395
  %v2402 = vshrl.u32 2131351028, %v2396
  %v2403 = vor.u32 %v2401, %v2402
  %v2404 = vshll.u32 2131351028, %v2395
  %v2405 = vshrl.u32 2102212464, %v2396
  %v2406 = vor.u32 %v2404, %v2405
  %v2407 = vshll.u32 2102212464, %v2395
  %v2408 = vshrl.u32 920167782, %v2396
  %v2409 = vor.u32 %v2407, %v2408
  %v2410 = vshll.u32 920167782, %v2395
  %v2411 = vshrl.u32 1326507024, %v2396
  %v2412 = vor.u32 %v2410, %v2411
  %vm2413 = vcmp.lt.s32.totalorder %v2394, 1
  %vm2414 = vcmp.lt.s32.totalorder %v2394, 2
  %vm2415 = vcmp.lt.s32.totalorder %v2394, 3
  %vm2416 = vcmp.lt.s32.totalorder %v2394, 4
  %v2417 = vsel %vm2413, %v2397, %v2400
  %v2418 = vsel %vm2416, %v2406, 2102212464
  %v2419 = vsel %vm2415, %v2403, %v2418
  %v2420 = vsel %vm2414, %v2417, %v2419
  %v2421 = vsel %vm2413, %v2400, %v2403
  %v2422 = vsel %vm2416, %v2409, 920167782
  %v2423 = vsel %vm2415, %v2406, %v2422
  %v2424 = vsel %vm2414, %v2421, %v2423
  %v2425 = vsel %vm2413, %v2403, %v2406
  %v2426 = vsel %vm2416, %v2412, 1326507024
  %v2427 = vsel %vm2415, %v2409, %v2426
  %v2428 = vsel %vm2414, %v2425, %v2427
  %v2429 = vshll.u32 %v2389, 8
  %v2430 = vmul.u32.u64.compose %v2429, %v2428
  %v2431 = vextract.low.u32 %v2430
  %v2432 = vextract.high.u32 %v2430
  %v2433 = vmul.u32.u64.compose %v2429, %v2424
  %v2434 = vextract.low.u32 %v2433
  %v2435 = vextract.high.u32 %v2433
  %v2436 = vmul.u32 %v2429, %v2420
  %v2437 = vadd.s32 %v2432, %v2434
  %vm2438 = vc.u32 %v2432, %v2434
  %v2439 = vadd.s32 %v2435, 1
  %v2440 = vsel %vm2438, %v2439, %v2435
  %v2441 = vadd.s32 %v2436, %v2440
  %v2442 = vadd.s32 %v2441, 536870912
  %v2443 = vshrl.u32 %v2442, 30
  %v2444 = vshll.u32 %v2443, 30
  %v2445 = vsub.s32 %v2441, %v2444
  %vm2446 = vcmp.lt.s32.totalorder %v2445, 0
  %v2447 = vsub.s32 0, %v2445
  %v2448 = vsel %vm2446, %v2447, %v2445
  %v2449 = vclz %v2448
  %v2450 = vsub.s32 %v2449, 2
  %vm2451 = vcmp.gt.s32.totalorder 0, %v2450
  %v2452 = vsel %vm2451, 0, %v2450
  %v2453 = vsub.s32 32, %v2452
  %v2454 = vshll.u32 %v2445, %v2452
  %v2455 = vshrl.u32 %v2437, %v2453
  %v2456 = vor.u32 %v2454, %v2455
  %v2457 = vsub.s32 4294967266, %v2452
  %v2458 = vadd.s32 %v2457, 127
  %v2459 = vshll.u32 %v2458, 23
  %v2460 = vor.u32 4788187, %v2459
  %v2461 = vand.u32 2147483647, %v2460
  %v2463 = vcvt.s32.f32 %v2456
  %v2464 = vmul.f32 %v2463, %v2461
  %v2465 = vxor.u32 %v2464, 2147483648
  %v2466 = vsel %vm2383, %v2465, %v2464
  %v2467 = vsub.s32 4, %v2443
  %v2468 = vsel %vm2383, %v2467, %v2443
  %v2469 = vsel %vm2382, %v2066, %v2466
  %v2470 = vsel %vm2382, 0, %v2468
  %v2471 = vcosq.f32.pop %v2469
  %v2472 = vsinq.f32.pop %v2469
  %vm2473 = vweird.f32 %v2066
  %v2474 = vadd.s32 %v2470, 3
  %v2475 = vand.u32 %v2474, 3
  %vm2476 = vcmp.lt.s32.totalorder %v2475, 2
  %vm2477 = vcmp.eq.s32.totalorder %v2475, 0
  %v2478 = vxor.u32 %v2472, 2147483648
  %v2479 = vsel %vm2477, %v2471, %v2478
  %vm2480 = vcmp.eq.s32.totalorder %v2475, 2
  %v2481 = vxor.u32 %v2471, 2147483648
  %v2482 = vsel %vm2480, %v2481, %v2472
  %v2483 = vsel %vm2476, %v2479, %v2482
  %v2484 = vsel %vm2473, nan, %v2483
  %v2485 = vadd.f32 %v1399, %v2172
  %v2486 = vadd.f32 %v1400, %v2276
  %v2487 = vadd.f32 %v1401, %v2380
  %v2488 = vadd.f32 %v1402, %v2484
  %v2489 = vld [vmem:[%s13] sm:$0xff]
  %v2490 = vld [vmem:[%s13 + $0x8] sm:$0xff]
  %v2491 = vld [vmem:[%s13 + $0x10] sm:$0xff]
  %v2492 = vld [vmem:[%s13 + $0x18] sm:$0xff]
  %v2493 = vld [vmem:[%s14] sm:$0xff]
  %v2494 = vld [vmem:[%s14 + $0x8] sm:$0xff]
  %v2495 = vld [vmem:[%s14 + $0x10] sm:$0xff]
  %v2496 = vld [vmem:[%s14 + $0x18] sm:$0xff]
  %2498 = vset.pattern.permute.xlu0 0
  %2499 = vperm.xlu0 %2498, %v2493
  %v2500 = vpop.permute.xlu0 %2499
  %2503 = vset.pattern.permute.xlu0 0
  %2504 = vperm.xlu0 %2503, %v2494
  %v2505 = vpop.permute.xlu0 %2504
  %2508 = vset.pattern.permute.xlu0 0
  %2509 = vperm.xlu0 %2508, %v2495
  %v2510 = vpop.permute.xlu0 %2509
  %2513 = vset.pattern.permute.xlu0 0
  %2514 = vperm.xlu0 %2513, %v2496
  %v2515 = vpop.permute.xlu0 %2514
  %v2518 = vsel %vm344, %v2489, 0
  %v2521 = vsel %vm344, %v2490, 0
  %v2524 = vsel %vm344, %v2491, 0
  %v2527 = vsel %vm344, %v2492, 0
  %2529 = vmatprep.subr.mxu0 0.0
  %2530 = vmatpush1.msra.mxu0 %v2485
  %2531 = vmatprep.subr.mxu0 0.0
  %2532 = vmatpush1.msra.mxu0 %v2486
  %2533 = vmatprep.subr.mxu0 0.0
  %2534 = vmatpush1.msra.mxu0 %v2487
  %2535 = vmatprep.subr.mxu0 0.0
  %2536 = vmatpush1.msra.mxu0 %v2488
  %2537 = vmatprep.subr.mxu0 0.0
  %2538 = vmatpush1.msra.mxu0 0.0
  %2539 = vmatprep.subr.mxu0 0.0
  %2540 = vmatpush1.msra.mxu0 0.0
  %2541 = vmatprep.subr.mxu0 0.0
  %2542 = vmatpush1.msra.mxu0 0.0
  %2543 = vmatprep.subr.mxu0 0.0
  %2544 = vmatpush1.msra.mxu0 0.0
  %2545 = vmatprep.subr.mxu0 0.0
  %2546 = vmatpush1.msra.mxu0 0.0
  %2547 = vmatprep.subr.mxu0 0.0
  %2548 = vmatpush1.msra.mxu0 0.0
  %2549 = vmatprep.subr.mxu0 0.0
  %2550 = vmatpush1.msra.mxu0 0.0
  %2551 = vmatprep.subr.mxu0 0.0
  %2552 = vmatpush1.msra.mxu0 0.0
  %2553 = vmatprep.subr.mxu0 0.0
  %2554 = vmatpush1.msra.mxu0 0.0
  %2555 = vmatprep.subr.mxu0 0.0
  %2556 = vmatpush1.msra.mxu0 0.0
  %2557 = vmatprep.subr.mxu0 0.0
  %2558 = vmatpush1.msra.mxu0 0.0
  %2559 = vmatprep.subr.mxu0 0.0
  %2560 = vmatpush1.msra.mxu0 0.0
  %2561 = vmatprep.subr.mxu0 0.0
  %2562 = vmatpush1.msra.mxu0 0.0
  %2563 = vmatprep.subr.mxu0 0.0
  %2564 = vmatpush1.msra.mxu0 0.0
  %2565 = vmatprep.subr.mxu0 0.0
  %2566 = vmatpush1.msra.mxu0 0.0
  %2567 = vmatprep.subr.mxu0 0.0
  %2568 = vmatpush1.msra.mxu0 0.0
  %2569 = vmatprep.subr.mxu0 0.0
  %2570 = vmatpush1.msra.mxu0 0.0
  %2571 = vmatprep.subr.mxu0 0.0
  %2572 = vmatpush1.msra.mxu0 0.0
  %2573 = vmatprep.subr.mxu0 0.0
  %2574 = vmatpush1.msra.mxu0 0.0
  %2575 = vmatprep.subr.mxu0 0.0
  %2576 = vmatpush1.msra.mxu0 0.0
  %2577 = vmatprep.subr.mxu0 0.0
  %2578 = vmatpush1.msra.mxu0 0.0
  %2579 = vmatprep.subr.mxu0 0.0
  %2580 = vmatpush1.msra.mxu0 0.0
  %2581 = vmatprep.subr.mxu0 0.0
  %2582 = vmatpush1.msra.mxu0 0.0
  %2583 = vmatprep.subr.mxu0 0.0
  %2584 = vmatpush1.msra.mxu0 0.0
  %2585 = vmatprep.subr.mxu0 0.0
  %2586 = vmatpush1.msra.mxu0 0.0
  %2587 = vmatprep.subr.mxu0 0.0
  %2588 = vmatpush1.msra.mxu0 0.0
  %2589 = vmatprep.subr.mxu0 0.0
  %2590 = vmatpush1.msra.mxu0 0.0
  %2591 = vmatprep.subr.mxu0 0.0
  %2592 = vmatpush1.msra.mxu0 0.0
  %2593 = vmatprep.mubr.f32.mxu0 0.0
  %2594 = vmatmul.mubr.f32.gmra.mrb[0].mxu0 %v2518
  %v2595 = vpop.f32.mrb[0].mxu0
  %v2596 = vadd.f32 %v2500, %v2595
  %v2597 = vpop.f32.mrb[0].mxu0
  %2598 = vmatprep.mubr.f32.mxu0 0.0
  %2599 = vmatmul.mubr.f32.gmra.mrb[0].mxu0 %v2521
  %v2600 = vpop.f32.mrb[0].mxu0
  %v2601 = vadd.f32 %v2505, %v2600
  %v2602 = vpop.f32.mrb[0].mxu0
  %2603 = vmatprep.mubr.f32.mxu0 0.0
  %2604 = vmatmul.mubr.f32.gmra.mrb[0].mxu0 %v2524
  %v2605 = vpop.f32.mrb[0].mxu0
  %v2606 = vadd.f32 %v2510, %v2605
  %v2607 = vpop.f32.mrb[0].mxu0
  %2608 = vmatprep.mubr.f32.mxu0 0.0
  %2609 = vmatmul.mubr.f32.gmra.mrb[0].mxu0 %v2527
  %v2610 = vpop.f32.mrb[0].mxu0
  %v2611 = vadd.f32 %v2515, %v2610
  %v2612 = vpop.f32.mrb[0].mxu0
  %2613 = vdwg.mxu0
  %v2614 = vand.u32 2147483647, %v2596
  %vm2615 = vcmp.le.f32.partialorder %v2614, 0.7853982
  %vm2616 = vcmp.lt.s32.totalorder %v2596, 0
  %v2617 = vand.u32 %v2596, 2139095040
  %v2618 = vshrl.u32 %v2617, 23
  %v2619 = vsub.s32 %v2618, 127
  %v2620 = vand.u32 2147483647, %v2596
  %v2621 = vand.u32 %v2620, 8388607
  %v2622 = vor.u32 %v2621, 8388608
  %v2623 = vsub.s32 0, %v2622
  %v2624 = vadd.s32 %v2619, 1
  %vm2625 = vcmp.gt.s32.totalorder %v2624, 0
  %v2626 = vsel %vm2625, %v2624, 0
  %v2627 = vshrl.u32 %v2626, 5
  %v2628 = vand.u32 %v2626, 31
  %v2629 = vsub.s32 32, %v2628
  %v2630 = vshrl.u32 683565275, %v2629
  %v2631 = vshll.u32 683565275, %v2628
  %v2632 = vshrl.u32 2475754826, %v2629
  %v2633 = vor.u32 %v2631, %v2632
  %v2634 = vshll.u32 2475754826, %v2628
  %v2635 = vshrl.u32 2131351028, %v2629
  %v2636 = vor.u32 %v2634, %v2635
  %v2637 = vshll.u32 2131351028, %v2628
  %v2638 = vshrl.u32 2102212464, %v2629
  %v2639 = vor.u32 %v2637, %v2638
  %v2640 = vshll.u32 2102212464, %v2628
  %v2641 = vshrl.u32 920167782, %v2629
  %v2642 = vor.u32 %v2640, %v2641
  %v2643 = vshll.u32 920167782, %v2628
  %v2644 = vshrl.u32 1326507024, %v2629
  %v2645 = vor.u32 %v2643, %v2644
  %vm2646 = vcmp.lt.s32.totalorder %v2627, 1
  %vm2647 = vcmp.lt.s32.totalorder %v2627, 2
  %vm2648 = vcmp.lt.s32.totalorder %v2627, 3
  %vm2649 = vcmp.lt.s32.totalorder %v2627, 4
  %v2650 = vsel %vm2646, %v2630, %v2633
  %v2651 = vsel %vm2649, %v2639, 2102212464
  %v2652 = vsel %vm2648, %v2636, %v2651
  %v2653 = vsel %vm2647, %v2650, %v2652
  %v2654 = vsel %vm2646, %v2633, %v2636
  %v2655 = vsel %vm2649, %v2642, 920167782
  %v2656 = vsel %vm2648, %v2639, %v2655
  %v2657 = vsel %vm2647, %v2654, %v2656
  %v2658 = vsel %vm2646, %v2636, %v2639
  %v2659 = vsel %vm2649, %v2645, 1326507024
  %v2660 = vsel %vm2648, %v2642, %v2659
  %v2661 = vsel %vm2647, %v2658, %v2660
  %v2662 = vshll.u32 %v2622, 8
  %v2663 = vmul.u32.u64.compose %v2662, %v2661
  %v2664 = vextract.low.u32 %v2663
  %v2665 = vextract.high.u32 %v2663
  %v2666 = vmul.u32.u64.compose %v2662, %v2657
  %v2667 = vextract.low.u32 %v2666
  %v2668 = vextract.high.u32 %v2666
  %v2669 = vmul.u32 %v2662, %v2653
  %v2670 = vadd.s32 %v2665, %v2667
  %vm2671 = vc.u32 %v2665, %v2667
  %v2672 = vadd.s32 %v2668, 1
  %v2673 = vsel %vm2671, %v2672, %v2668
  %v2674 = vadd.s32 %v2669, %v2673
  %v2675 = vadd.s32 %v2674, 536870912
  %v2676 = vshrl.u32 %v2675, 30
  %v2677 = vshll.u32 %v2676, 30
  %v2678 = vsub.s32 %v2674, %v2677
  %vm2679 = vcmp.lt.s32.totalorder %v2678, 0
  %v2680 = vsub.s32 0, %v2678
  %v2681 = vsel %vm2679, %v2680, %v2678
  %v2682 = vclz %v2681
  %v2683 = vsub.s32 %v2682, 2
  %vm2684 = vcmp.gt.s32.totalorder 0, %v2683
  %v2685 = vsel %vm2684, 0, %v2683
  %v2686 = vsub.s32 32, %v2685
  %v2687 = vshll.u32 %v2678, %v2685
  %v2688 = vshrl.u32 %v2670, %v2686
  %v2689 = vor.u32 %v2687, %v2688
  %v2690 = vsub.s32 4294967266, %v2685
  %v2691 = vadd.s32 %v2690, 127
  %v2692 = vshll.u32 %v2691, 23
  %v2693 = vor.u32 4788187, %v2692
  %v2694 = vand.u32 2147483647, %v2693
  %v2696 = vcvt.s32.f32 %v2689
  %v2697 = vmul.f32 %v2696, %v2694
  %v2698 = vxor.u32 %v2697, 2147483648
  %v2699 = vsel %vm2616, %v2698, %v2697
  %v2700 = vsub.s32 4, %v2676
  %v2701 = vsel %vm2616, %v2700, %v2676
  %v2702 = vsel %vm2615, %v2596, %v2699
  %v2703 = vsel %vm2615, 0, %v2701
  %v2704 = vcosq.f32.pop %v2702
  %v2705 = vsinq.f32.pop %v2702
  %vm2706 = vweird.f32 %v2596
  %v2707 = vadd.s32 %v2703, 3
  %v2708 = vand.u32 %v2707, 3
  %vm2709 = vcmp.lt.s32.totalorder %v2708, 2
  %vm2710 = vcmp.eq.s32.totalorder %v2708, 0
  %v2711 = vxor.u32 %v2705, 2147483648
  %v2712 = vsel %vm2710, %v2704, %v2711
  %vm2713 = vcmp.eq.s32.totalorder %v2708, 2
  %v2714 = vxor.u32 %v2704, 2147483648
  %v2715 = vsel %vm2713, %v2714, %v2705
  %v2716 = vsel %vm2709, %v2712, %v2715
  %v2717 = vsel %vm2706, nan, %v2716
  %v2718 = vand.u32 2147483647, %v2601
  %vm2719 = vcmp.le.f32.partialorder %v2718, 0.7853982
  %vm2720 = vcmp.lt.s32.totalorder %v2601, 0
  %v2721 = vand.u32 %v2601, 2139095040
  %v2722 = vshrl.u32 %v2721, 23
  %v2723 = vsub.s32 %v2722, 127
  %v2724 = vand.u32 2147483647, %v2601
  %v2725 = vand.u32 %v2724, 8388607
  %v2726 = vor.u32 %v2725, 8388608
  %v2727 = vsub.s32 0, %v2726
  %v2728 = vadd.s32 %v2723, 1
  %vm2729 = vcmp.gt.s32.totalorder %v2728, 0
  %v2730 = vsel %vm2729, %v2728, 0
  %v2731 = vshrl.u32 %v2730, 5
  %v2732 = vand.u32 %v2730, 31
  %v2733 = vsub.s32 32, %v2732
  %v2734 = vshrl.u32 683565275, %v2733
  %v2735 = vshll.u32 683565275, %v2732
  %v2736 = vshrl.u32 2475754826, %v2733
  %v2737 = vor.u32 %v2735, %v2736
  %v2738 = vshll.u32 2475754826, %v2732
  %v2739 = vshrl.u32 2131351028, %v2733
  %v2740 = vor.u32 %v2738, %v2739
  %v2741 = vshll.u32 2131351028, %v2732
  %v2742 = vshrl.u32 2102212464, %v2733
  %v2743 = vor.u32 %v2741, %v2742
  %v2744 = vshll.u32 2102212464, %v2732
  %v2745 = vshrl.u32 920167782, %v2733
  %v2746 = vor.u32 %v2744, %v2745
  %v2747 = vshll.u32 920167782, %v2732
  %v2748 = vshrl.u32 1326507024, %v2733
  %v2749 = vor.u32 %v2747, %v2748
  %vm2750 = vcmp.lt.s32.totalorder %v2731, 1
  %vm2751 = vcmp.lt.s32.totalorder %v2731, 2
  %vm2752 = vcmp.lt.s32.totalorder %v2731, 3
  %vm2753 = vcmp.lt.s32.totalorder %v2731, 4
  %v2754 = vsel %vm2750, %v2734, %v2737
  %v2755 = vsel %vm2753, %v2743, 2102212464
  %v2756 = vsel %vm2752, %v2740, %v2755
  %v2757 = vsel %vm2751, %v2754, %v2756
  %v2758 = vsel %vm2750, %v2737, %v2740
  %v2759 = vsel %vm2753, %v2746, 920167782
  %v2760 = vsel %vm2752, %v2743, %v2759
  %v2761 = vsel %vm2751, %v2758, %v2760
  %v2762 = vsel %vm2750, %v2740, %v2743
  %v2763 = vsel %vm2753, %v2749, 1326507024
  %v2764 = vsel %vm2752, %v2746, %v2763
  %v2765 = vsel %vm2751, %v2762, %v2764
  %v2766 = vshll.u32 %v2726, 8
  %v2767 = vmul.u32.u64.compose %v2766, %v2765
  %v2768 = vextract.low.u32 %v2767
  %v2769 = vextract.high.u32 %v2767
  %v2770 = vmul.u32.u64.compose %v2766, %v2761
  %v2771 = vextract.low.u32 %v2770
  %v2772 = vextract.high.u32 %v2770
  %v2773 = vmul.u32 %v2766, %v2757
  %v2774 = vadd.s32 %v2769, %v2771
  %vm2775 = vc.u32 %v2769, %v2771
  %v2776 = vadd.s32 %v2772, 1
  %v2777 = vsel %vm2775, %v2776, %v2772
  %v2778 = vadd.s32 %v2773, %v2777
  %v2779 = vadd.s32 %v2778, 536870912
  %v2780 = vshrl.u32 %v2779, 30
  %v2781 = vshll.u32 %v2780, 30
  %v2782 = vsub.s32 %v2778, %v2781
  %vm2783 = vcmp.lt.s32.totalorder %v2782, 0
  %v2784 = vsub.s32 0, %v2782
  %v2785 = vsel %vm2783, %v2784, %v2782
  %v2786 = vclz %v2785
  %v2787 = vsub.s32 %v2786, 2
  %vm2788 = vcmp.gt.s32.totalorder 0, %v2787
  %v2789 = vsel %vm2788, 0, %v2787
  %v2790 = vsub.s32 32, %v2789
  %v2791 = vshll.u32 %v2782, %v2789
  %v2792 = vshrl.u32 %v2774, %v2790
  %v2793 = vor.u32 %v2791, %v2792
  %v2794 = vsub.s32 4294967266, %v2789
  %v2795 = vadd.s32 %v2794, 127
  %v2796 = vshll.u32 %v2795, 23
  %v2797 = vor.u32 4788187, %v2796
  %v2798 = vand.u32 2147483647, %v2797
  %v2800 = vcvt.s32.f32 %v2793
  %v2801 = vmul.f32 %v2800, %v2798
  %v2802 = vxor.u32 %v2801, 2147483648
  %v2803 = vsel %vm2720, %v2802, %v2801
  %v2804 = vsub.s32 4, %v2780
  %v2805 = vsel %vm2720, %v2804, %v2780
  %v2806 = vsel %vm2719, %v2601, %v2803
  %v2807 = vsel %vm2719, 0, %v2805
  %v2808 = vcosq.f32.pop %v2806
  %v2809 = vsinq.f32.pop %v2806
  %vm2810 = vweird.f32 %v2601
  %v2811 = vadd.s32 %v2807, 3
  %v2812 = vand.u32 %v2811, 3
  %vm2813 = vcmp.lt.s32.totalorder %v2812, 2
  %vm2814 = vcmp.eq.s32.totalorder %v2812, 0
  %v2815 = vxor.u32 %v2809, 2147483648
  %v2816 = vsel %vm2814, %v2808, %v2815
  %vm2817 = vcmp.eq.s32.totalorder %v2812, 2
  %v2818 = vxor.u32 %v2808, 2147483648
  %v2819 = vsel %vm2817, %v2818, %v2809
  %v2820 = vsel %vm2813, %v2816, %v2819
  %v2821 = vsel %vm2810, nan, %v2820
  %v2822 = vand.u32 2147483647, %v2606
  %vm2823 = vcmp.le.f32.partialorder %v2822, 0.7853982
  %vm2824 = vcmp.lt.s32.totalorder %v2606, 0
  %v2825 = vand.u32 %v2606, 2139095040
  %v2826 = vshrl.u32 %v2825, 23
  %v2827 = vsub.s32 %v2826, 127
  %v2828 = vand.u32 2147483647, %v2606
  %v2829 = vand.u32 %v2828, 8388607
  %v2830 = vor.u32 %v2829, 8388608
  %v2831 = vsub.s32 0, %v2830
  %v2832 = vadd.s32 %v2827, 1
  %vm2833 = vcmp.gt.s32.totalorder %v2832, 0
  %v2834 = vsel %vm2833, %v2832, 0
  %v2835 = vshrl.u32 %v2834, 5
  %v2836 = vand.u32 %v2834, 31
  %v2837 = vsub.s32 32, %v2836
  %v2838 = vshrl.u32 683565275, %v2837
  %v2839 = vshll.u32 683565275, %v2836
  %v2840 = vshrl.u32 2475754826, %v2837
  %v2841 = vor.u32 %v2839, %v2840
  %v2842 = vshll.u32 2475754826, %v2836
  %v2843 = vshrl.u32 2131351028, %v2837
  %v2844 = vor.u32 %v2842, %v2843
  %v2845 = vshll.u32 2131351028, %v2836
  %v2846 = vshrl.u32 2102212464, %v2837
  %v2847 = vor.u32 %v2845, %v2846
  %v2848 = vshll.u32 2102212464, %v2836
  %v2849 = vshrl.u32 920167782, %v2837
  %v2850 = vor.u32 %v2848, %v2849
  %v2851 = vshll.u32 920167782, %v2836
  %v2852 = vshrl.u32 1326507024, %v2837
  %v2853 = vor.u32 %v2851, %v2852
  %vm2854 = vcmp.lt.s32.totalorder %v2835, 1
  %vm2855 = vcmp.lt.s32.totalorder %v2835, 2
  %vm2856 = vcmp.lt.s32.totalorder %v2835, 3
  %vm2857 = vcmp.lt.s32.totalorder %v2835, 4
  %v2858 = vsel %vm2854, %v2838, %v2841
  %v2859 = vsel %vm2857, %v2847, 2102212464
  %v2860 = vsel %vm2856, %v2844, %v2859
  %v2861 = vsel %vm2855, %v2858, %v2860
  %v2862 = vsel %vm2854, %v2841, %v2844
  %v2863 = vsel %vm2857, %v2850, 920167782
  %v2864 = vsel %vm2856, %v2847, %v2863
  %v2865 = vsel %vm2855, %v2862, %v2864
  %v2866 = vsel %vm2854, %v2844, %v2847
  %v2867 = vsel %vm2857, %v2853, 1326507024
  %v2868 = vsel %vm2856, %v2850, %v2867
  %v2869 = vsel %vm2855, %v2866, %v2868
  %v2870 = vshll.u32 %v2830, 8
  %v2871 = vmul.u32.u64.compose %v2870, %v2869
  %v2872 = vextract.low.u32 %v2871
  %v2873 = vextract.high.u32 %v2871
  %v2874 = vmul.u32.u64.compose %v2870, %v2865
  %v2875 = vextract.low.u32 %v2874
  %v2876 = vextract.high.u32 %v2874
  %v2877 = vmul.u32 %v2870, %v2861
  %v2878 = vadd.s32 %v2873, %v2875
  %vm2879 = vc.u32 %v2873, %v2875
  %v2880 = vadd.s32 %v2876, 1
  %v2881 = vsel %vm2879, %v2880, %v2876
  %v2882 = vadd.s32 %v2877, %v2881
  %v2883 = vadd.s32 %v2882, 536870912
  %v2884 = vshrl.u32 %v2883, 30
  %v2885 = vshll.u32 %v2884, 30
  %v2886 = vsub.s32 %v2882, %v2885
  %vm2887 = vcmp.lt.s32.totalorder %v2886, 0
  %v2888 = vsub.s32 0, %v2886
  %v2889 = vsel %vm2887, %v2888, %v2886
  %v2890 = vclz %v2889
  %v2891 = vsub.s32 %v2890, 2
  %vm2892 = vcmp.gt.s32.totalorder 0, %v2891
  %v2893 = vsel %vm2892, 0, %v2891
  %v2894 = vsub.s32 32, %v2893
  %v2895 = vshll.u32 %v2886, %v2893
  %v2896 = vshrl.u32 %v2878, %v2894
  %v2897 = vor.u32 %v2895, %v2896
  %v2898 = vsub.s32 4294967266, %v2893
  %v2899 = vadd.s32 %v2898, 127
  %v2900 = vshll.u32 %v2899, 23
  %v2901 = vor.u32 4788187, %v2900
  %v2902 = vand.u32 2147483647, %v2901
  %v2904 = vcvt.s32.f32 %v2897
  %v2905 = vmul.f32 %v2904, %v2902
  %v2906 = vxor.u32 %v2905, 2147483648
  %v2907 = vsel %vm2824, %v2906, %v2905
  %v2908 = vsub.s32 4, %v2884
  %v2909 = vsel %vm2824, %v2908, %v2884
  %v2910 = vsel %vm2823, %v2606, %v2907
  %v2911 = vsel %vm2823, 0, %v2909
  %v2912 = vcosq.f32.pop %v2910
  %v2913 = vsinq.f32.pop %v2910
  %vm2914 = vweird.f32 %v2606
  %v2915 = vadd.s32 %v2911, 3
  %v2916 = vand.u32 %v2915, 3
  %vm2917 = vcmp.lt.s32.totalorder %v2916, 2
  %vm2918 = vcmp.eq.s32.totalorder %v2916, 0
  %v2919 = vxor.u32 %v2913, 2147483648
  %v2920 = vsel %vm2918, %v2912, %v2919
  %vm2921 = vcmp.eq.s32.totalorder %v2916, 2
  %v2922 = vxor.u32 %v2912, 2147483648
  %v2923 = vsel %vm2921, %v2922, %v2913
  %v2924 = vsel %vm2917, %v2920, %v2923
  %v2925 = vsel %vm2914, nan, %v2924
  %v2926 = vand.u32 2147483647, %v2611
  %vm2927 = vcmp.le.f32.partialorder %v2926, 0.7853982
  %vm2928 = vcmp.lt.s32.totalorder %v2611, 0
  %v2929 = vand.u32 %v2611, 2139095040
  %v2930 = vshrl.u32 %v2929, 23
  %v2931 = vsub.s32 %v2930, 127
  %v2932 = vand.u32 2147483647, %v2611
  %v2933 = vand.u32 %v2932, 8388607
  %v2934 = vor.u32 %v2933, 8388608
  %v2935 = vsub.s32 0, %v2934
  %v2936 = vadd.s32 %v2931, 1
  %vm2937 = vcmp.gt.s32.totalorder %v2936, 0
  %v2938 = vsel %vm2937, %v2936, 0
  %v2939 = vshrl.u32 %v2938, 5
  %v2940 = vand.u32 %v2938, 31
  %v2941 = vsub.s32 32, %v2940
  %v2942 = vshrl.u32 683565275, %v2941
  %v2943 = vshll.u32 683565275, %v2940
  %v2944 = vshrl.u32 2475754826, %v2941
  %v2945 = vor.u32 %v2943, %v2944
  %v2946 = vshll.u32 2475754826, %v2940
  %v2947 = vshrl.u32 2131351028, %v2941
  %v2948 = vor.u32 %v2946, %v2947
  %v2949 = vshll.u32 2131351028, %v2940
  %v2950 = vshrl.u32 2102212464, %v2941
  %v2951 = vor.u32 %v2949, %v2950
  %v2952 = vshll.u32 2102212464, %v2940
  %v2953 = vshrl.u32 920167782, %v2941
  %v2954 = vor.u32 %v2952, %v2953
  %v2955 = vshll.u32 920167782, %v2940
  %v2956 = vshrl.u32 1326507024, %v2941
  %v2957 = vor.u32 %v2955, %v2956
  %vm2958 = vcmp.lt.s32.totalorder %v2939, 1
  %vm2959 = vcmp.lt.s32.totalorder %v2939, 2
  %vm2960 = vcmp.lt.s32.totalorder %v2939, 3
  %vm2961 = vcmp.lt.s32.totalorder %v2939, 4
  %v2962 = vsel %vm2958, %v2942, %v2945
  %v2963 = vsel %vm2961, %v2951, 2102212464
  %v2964 = vsel %vm2960, %v2948, %v2963
  %v2965 = vsel %vm2959, %v2962, %v2964
  %v2966 = vsel %vm2958, %v2945, %v2948
  %v2967 = vsel %vm2961, %v2954, 920167782
  %v2968 = vsel %vm2960, %v2951, %v2967
  %v2969 = vsel %vm2959, %v2966, %v2968
  %v2970 = vsel %vm2958, %v2948, %v2951
  %v2971 = vsel %vm2961, %v2957, 1326507024
  %v2972 = vsel %vm2960, %v2954, %v2971
  %v2973 = vsel %vm2959, %v2970, %v2972
  %v2974 = vshll.u32 %v2934, 8
  %v2975 = vmul.u32.u64.compose %v2974, %v2973
  %v2976 = vextract.low.u32 %v2975
  %v2977 = vextract.high.u32 %v2975
  %v2978 = vmul.u32.u64.compose %v2974, %v2969
  %v2979 = vextract.low.u32 %v2978
  %v2980 = vextract.high.u32 %v2978
  %v2981 = vmul.u32 %v2974, %v2965
  %v2982 = vadd.s32 %v2977, %v2979
  %vm2983 = vc.u32 %v2977, %v2979
  %v2984 = vadd.s32 %v2980, 1
  %v2985 = vsel %vm2983, %v2984, %v2980
  %v2986 = vadd.s32 %v2981, %v2985
  %v2987 = vadd.s32 %v2986, 536870912
  %v2988 = vshrl.u32 %v2987, 30
  %v2989 = vshll.u32 %v2988, 30
  %v2990 = vsub.s32 %v2986, %v2989
  %vm2991 = vcmp.lt.s32.totalorder %v2990, 0
  %v2992 = vsub.s32 0, %v2990
  %v2993 = vsel %vm2991, %v2992, %v2990
  %v2994 = vclz %v2993
  %v2995 = vsub.s32 %v2994, 2
  %vm2996 = vcmp.gt.s32.totalorder 0, %v2995
  %v2997 = vsel %vm2996, 0, %v2995
  %v2998 = vsub.s32 32, %v2997
  %v2999 = vshll.u32 %v2990, %v2997
  %v3000 = vshrl.u32 %v2982, %v2998
  %v3001 = vor.u32 %v2999, %v3000
  %v3002 = vsub.s32 4294967266, %v2997
  %v3003 = vadd.s32 %v3002, 127
  %v3004 = vshll.u32 %v3003, 23
  %v3005 = vor.u32 4788187, %v3004
  %v3006 = vand.u32 2147483647, %v3005
  %v3008 = vcvt.s32.f32 %v3001
  %v3009 = vmul.f32 %v3008, %v3006
  %v3010 = vxor.u32 %v3009, 2147483648
  %v3011 = vsel %vm2928, %v3010, %v3009
  %v3012 = vsub.s32 4, %v2988
  %v3013 = vsel %vm2928, %v3012, %v2988
  %v3014 = vsel %vm2927, %v2611, %v3011
  %v3015 = vsel %vm2927, 0, %v3013
  %v3016 = vcosq.f32.pop %v3014
  %v3017 = vsinq.f32.pop %v3014
  %vm3018 = vweird.f32 %v2611
  %v3019 = vadd.s32 %v3015, 3
  %v3020 = vand.u32 %v3019, 3
  %vm3021 = vcmp.lt.s32.totalorder %v3020, 2
  %vm3022 = vcmp.eq.s32.totalorder %v3020, 0
  %v3023 = vxor.u32 %v3017, 2147483648
  %v3024 = vsel %vm3022, %v3016, %v3023
  %vm3025 = vcmp.eq.s32.totalorder %v3020, 2
  %v3026 = vxor.u32 %v3016, 2147483648
  %v3027 = vsel %vm3025, %v3026, %v3017
  %v3028 = vsel %vm3021, %v3024, %v3027
  %v3029 = vsel %vm3018, nan, %v3028
  %v3030 = vld [vmem:[%s15] sm:$0xff]
  %v3031 = vld [vmem:[%s15 + $0x8] sm:$0xff]
  %v3032 = vld [vmem:[%s15 + $0x10] sm:$0xff]
  %v3033 = vld [vmem:[%s15 + $0x18] sm:$0xff]
  %v3034 = vld [vmem:[%s16] sm:$0xff]
  %v3035 = vld [vmem:[%s16 + $0x8] sm:$0xff]
  %v3036 = vld [vmem:[%s16 + $0x10] sm:$0xff]
  %v3037 = vld [vmem:[%s16 + $0x18] sm:$0xff]
  %3039 = vset.pattern.permute.xlu0 0
  %3040 = vperm.xlu0 %3039, %v3034
  %v3041 = vpop.permute.xlu0 %3040
  %3044 = vset.pattern.permute.xlu0 0
  %3045 = vperm.xlu0 %3044, %v3035
  %v3046 = vpop.permute.xlu0 %3045
  %3049 = vset.pattern.permute.xlu0 0
  %3050 = vperm.xlu0 %3049, %v3036
  %v3051 = vpop.permute.xlu0 %3050
  %3054 = vset.pattern.permute.xlu0 0
  %3055 = vperm.xlu0 %3054, %v3037
  %v3056 = vpop.permute.xlu0 %3055
  %v3059 = vsel %vm344, %v3030, 0
  %v3062 = vsel %vm344, %v3031, 0
  %v3065 = vsel %vm344, %v3032, 0
  %v3068 = vsel %vm344, %v3033, 0
  %3070 = vmatprep.subr.mxu0 0.0
  %3071 = vmatpush1.msra.mxu0 %v2717
  %3072 = vmatprep.subr.mxu0 0.0
  %3073 = vmatpush1.msra.mxu0 %v2821
  %3074 = vmatprep.subr.mxu0 0.0
  %3075 = vmatpush1.msra.mxu0 %v2925
  %3076 = vmatprep.subr.mxu0 0.0
  %3077 = vmatpush1.msra.mxu0 %v3029
  %3078 = vmatprep.subr.mxu0 0.0
  %3079 = vmatpush1.msra.mxu0 0.0
  %3080 = vmatprep.subr.mxu0 0.0
  %3081 = vmatpush1.msra.mxu0 0.0
  %3082 = vmatprep.subr.mxu0 0.0
  %3083 = vmatpush1.msra.mxu0 0.0
  %3084 = vmatprep.subr.mxu0 0.0
  %3085 = vmatpush1.msra.mxu0 0.0
  %3086 = vmatprep.subr.mxu0 0.0
  %3087 = vmatpush1.msra.mxu0 0.0
  %3088 = vmatprep.subr.mxu0 0.0
  %3089 = vmatpush1.msra.mxu0 0.0
  %3090 = vmatprep.subr.mxu0 0.0
  %3091 = vmatpush1.msra.mxu0 0.0
  %3092 = vmatprep.subr.mxu0 0.0
  %3093 = vmatpush1.msra.mxu0 0.0
  %3094 = vmatprep.subr.mxu0 0.0
  %3095 = vmatpush1.msra.mxu0 0.0
  %3096 = vmatprep.subr.mxu0 0.0
  %3097 = vmatpush1.msra.mxu0 0.0
  %3098 = vmatprep.subr.mxu0 0.0
  %3099 = vmatpush1.msra.mxu0 0.0
  %3100 = vmatprep.subr.mxu0 0.0
  %3101 = vmatpush1.msra.mxu0 0.0
  %3102 = vmatprep.subr.mxu0 0.0
  %3103 = vmatpush1.msra.mxu0 0.0
  %3104 = vmatprep.subr.mxu0 0.0
  %3105 = vmatpush1.msra.mxu0 0.0
  %3106 = vmatprep.subr.mxu0 0.0
  %3107 = vmatpush1.msra.mxu0 0.0
  %3108 = vmatprep.subr.mxu0 0.0
  %3109 = vmatpush1.msra.mxu0 0.0
  %3110 = vmatprep.subr.mxu0 0.0
  %3111 = vmatpush1.msra.mxu0 0.0
  %3112 = vmatprep.subr.mxu0 0.0
  %3113 = vmatpush1.msra.mxu0 0.0
  %3114 = vmatprep.subr.mxu0 0.0
  %3115 = vmatpush1.msra.mxu0 0.0
  %3116 = vmatprep.subr.mxu0 0.0
  %3117 = vmatpush1.msra.mxu0 0.0
  %3118 = vmatprep.subr.mxu0 0.0
  %3119 = vmatpush1.msra.mxu0 0.0
  %3120 = vmatprep.subr.mxu0 0.0
  %3121 = vmatpush1.msra.mxu0 0.0
  %3122 = vmatprep.subr.mxu0 0.0
  %3123 = vmatpush1.msra.mxu0 0.0
  %3124 = vmatprep.subr.mxu0 0.0
  %3125 = vmatpush1.msra.mxu0 0.0
  %3126 = vmatprep.subr.mxu0 0.0
  %3127 = vmatpush1.msra.mxu0 0.0
  %3128 = vmatprep.subr.mxu0 0.0
  %3129 = vmatpush1.msra.mxu0 0.0
  %3130 = vmatprep.subr.mxu0 0.0
  %3131 = vmatpush1.msra.mxu0 0.0
  %3132 = vmatprep.subr.mxu0 0.0
  %3133 = vmatpush1.msra.mxu0 0.0
  %3134 = vmatprep.mubr.f32.mxu0 0.0
  %3135 = vmatmul.mubr.f32.gmra.mrb[0].mxu0 %v3059
  %v3136 = vpop.f32.mrb[0].mxu0
  %v3137 = vadd.f32 %v3041, %v3136
  %v3138 = vpop.f32.mrb[0].mxu0
  %3139 = vmatprep.mubr.f32.mxu0 0.0
  %3140 = vmatmul.mubr.f32.gmra.mrb[0].mxu0 %v3062
  %v3141 = vpop.f32.mrb[0].mxu0
  %v3142 = vadd.f32 %v3046, %v3141
  %v3143 = vpop.f32.mrb[0].mxu0
  %3144 = vmatprep.mubr.f32.mxu0 0.0
  %3145 = vmatmul.mubr.f32.gmra.mrb[0].mxu0 %v3065
  %v3146 = vpop.f32.mrb[0].mxu0
  %v3147 = vadd.f32 %v3051, %v3146
  %v3148 = vpop.f32.mrb[0].mxu0
  %3149 = vmatprep.mubr.f32.mxu0 0.0
  %3150 = vmatmul.mubr.f32.gmra.mrb[0].mxu0 %v3068
  %v3151 = vpop.f32.mrb[0].mxu0
  %v3152 = vadd.f32 %v3056, %v3151
  %v3153 = vpop.f32.mrb[0].mxu0
  %3154 = vdwg.mxu0
  %v3155 = vand.u32 2147483647, %v3137
  %vm3156 = vcmp.le.f32.partialorder %v3155, 0.7853982
  %vm3157 = vcmp.lt.s32.totalorder %v3137, 0
  %v3158 = vand.u32 %v3137, 2139095040
  %v3159 = vshrl.u32 %v3158, 23
  %v3160 = vsub.s32 %v3159, 127
  %v3161 = vand.u32 2147483647, %v3137
  %v3162 = vand.u32 %v3161, 8388607
  %v3163 = vor.u32 %v3162, 8388608
  %v3164 = vsub.s32 0, %v3163
  %v3165 = vadd.s32 %v3160, 1
  %vm3166 = vcmp.gt.s32.totalorder %v3165, 0
  %v3167 = vsel %vm3166, %v3165, 0
  %v3168 = vshrl.u32 %v3167, 5
  %v3169 = vand.u32 %v3167, 31
  %v3170 = vsub.s32 32, %v3169
  %v3171 = vshrl.u32 683565275, %v3170
  %v3172 = vshll.u32 683565275, %v3169
  %v3173 = vshrl.u32 2475754826, %v3170
  %v3174 = vor.u32 %v3172, %v3173
  %v3175 = vshll.u32 2475754826, %v3169
  %v3176 = vshrl.u32 2131351028, %v3170
  %v3177 = vor.u32 %v3175, %v3176
  %v3178 = vshll.u32 2131351028, %v3169
  %v3179 = vshrl.u32 2102212464, %v3170
  %v3180 = vor.u32 %v3178, %v3179
  %v3181 = vshll.u32 2102212464, %v3169
  %v3182 = vshrl.u32 920167782, %v3170
  %v3183 = vor.u32 %v3181, %v3182
  %v3184 = vshll.u32 920167782, %v3169
  %v3185 = vshrl.u32 1326507024, %v3170
  %v3186 = vor.u32 %v3184, %v3185
  %vm3187 = vcmp.lt.s32.totalorder %v3168, 1
  %vm3188 = vcmp.lt.s32.totalorder %v3168, 2
  %vm3189 = vcmp.lt.s32.totalorder %v3168, 3
  %vm3190 = vcmp.lt.s32.totalorder %v3168, 4
  %v3191 = vsel %vm3187, %v3171, %v3174
  %v3192 = vsel %vm3190, %v3180, 2102212464
  %v3193 = vsel %vm3189, %v3177, %v3192
  %v3194 = vsel %vm3188, %v3191, %v3193
  %v3195 = vsel %vm3187, %v3174, %v3177
  %v3196 = vsel %vm3190, %v3183, 920167782
  %v3197 = vsel %vm3189, %v3180, %v3196
  %v3198 = vsel %vm3188, %v3195, %v3197
  %v3199 = vsel %vm3187, %v3177, %v3180
  %v3200 = vsel %vm3190, %v3186, 1326507024
  %v3201 = vsel %vm3189, %v3183, %v3200
  %v3202 = vsel %vm3188, %v3199, %v3201
  %v3203 = vshll.u32 %v3163, 8
  %v3204 = vmul.u32.u64.compose %v3203, %v3202
  %v3205 = vextract.low.u32 %v3204
  %v3206 = vextract.high.u32 %v3204
  %v3207 = vmul.u32.u64.compose %v3203, %v3198
  %v3208 = vextract.low.u32 %v3207
  %v3209 = vextract.high.u32 %v3207
  %v3210 = vmul.u32 %v3203, %v3194
  %v3211 = vadd.s32 %v3206, %v3208
  %vm3212 = vc.u32 %v3206, %v3208
  %v3213 = vadd.s32 %v3209, 1
  %v3214 = vsel %vm3212, %v3213, %v3209
  %v3215 = vadd.s32 %v3210, %v3214
  %v3216 = vadd.s32 %v3215, 536870912
  %v3217 = vshrl.u32 %v3216, 30
  %v3218 = vshll.u32 %v3217, 30
  %v3219 = vsub.s32 %v3215, %v3218
  %vm3220 = vcmp.lt.s32.totalorder %v3219, 0
  %v3221 = vsub.s32 0, %v3219
  %v3222 = vsel %vm3220, %v3221, %v3219
  %v3223 = vclz %v3222
  %v3224 = vsub.s32 %v3223, 2
  %vm3225 = vcmp.gt.s32.totalorder 0, %v3224
  %v3226 = vsel %vm3225, 0, %v3224
  %v3227 = vsub.s32 32, %v3226
  %v3228 = vshll.u32 %v3219, %v3226
  %v3229 = vshrl.u32 %v3211, %v3227
  %v3230 = vor.u32 %v3228, %v3229
  %v3231 = vsub.s32 4294967266, %v3226
  %v3232 = vadd.s32 %v3231, 127
  %v3233 = vshll.u32 %v3232, 23
  %v3234 = vor.u32 4788187, %v3233
  %v3235 = vand.u32 2147483647, %v3234
  %v3237 = vcvt.s32.f32 %v3230
  %v3238 = vmul.f32 %v3237, %v3235
  %v3239 = vxor.u32 %v3238, 2147483648
  %v3240 = vsel %vm3157, %v3239, %v3238
  %v3241 = vsub.s32 4, %v3217
  %v3242 = vsel %vm3157, %v3241, %v3217
  %v3243 = vsel %vm3156, %v3137, %v3240
  %v3244 = vsel %vm3156, 0, %v3242
  %v3245 = vcosq.f32.pop %v3243
  %v3246 = vsinq.f32.pop %v3243
  %vm3247 = vweird.f32 %v3137
  %v3248 = vadd.s32 %v3244, 3
  %v3249 = vand.u32 %v3248, 3
  %vm3250 = vcmp.lt.s32.totalorder %v3249, 2
  %vm3251 = vcmp.eq.s32.totalorder %v3249, 0
  %v3252 = vxor.u32 %v3246, 2147483648
  %v3253 = vsel %vm3251, %v3245, %v3252
  %vm3254 = vcmp.eq.s32.totalorder %v3249, 2
  %v3255 = vxor.u32 %v3245, 2147483648
  %v3256 = vsel %vm3254, %v3255, %v3246
  %v3257 = vsel %vm3250, %v3253, %v3256
  %v3258 = vsel %vm3247, nan, %v3257
  %v3259 = vand.u32 2147483647, %v3142
  %vm3260 = vcmp.le.f32.partialorder %v3259, 0.7853982
  %vm3261 = vcmp.lt.s32.totalorder %v3142, 0
  %v3262 = vand.u32 %v3142, 2139095040
  %v3263 = vshrl.u32 %v3262, 23
  %v3264 = vsub.s32 %v3263, 127
  %v3265 = vand.u32 2147483647, %v3142
  %v3266 = vand.u32 %v3265, 8388607
  %v3267 = vor.u32 %v3266, 8388608
  %v3268 = vsub.s32 0, %v3267
  %v3269 = vadd.s32 %v3264, 1
  %vm3270 = vcmp.gt.s32.totalorder %v3269, 0
  %v3271 = vsel %vm3270, %v3269, 0
  %v3272 = vshrl.u32 %v3271, 5
  %v3273 = vand.u32 %v3271, 31
  %v3274 = vsub.s32 32, %v3273
  %v3275 = vshrl.u32 683565275, %v3274
  %v3276 = vshll.u32 683565275, %v3273
  %v3277 = vshrl.u32 2475754826, %v3274
  %v3278 = vor.u32 %v3276, %v3277
  %v3279 = vshll.u32 2475754826, %v3273
  %v3280 = vshrl.u32 2131351028, %v3274
  %v3281 = vor.u32 %v3279, %v3280
  %v3282 = vshll.u32 2131351028, %v3273
  %v3283 = vshrl.u32 2102212464, %v3274
  %v3284 = vor.u32 %v3282, %v3283
  %v3285 = vshll.u32 2102212464, %v3273
  %v3286 = vshrl.u32 920167782, %v3274
  %v3287 = vor.u32 %v3285, %v3286
  %v3288 = vshll.u32 920167782, %v3273
  %v3289 = vshrl.u32 1326507024, %v3274
  %v3290 = vor.u32 %v3288, %v3289
  %vm3291 = vcmp.lt.s32.totalorder %v3272, 1
  %vm3292 = vcmp.lt.s32.totalorder %v3272, 2
  %vm3293 = vcmp.lt.s32.totalorder %v3272, 3
  %vm3294 = vcmp.lt.s32.totalorder %v3272, 4
  %v3295 = vsel %vm3291, %v3275, %v3278
  %v3296 = vsel %vm3294, %v3284, 2102212464
  %v3297 = vsel %vm3293, %v3281, %v3296
  %v3298 = vsel %vm3292, %v3295, %v3297
  %v3299 = vsel %vm3291, %v3278, %v3281
  %v3300 = vsel %vm3294, %v3287, 920167782
  %v3301 = vsel %vm3293, %v3284, %v3300
  %v3302 = vsel %vm3292, %v3299, %v3301
  %v3303 = vsel %vm3291, %v3281, %v3284
  %v3304 = vsel %vm3294, %v3290, 1326507024
  %v3305 = vsel %vm3293, %v3287, %v3304
  %v3306 = vsel %vm3292, %v3303, %v3305
  %v3307 = vshll.u32 %v3267, 8
  %v3308 = vmul.u32.u64.compose %v3307, %v3306
  %v3309 = vextract.low.u32 %v3308
  %v3310 = vextract.high.u32 %v3308
  %v3311 = vmul.u32.u64.compose %v3307, %v3302
  %v3312 = vextract.low.u32 %v3311
  %v3313 = vextract.high.u32 %v3311
  %v3314 = vmul.u32 %v3307, %v3298
  %v3315 = vadd.s32 %v3310, %v3312
  %vm3316 = vc.u32 %v3310, %v3312
  %v3317 = vadd.s32 %v3313, 1
  %v3318 = vsel %vm3316, %v3317, %v3313
  %v3319 = vadd.s32 %v3314, %v3318
  %v3320 = vadd.s32 %v3319, 536870912
  %v3321 = vshrl.u32 %v3320, 30
  %v3322 = vshll.u32 %v3321, 30
  %v3323 = vsub.s32 %v3319, %v3322
  %vm3324 = vcmp.lt.s32.totalorder %v3323, 0
  %v3325 = vsub.s32 0, %v3323
  %v3326 = vsel %vm3324, %v3325, %v3323
  %v3327 = vclz %v3326
  %v3328 = vsub.s32 %v3327, 2
  %vm3329 = vcmp.gt.s32.totalorder 0, %v3328
  %v3330 = vsel %vm3329, 0, %v3328
  %v3331 = vsub.s32 32, %v3330
  %v3332 = vshll.u32 %v3323, %v3330
  %v3333 = vshrl.u32 %v3315, %v3331
  %v3334 = vor.u32 %v3332, %v3333
  %v3335 = vsub.s32 4294967266, %v3330
  %v3336 = vadd.s32 %v3335, 127
  %v3337 = vshll.u32 %v3336, 23
  %v3338 = vor.u32 4788187, %v3337
  %v3339 = vand.u32 2147483647, %v3338
  %v3341 = vcvt.s32.f32 %v3334
  %v3342 = vmul.f32 %v3341, %v3339
  %v3343 = vxor.u32 %v3342, 2147483648
  %v3344 = vsel %vm3261, %v3343, %v3342
  %v3345 = vsub.s32 4, %v3321
  %v3346 = vsel %vm3261, %v3345, %v3321
  %v3347 = vsel %vm3260, %v3142, %v3344
  %v3348 = vsel %vm3260, 0, %v3346
  %v3349 = vcosq.f32.pop %v3347
  %v3350 = vsinq.f32.pop %v3347
  %vm3351 = vweird.f32 %v3142
  %v3352 = vadd.s32 %v3348, 3
  %v3353 = vand.u32 %v3352, 3
  %vm3354 = vcmp.lt.s32.totalorder %v3353, 2
  %vm3355 = vcmp.eq.s32.totalorder %v3353, 0
  %v3356 = vxor.u32 %v3350, 2147483648
  %v3357 = vsel %vm3355, %v3349, %v3356
  %vm3358 = vcmp.eq.s32.totalorder %v3353, 2
  %v3359 = vxor.u32 %v3349, 2147483648
  %v3360 = vsel %vm3358, %v3359, %v3350
  %v3361 = vsel %vm3354, %v3357, %v3360
  %v3362 = vsel %vm3351, nan, %v3361
  %v3363 = vand.u32 2147483647, %v3147
  %vm3364 = vcmp.le.f32.partialorder %v3363, 0.7853982
  %vm3365 = vcmp.lt.s32.totalorder %v3147, 0
  %v3366 = vand.u32 %v3147, 2139095040
  %v3367 = vshrl.u32 %v3366, 23
  %v3368 = vsub.s32 %v3367, 127
  %v3369 = vand.u32 2147483647, %v3147
  %v3370 = vand.u32 %v3369, 8388607
  %v3371 = vor.u32 %v3370, 8388608
  %v3372 = vsub.s32 0, %v3371
  %v3373 = vadd.s32 %v3368, 1
  %vm3374 = vcmp.gt.s32.totalorder %v3373, 0
  %v3375 = vsel %vm3374, %v3373, 0
  %v3376 = vshrl.u32 %v3375, 5
  %v3377 = vand.u32 %v3375, 31
  %v3378 = vsub.s32 32, %v3377
  %v3379 = vshrl.u32 683565275, %v3378
  %v3380 = vshll.u32 683565275, %v3377
  %v3381 = vshrl.u32 2475754826, %v3378
  %v3382 = vor.u32 %v3380, %v3381
  %v3383 = vshll.u32 2475754826, %v3377
  %v3384 = vshrl.u32 2131351028, %v3378
  %v3385 = vor.u32 %v3383, %v3384
  %v3386 = vshll.u32 2131351028, %v3377
  %v3387 = vshrl.u32 2102212464, %v3378
  %v3388 = vor.u32 %v3386, %v3387
  %v3389 = vshll.u32 2102212464, %v3377
  %v3390 = vshrl.u32 920167782, %v3378
  %v3391 = vor.u32 %v3389, %v3390
  %v3392 = vshll.u32 920167782, %v3377
  %v3393 = vshrl.u32 1326507024, %v3378
  %v3394 = vor.u32 %v3392, %v3393
  %vm3395 = vcmp.lt.s32.totalorder %v3376, 1
  %vm3396 = vcmp.lt.s32.totalorder %v3376, 2
  %vm3397 = vcmp.lt.s32.totalorder %v3376, 3
  %vm3398 = vcmp.lt.s32.totalorder %v3376, 4
  %v3399 = vsel %vm3395, %v3379, %v3382
  %v3400 = vsel %vm3398, %v3388, 2102212464
  %v3401 = vsel %vm3397, %v3385, %v3400
  %v3402 = vsel %vm3396, %v3399, %v3401
  %v3403 = vsel %vm3395, %v3382, %v3385
  %v3404 = vsel %vm3398, %v3391, 920167782
  %v3405 = vsel %vm3397, %v3388, %v3404
  %v3406 = vsel %vm3396, %v3403, %v3405
  %v3407 = vsel %vm3395, %v3385, %v3388
  %v3408 = vsel %vm3398, %v3394, 1326507024
  %v3409 = vsel %vm3397, %v3391, %v3408
  %v3410 = vsel %vm3396, %v3407, %v3409
  %v3411 = vshll.u32 %v3371, 8
  %v3412 = vmul.u32.u64.compose %v3411, %v3410
  %v3413 = vextract.low.u32 %v3412
  %v3414 = vextract.high.u32 %v3412
  %v3415 = vmul.u32.u64.compose %v3411, %v3406
  %v3416 = vextract.low.u32 %v3415
  %v3417 = vextract.high.u32 %v3415
  %v3418 = vmul.u32 %v3411, %v3402
  %v3419 = vadd.s32 %v3414, %v3416
  %vm3420 = vc.u32 %v3414, %v3416
  %v3421 = vadd.s32 %v3417, 1
  %v3422 = vsel %vm3420, %v3421, %v3417
  %v3423 = vadd.s32 %v3418, %v3422
  %v3424 = vadd.s32 %v3423, 536870912
  %v3425 = vshrl.u32 %v3424, 30
  %v3426 = vshll.u32 %v3425, 30
  %v3427 = vsub.s32 %v3423, %v3426
  %vm3428 = vcmp.lt.s32.totalorder %v3427, 0
  %v3429 = vsub.s32 0, %v3427
  %v3430 = vsel %vm3428, %v3429, %v3427
  %v3431 = vclz %v3430
  %v3432 = vsub.s32 %v3431, 2
  %vm3433 = vcmp.gt.s32.totalorder 0, %v3432
  %v3434 = vsel %vm3433, 0, %v3432
  %v3435 = vsub.s32 32, %v3434
  %v3436 = vshll.u32 %v3427, %v3434
  %v3437 = vshrl.u32 %v3419, %v3435
  %v3438 = vor.u32 %v3436, %v3437
  %v3439 = vsub.s32 4294967266, %v3434
  %v3440 = vadd.s32 %v3439, 127
  %v3441 = vshll.u32 %v3440, 23
  %v3442 = vor.u32 4788187, %v3441
  %v3443 = vand.u32 2147483647, %v3442
  %v3445 = vcvt.s32.f32 %v3438
  %v3446 = vmul.f32 %v3445, %v3443
  %v3447 = vxor.u32 %v3446, 2147483648
  %v3448 = vsel %vm3365, %v3447, %v3446
  %v3449 = vsub.s32 4, %v3425
  %v3450 = vsel %vm3365, %v3449, %v3425
  %v3451 = vsel %vm3364, %v3147, %v3448
  %v3452 = vsel %vm3364, 0, %v3450
  %v3453 = vcosq.f32.pop %v3451
  %v3454 = vsinq.f32.pop %v3451
  %vm3455 = vweird.f32 %v3147
  %v3456 = vadd.s32 %v3452, 3
  %v3457 = vand.u32 %v3456, 3
  %vm3458 = vcmp.lt.s32.totalorder %v3457, 2
  %vm3459 = vcmp.eq.s32.totalorder %v3457, 0
  %v3460 = vxor.u32 %v3454, 2147483648
  %v3461 = vsel %vm3459, %v3453, %v3460
  %vm3462 = vcmp.eq.s32.totalorder %v3457, 2
  %v3463 = vxor.u32 %v3453, 2147483648
  %v3464 = vsel %vm3462, %v3463, %v3454
  %v3465 = vsel %vm3458, %v3461, %v3464
  %v3466 = vsel %vm3455, nan, %v3465
  %v3467 = vand.u32 2147483647, %v3152
  %vm3468 = vcmp.le.f32.partialorder %v3467, 0.7853982
  %vm3469 = vcmp.lt.s32.totalorder %v3152, 0
  %v3470 = vand.u32 %v3152, 2139095040
  %v3471 = vshrl.u32 %v3470, 23
  %v3472 = vsub.s32 %v3471, 127
  %v3473 = vand.u32 2147483647, %v3152
  %v3474 = vand.u32 %v3473, 8388607
  %v3475 = vor.u32 %v3474, 8388608
  %v3476 = vsub.s32 0, %v3475
  %v3477 = vadd.s32 %v3472, 1
  %vm3478 = vcmp.gt.s32.totalorder %v3477, 0
  %v3479 = vsel %vm3478, %v3477, 0
  %v3480 = vshrl.u32 %v3479, 5
  %v3481 = vand.u32 %v3479, 31
  %v3482 = vsub.s32 32, %v3481
  %v3483 = vshrl.u32 683565275, %v3482
  %v3484 = vshll.u32 683565275, %v3481
  %v3485 = vshrl.u32 2475754826, %v3482
  %v3486 = vor.u32 %v3484, %v3485
  %v3487 = vshll.u32 2475754826, %v3481
  %v3488 = vshrl.u32 2131351028, %v3482
  %v3489 = vor.u32 %v3487, %v3488
  %v3490 = vshll.u32 2131351028, %v3481
  %v3491 = vshrl.u32 2102212464, %v3482
  %v3492 = vor.u32 %v3490, %v3491
  %v3493 = vshll.u32 2102212464, %v3481
  %v3494 = vshrl.u32 920167782, %v3482
  %v3495 = vor.u32 %v3493, %v3494
  %v3496 = vshll.u32 920167782, %v3481
  %v3497 = vshrl.u32 1326507024, %v3482
  %v3498 = vor.u32 %v3496, %v3497
  %vm3499 = vcmp.lt.s32.totalorder %v3480, 1
  %vm3500 = vcmp.lt.s32.totalorder %v3480, 2
  %vm3501 = vcmp.lt.s32.totalorder %v3480, 3
  %vm3502 = vcmp.lt.s32.totalorder %v3480, 4
  %v3503 = vsel %vm3499, %v3483, %v3486
  %v3504 = vsel %vm3502, %v3492, 2102212464
  %v3505 = vsel %vm3501, %v3489, %v3504
  %v3506 = vsel %vm3500, %v3503, %v3505
  %v3507 = vsel %vm3499, %v3486, %v3489
  %v3508 = vsel %vm3502, %v3495, 920167782
  %v3509 = vsel %vm3501, %v3492, %v3508
  %v3510 = vsel %vm3500, %v3507, %v3509
  %v3511 = vsel %vm3499, %v3489, %v3492
  %v3512 = vsel %vm3502, %v3498, 1326507024
  %v3513 = vsel %vm3501, %v3495, %v3512
  %v3514 = vsel %vm3500, %v3511, %v3513
  %v3515 = vshll.u32 %v3475, 8
  %v3516 = vmul.u32.u64.compose %v3515, %v3514
  %v3517 = vextract.low.u32 %v3516
  %v3518 = vextract.high.u32 %v3516
  %v3519 = vmul.u32.u64.compose %v3515, %v3510
  %v3520 = vextract.low.u32 %v3519
  %v3521 = vextract.high.u32 %v3519
  %v3522 = vmul.u32 %v3515, %v3506
  %v3523 = vadd.s32 %v3518, %v3520
  %vm3524 = vc.u32 %v3518, %v3520
  %v3525 = vadd.s32 %v3521, 1
  %v3526 = vsel %vm3524, %v3525, %v3521
  %v3527 = vadd.s32 %v3522, %v3526
  %v3528 = vadd.s32 %v3527, 536870912
  %v3529 = vshrl.u32 %v3528, 30
  %v3530 = vshll.u32 %v3529, 30
  %v3531 = vsub.s32 %v3527, %v3530
  %vm3532 = vcmp.lt.s32.totalorder %v3531, 0
  %v3533 = vsub.s32 0, %v3531
  %v3534 = vsel %vm3532, %v3533, %v3531
  %v3535 = vclz %v3534
  %v3536 = vsub.s32 %v3535, 2
  %vm3537 = vcmp.gt.s32.totalorder 0, %v3536
  %v3538 = vsel %vm3537, 0, %v3536
  %v3539 = vsub.s32 32, %v3538
  %v3540 = vshll.u32 %v3531, %v3538
  %v3541 = vshrl.u32 %v3523, %v3539
  %v3542 = vor.u32 %v3540, %v3541
  %v3543 = vsub.s32 4294967266, %v3538
  %v3544 = vadd.s32 %v3543, 127
  %v3545 = vshll.u32 %v3544, 23
  %v3546 = vor.u32 4788187, %v3545
  %v3547 = vand.u32 2147483647, %v3546
  %v3549 = vcvt.s32.f32 %v3542
  %v3550 = vmul.f32 %v3549, %v3547
  %v3551 = vxor.u32 %v3550, 2147483648
  %v3552 = vsel %vm3469, %v3551, %v3550
  %v3553 = vsub.s32 4, %v3529
  %v3554 = vsel %vm3469, %v3553, %v3529
  %v3555 = vsel %vm3468, %v3152, %v3552
  %v3556 = vsel %vm3468, 0, %v3554
  %v3557 = vcosq.f32.pop %v3555
  %v3558 = vsinq.f32.pop %v3555
  %vm3559 = vweird.f32 %v3152
  %v3560 = vadd.s32 %v3556, 3
  %v3561 = vand.u32 %v3560, 3
  %vm3562 = vcmp.lt.s32.totalorder %v3561, 2
  %vm3563 = vcmp.eq.s32.totalorder %v3561, 0
  %v3564 = vxor.u32 %v3558, 2147483648
  %v3565 = vsel %vm3563, %v3557, %v3564
  %vm3566 = vcmp.eq.s32.totalorder %v3561, 2
  %v3567 = vxor.u32 %v3557, 2147483648
  %v3568 = vsel %vm3566, %v3567, %v3558
  %v3569 = vsel %vm3562, %v3565, %v3568
  %v3570 = vsel %vm3559, nan, %v3569
  %v3571 = vadd.f32 %v2485, %v3258
  %v3572 = vadd.f32 %v2486, %v3362
  %v3573 = vadd.f32 %v2487, %v3466
  %v3574 = vadd.f32 %v2488, %v3570
  %v3575 = vld [vmem:[%s17] sm:$0xff]
  %v3576 = vld [vmem:[%s17 + $0x8] sm:$0xff]
  %v3577 = vld [vmem:[%s17 + $0x10] sm:$0xff]
  %v3578 = vld [vmem:[%s17 + $0x18] sm:$0xff]
  %v3579 = vld [vmem:[%s18] sm:$0xff]
  %v3580 = vld [vmem:[%s18 + $0x8] sm:$0xff]
  %v3581 = vld [vmem:[%s18 + $0x10] sm:$0xff]
  %v3582 = vld [vmem:[%s18 + $0x18] sm:$0xff]
  %3584 = vset.pattern.permute.xlu0 0
  %3585 = vperm.xlu0 %3584, %v3579
  %v3586 = vpop.permute.xlu0 %3585
  %3589 = vset.pattern.permute.xlu0 0
  %3590 = vperm.xlu0 %3589, %v3580
  %v3591 = vpop.permute.xlu0 %3590
  %3594 = vset.pattern.permute.xlu0 0
  %3595 = vperm.xlu0 %3594, %v3581
  %v3596 = vpop.permute.xlu0 %3595
  %3599 = vset.pattern.permute.xlu0 0
  %3600 = vperm.xlu0 %3599, %v3582
  %v3601 = vpop.permute.xlu0 %3600
  %v3604 = vsel %vm344, %v3575, 0
  %v3607 = vsel %vm344, %v3576, 0
  %v3610 = vsel %vm344, %v3577, 0
  %v3613 = vsel %vm344, %v3578, 0
  %3615 = vmatprep.subr.mxu0 0.0
  %3616 = vmatpush1.msra.mxu0 %v3571
  %3617 = vmatprep.subr.mxu0 0.0
  %3618 = vmatpush1.msra.mxu0 %v3572
  %3619 = vmatprep.subr.mxu0 0.0
  %3620 = vmatpush1.msra.mxu0 %v3573
  %3621 = vmatprep.subr.mxu0 0.0
  %3622 = vmatpush1.msra.mxu0 %v3574
  %3623 = vmatprep.subr.mxu0 0.0
  %3624 = vmatpush1.msra.mxu0 0.0
  %3625 = vmatprep.subr.mxu0 0.0
  %3626 = vmatpush1.msra.mxu0 0.0
  %3627 = vmatprep.subr.mxu0 0.0
  %3628 = vmatpush1.msra.mxu0 0.0
  %3629 = vmatprep.subr.mxu0 0.0
  %3630 = vmatpush1.msra.mxu0 0.0
  %3631 = vmatprep.subr.mxu0 0.0
  %3632 = vmatpush1.msra.mxu0 0.0
  %3633 = vmatprep.subr.mxu0 0.0
  %3634 = vmatpush1.msra.mxu0 0.0
  %3635 = vmatprep.subr.mxu0 0.0
  %3636 = vmatpush1.msra.mxu0 0.0
  %3637 = vmatprep.subr.mxu0 0.0
  %3638 = vmatpush1.msra.mxu0 0.0
  %3639 = vmatprep.subr.mxu0 0.0
  %3640 = vmatpush1.msra.mxu0 0.0
  %3641 = vmatprep.subr.mxu0 0.0
  %3642 = vmatpush1.msra.mxu0 0.0
  %3643 = vmatprep.subr.mxu0 0.0
  %3644 = vmatpush1.msra.mxu0 0.0
  %3645 = vmatprep.subr.mxu0 0.0
  %3646 = vmatpush1.msra.mxu0 0.0
  %3647 = vmatprep.subr.mxu0 0.0
  %3648 = vmatpush1.msra.mxu0 0.0
  %3649 = vmatprep.subr.mxu0 0.0
  %3650 = vmatpush1.msra.mxu0 0.0
  %3651 = vmatprep.subr.mxu0 0.0
  %3652 = vmatpush1.msra.mxu0 0.0
  %3653 = vmatprep.subr.mxu0 0.0
  %3654 = vmatpush1.msra.mxu0 0.0
  %3655 = vmatprep.subr.mxu0 0.0
  %3656 = vmatpush1.msra.mxu0 0.0
  %3657 = vmatprep.subr.mxu0 0.0
  %3658 = vmatpush1.msra.mxu0 0.0
  %3659 = vmatprep.subr.mxu0 0.0
  %3660 = vmatpush1.msra.mxu0 0.0
  %3661 = vmatprep.subr.mxu0 0.0
  %3662 = vmatpush1.msra.mxu0 0.0
  %3663 = vmatprep.subr.mxu0 0.0
  %3664 = vmatpush1.msra.mxu0 0.0
  %3665 = vmatprep.subr.mxu0 0.0
  %3666 = vmatpush1.msra.mxu0 0.0
  %3667 = vmatprep.subr.mxu0 0.0
  %3668 = vmatpush1.msra.mxu0 0.0
  %3669 = vmatprep.subr.mxu0 0.0
  %3670 = vmatpush1.msra.mxu0 0.0
  %3671 = vmatprep.subr.mxu0 0.0
  %3672 = vmatpush1.msra.mxu0 0.0
  %3673 = vmatprep.subr.mxu0 0.0
  %3674 = vmatpush1.msra.mxu0 0.0
  %3675 = vmatprep.subr.mxu0 0.0
  %3676 = vmatpush1.msra.mxu0 0.0
  %3677 = vmatprep.subr.mxu0 0.0
  %3678 = vmatpush1.msra.mxu0 0.0
  %3679 = vmatprep.mubr.f32.mxu0 0.0
  %3680 = vmatmul.mubr.f32.gmra.mrb[0].mxu0 %v3604
  %v3681 = vpop.f32.mrb[0].mxu0
  %v3682 = vadd.f32 %v3586, %v3681
  %v3683 = vpop.f32.mrb[0].mxu0
  %3684 = vmatprep.mubr.f32.mxu0 0.0
  %3685 = vmatmul.mubr.f32.gmra.mrb[0].mxu0 %v3607
  %v3686 = vpop.f32.mrb[0].mxu0
  %v3687 = vadd.f32 %v3591, %v3686
  %v3688 = vpop.f32.mrb[0].mxu0
  %3689 = vmatprep.mubr.f32.mxu0 0.0
  %3690 = vmatmul.mubr.f32.gmra.mrb[0].mxu0 %v3610
  %v3691 = vpop.f32.mrb[0].mxu0
  %v3692 = vadd.f32 %v3596, %v3691
  %v3693 = vpop.f32.mrb[0].mxu0
  %3694 = vmatprep.mubr.f32.mxu0 0.0
  %3695 = vmatmul.mubr.f32.gmra.mrb[0].mxu0 %v3613
  %v3696 = vpop.f32.mrb[0].mxu0
  %v3697 = vadd.f32 %v3601, %v3696
  %v3698 = vpop.f32.mrb[0].mxu0
  %3699 = vdwg.mxu0
  %v3700 = vand.u32 2147483647, %v3682
  %vm3701 = vcmp.le.f32.partialorder %v3700, 0.7853982
  %vm3702 = vcmp.lt.s32.totalorder %v3682, 0
  %v3703 = vand.u32 %v3682, 2139095040
  %v3704 = vshrl.u32 %v3703, 23
  %v3705 = vsub.s32 %v3704, 127
  %v3706 = vand.u32 2147483647, %v3682
  %v3707 = vand.u32 %v3706, 8388607
  %v3708 = vor.u32 %v3707, 8388608
  %v3709 = vsub.s32 0, %v3708
  %v3710 = vadd.s32 %v3705, 1
  %vm3711 = vcmp.gt.s32.totalorder %v3710, 0
  %v3712 = vsel %vm3711, %v3710, 0
  %v3713 = vshrl.u32 %v3712, 5
  %v3714 = vand.u32 %v3712, 31
  %v3715 = vsub.s32 32, %v3714
  %v3716 = vshrl.u32 683565275, %v3715
  %v3717 = vshll.u32 683565275, %v3714
  %v3718 = vshrl.u32 2475754826, %v3715
  %v3719 = vor.u32 %v3717, %v3718
  %v3720 = vshll.u32 2475754826, %v3714
  %v3721 = vshrl.u32 2131351028, %v3715
  %v3722 = vor.u32 %v3720, %v3721
  %v3723 = vshll.u32 2131351028, %v3714
  %v3724 = vshrl.u32 2102212464, %v3715
  %v3725 = vor.u32 %v3723, %v3724
  %v3726 = vshll.u32 2102212464, %v3714
  %v3727 = vshrl.u32 920167782, %v3715
  %v3728 = vor.u32 %v3726, %v3727
  %v3729 = vshll.u32 920167782, %v3714
  %v3730 = vshrl.u32 1326507024, %v3715
  %v3731 = vor.u32 %v3729, %v3730
  %vm3732 = vcmp.lt.s32.totalorder %v3713, 1
  %vm3733 = vcmp.lt.s32.totalorder %v3713, 2
  %vm3734 = vcmp.lt.s32.totalorder %v3713, 3
  %vm3735 = vcmp.lt.s32.totalorder %v3713, 4
  %v3736 = vsel %vm3732, %v3716, %v3719
  %v3737 = vsel %vm3735, %v3725, 2102212464
  %v3738 = vsel %vm3734, %v3722, %v3737
  %v3739 = vsel %vm3733, %v3736, %v3738
  %v3740 = vsel %vm3732, %v3719, %v3722
  %v3741 = vsel %vm3735, %v3728, 920167782
  %v3742 = vsel %vm3734, %v3725, %v3741
  %v3743 = vsel %vm3733, %v3740, %v3742
  %v3744 = vsel %vm3732, %v3722, %v3725
  %v3745 = vsel %vm3735, %v3731, 1326507024
  %v3746 = vsel %vm3734, %v3728, %v3745
  %v3747 = vsel %vm3733, %v3744, %v3746
  %v3748 = vshll.u32 %v3708, 8
  %v3749 = vmul.u32.u64.compose %v3748, %v3747
  %v3750 = vextract.low.u32 %v3749
  %v3751 = vextract.high.u32 %v3749
  %v3752 = vmul.u32.u64.compose %v3748, %v3743
  %v3753 = vextract.low.u32 %v3752
  %v3754 = vextract.high.u32 %v3752
  %v3755 = vmul.u32 %v3748, %v3739
  %v3756 = vadd.s32 %v3751, %v3753
  %vm3757 = vc.u32 %v3751, %v3753
  %v3758 = vadd.s32 %v3754, 1
  %v3759 = vsel %vm3757, %v3758, %v3754
  %v3760 = vadd.s32 %v3755, %v3759
  %v3761 = vadd.s32 %v3760, 536870912
  %v3762 = vshrl.u32 %v3761, 30
  %v3763 = vshll.u32 %v3762, 30
  %v3764 = vsub.s32 %v3760, %v3763
  %vm3765 = vcmp.lt.s32.totalorder %v3764, 0
  %v3766 = vsub.s32 0, %v3764
  %v3767 = vsel %vm3765, %v3766, %v3764
  %v3768 = vclz %v3767
  %v3769 = vsub.s32 %v3768, 2
  %vm3770 = vcmp.gt.s32.totalorder 0, %v3769
  %v3771 = vsel %vm3770, 0, %v3769
  %v3772 = vsub.s32 32, %v3771
  %v3773 = vshll.u32 %v3764, %v3771
  %v3774 = vshrl.u32 %v3756, %v3772
  %v3775 = vor.u32 %v3773, %v3774
  %v3776 = vsub.s32 4294967266, %v3771
  %v3777 = vadd.s32 %v3776, 127
  %v3778 = vshll.u32 %v3777, 23
  %v3779 = vor.u32 4788187, %v3778
  %v3780 = vand.u32 2147483647, %v3779
  %v3782 = vcvt.s32.f32 %v3775
  %v3783 = vmul.f32 %v3782, %v3780
  %v3784 = vxor.u32 %v3783, 2147483648
  %v3785 = vsel %vm3702, %v3784, %v3783
  %v3786 = vsub.s32 4, %v3762
  %v3787 = vsel %vm3702, %v3786, %v3762
  %v3788 = vsel %vm3701, %v3682, %v3785
  %v3789 = vsel %vm3701, 0, %v3787
  %v3790 = vcosq.f32.pop %v3788
  %v3791 = vsinq.f32.pop %v3788
  %vm3792 = vweird.f32 %v3682
  %v3793 = vadd.s32 %v3789, 3
  %v3794 = vand.u32 %v3793, 3
  %vm3795 = vcmp.lt.s32.totalorder %v3794, 2
  %vm3796 = vcmp.eq.s32.totalorder %v3794, 0
  %v3797 = vxor.u32 %v3791, 2147483648
  %v3798 = vsel %vm3796, %v3790, %v3797
  %vm3799 = vcmp.eq.s32.totalorder %v3794, 2
  %v3800 = vxor.u32 %v3790, 2147483648
  %v3801 = vsel %vm3799, %v3800, %v3791
  %v3802 = vsel %vm3795, %v3798, %v3801
  %v3803 = vsel %vm3792, nan, %v3802
  %v3804 = vand.u32 2147483647, %v3687
  %vm3805 = vcmp.le.f32.partialorder %v3804, 0.7853982
  %vm3806 = vcmp.lt.s32.totalorder %v3687, 0
  %v3807 = vand.u32 %v3687, 2139095040
  %v3808 = vshrl.u32 %v3807, 23
  %v3809 = vsub.s32 %v3808, 127
  %v3810 = vand.u32 2147483647, %v3687
  %v3811 = vand.u32 %v3810, 8388607
  %v3812 = vor.u32 %v3811, 8388608
  %v3813 = vsub.s32 0, %v3812
  %v3814 = vadd.s32 %v3809, 1
  %vm3815 = vcmp.gt.s32.totalorder %v3814, 0
  %v3816 = vsel %vm3815, %v3814, 0
  %v3817 = vshrl.u32 %v3816, 5
  %v3818 = vand.u32 %v3816, 31
  %v3819 = vsub.s32 32, %v3818
  %v3820 = vshrl.u32 683565275, %v3819
  %v3821 = vshll.u32 683565275, %v3818
  %v3822 = vshrl.u32 2475754826, %v3819
  %v3823 = vor.u32 %v3821, %v3822
  %v3824 = vshll.u32 2475754826, %v3818
  %v3825 = vshrl.u32 2131351028, %v3819
  %v3826 = vor.u32 %v3824, %v3825
  %v3827 = vshll.u32 2131351028, %v3818
  %v3828 = vshrl.u32 2102212464, %v3819
  %v3829 = vor.u32 %v3827, %v3828
  %v3830 = vshll.u32 2102212464, %v3818
  %v3831 = vshrl.u32 920167782, %v3819
  %v3832 = vor.u32 %v3830, %v3831
  %v3833 = vshll.u32 920167782, %v3818
  %v3834 = vshrl.u32 1326507024, %v3819
  %v3835 = vor.u32 %v3833, %v3834
  %vm3836 = vcmp.lt.s32.totalorder %v3817, 1
  %vm3837 = vcmp.lt.s32.totalorder %v3817, 2
  %vm3838 = vcmp.lt.s32.totalorder %v3817, 3
  %vm3839 = vcmp.lt.s32.totalorder %v3817, 4
  %v3840 = vsel %vm3836, %v3820, %v3823
  %v3841 = vsel %vm3839, %v3829, 2102212464
  %v3842 = vsel %vm3838, %v3826, %v3841
  %v3843 = vsel %vm3837, %v3840, %v3842
  %v3844 = vsel %vm3836, %v3823, %v3826
  %v3845 = vsel %vm3839, %v3832, 920167782
  %v3846 = vsel %vm3838, %v3829, %v3845
  %v3847 = vsel %vm3837, %v3844, %v3846
  %v3848 = vsel %vm3836, %v3826, %v3829
  %v3849 = vsel %vm3839, %v3835, 1326507024
  %v3850 = vsel %vm3838, %v3832, %v3849
  %v3851 = vsel %vm3837, %v3848, %v3850
  %v3852 = vshll.u32 %v3812, 8
  %v3853 = vmul.u32.u64.compose %v3852, %v3851
  %v3854 = vextract.low.u32 %v3853
  %v3855 = vextract.high.u32 %v3853
  %v3856 = vmul.u32.u64.compose %v3852, %v3847
  %v3857 = vextract.low.u32 %v3856
  %v3858 = vextract.high.u32 %v3856
  %v3859 = vmul.u32 %v3852, %v3843
  %v3860 = vadd.s32 %v3855, %v3857
  %vm3861 = vc.u32 %v3855, %v3857
  %v3862 = vadd.s32 %v3858, 1
  %v3863 = vsel %vm3861, %v3862, %v3858
  %v3864 = vadd.s32 %v3859, %v3863
  %v3865 = vadd.s32 %v3864, 536870912
  %v3866 = vshrl.u32 %v3865, 30
  %v3867 = vshll.u32 %v3866, 30
  %v3868 = vsub.s32 %v3864, %v3867
  %vm3869 = vcmp.lt.s32.totalorder %v3868, 0
  %v3870 = vsub.s32 0, %v3868
  %v3871 = vsel %vm3869, %v3870, %v3868
  %v3872 = vclz %v3871
  %v3873 = vsub.s32 %v3872, 2
  %vm3874 = vcmp.gt.s32.totalorder 0, %v3873
  %v3875 = vsel %vm3874, 0, %v3873
  %v3876 = vsub.s32 32, %v3875
  %v3877 = vshll.u32 %v3868, %v3875
  %v3878 = vshrl.u32 %v3860, %v3876
  %v3879 = vor.u32 %v3877, %v3878
  %v3880 = vsub.s32 4294967266, %v3875
  %v3881 = vadd.s32 %v3880, 127
  %v3882 = vshll.u32 %v3881, 23
  %v3883 = vor.u32 4788187, %v3882
  %v3884 = vand.u32 2147483647, %v3883
  %v3886 = vcvt.s32.f32 %v3879
  %v3887 = vmul.f32 %v3886, %v3884
  %v3888 = vxor.u32 %v3887, 2147483648
  %v3889 = vsel %vm3806, %v3888, %v3887
  %v3890 = vsub.s32 4, %v3866
  %v3891 = vsel %vm3806, %v3890, %v3866
  %v3892 = vsel %vm3805, %v3687, %v3889
  %v3893 = vsel %vm3805, 0, %v3891
  %v3894 = vcosq.f32.pop %v3892
  %v3895 = vsinq.f32.pop %v3892
  %vm3896 = vweird.f32 %v3687
  %v3897 = vadd.s32 %v3893, 3
  %v3898 = vand.u32 %v3897, 3
  %vm3899 = vcmp.lt.s32.totalorder %v3898, 2
  %vm3900 = vcmp.eq.s32.totalorder %v3898, 0
  %v3901 = vxor.u32 %v3895, 2147483648
  %v3902 = vsel %vm3900, %v3894, %v3901
  %vm3903 = vcmp.eq.s32.totalorder %v3898, 2
  %v3904 = vxor.u32 %v3894, 2147483648
  %v3905 = vsel %vm3903, %v3904, %v3895
  %v3906 = vsel %vm3899, %v3902, %v3905
  %v3907 = vsel %vm3896, nan, %v3906
  %v3908 = vand.u32 2147483647, %v3692
  %vm3909 = vcmp.le.f32.partialorder %v3908, 0.7853982
  %vm3910 = vcmp.lt.s32.totalorder %v3692, 0
  %v3911 = vand.u32 %v3692, 2139095040
  %v3912 = vshrl.u32 %v3911, 23
  %v3913 = vsub.s32 %v3912, 127
  %v3914 = vand.u32 2147483647, %v3692
  %v3915 = vand.u32 %v3914, 8388607
  %v3916 = vor.u32 %v3915, 8388608
  %v3917 = vsub.s32 0, %v3916
  %v3918 = vadd.s32 %v3913, 1
  %vm3919 = vcmp.gt.s32.totalorder %v3918, 0
  %v3920 = vsel %vm3919, %v3918, 0
  %v3921 = vshrl.u32 %v3920, 5
  %v3922 = vand.u32 %v3920, 31
  %v3923 = vsub.s32 32, %v3922
  %v3924 = vshrl.u32 683565275, %v3923
  %v3925 = vshll.u32 683565275, %v3922
  %v3926 = vshrl.u32 2475754826, %v3923
  %v3927 = vor.u32 %v3925, %v3926
  %v3928 = vshll.u32 2475754826, %v3922
  %v3929 = vshrl.u32 2131351028, %v3923
  %v3930 = vor.u32 %v3928, %v3929
  %v3931 = vshll.u32 2131351028, %v3922
  %v3932 = vshrl.u32 2102212464, %v3923
  %v3933 = vor.u32 %v3931, %v3932
  %v3934 = vshll.u32 2102212464, %v3922
  %v3935 = vshrl.u32 920167782, %v3923
  %v3936 = vor.u32 %v3934, %v3935
  %v3937 = vshll.u32 920167782, %v3922
  %v3938 = vshrl.u32 1326507024, %v3923
  %v3939 = vor.u32 %v3937, %v3938
  %vm3940 = vcmp.lt.s32.totalorder %v3921, 1
  %vm3941 = vcmp.lt.s32.totalorder %v3921, 2
  %vm3942 = vcmp.lt.s32.totalorder %v3921, 3
  %vm3943 = vcmp.lt.s32.totalorder %v3921, 4
  %v3944 = vsel %vm3940, %v3924, %v3927
  %v3945 = vsel %vm3943, %v3933, 2102212464
  %v3946 = vsel %vm3942, %v3930, %v3945
  %v3947 = vsel %vm3941, %v3944, %v3946
  %v3948 = vsel %vm3940, %v3927, %v3930
  %v3949 = vsel %vm3943, %v3936, 920167782
  %v3950 = vsel %vm3942, %v3933, %v3949
  %v3951 = vsel %vm3941, %v3948, %v3950
  %v3952 = vsel %vm3940, %v3930, %v3933
  %v3953 = vsel %vm3943, %v3939, 1326507024
  %v3954 = vsel %vm3942, %v3936, %v3953
  %v3955 = vsel %vm3941, %v3952, %v3954
  %v3956 = vshll.u32 %v3916, 8
  %v3957 = vmul.u32.u64.compose %v3956, %v3955
  %v3958 = vextract.low.u32 %v3957
  %v3959 = vextract.high.u32 %v3957
  %v3960 = vmul.u32.u64.compose %v3956, %v3951
  %v3961 = vextract.low.u32 %v3960
  %v3962 = vextract.high.u32 %v3960
  %v3963 = vmul.u32 %v3956, %v3947
  %v3964 = vadd.s32 %v3959, %v3961
  %vm3965 = vc.u32 %v3959, %v3961
  %v3966 = vadd.s32 %v3962, 1
  %v3967 = vsel %vm3965, %v3966, %v3962
  %v3968 = vadd.s32 %v3963, %v3967
  %v3969 = vadd.s32 %v3968, 536870912
  %v3970 = vshrl.u32 %v3969, 30
  %v3971 = vshll.u32 %v3970, 30
  %v3972 = vsub.s32 %v3968, %v3971
  %vm3973 = vcmp.lt.s32.totalorder %v3972, 0
  %v3974 = vsub.s32 0, %v3972
  %v3975 = vsel %vm3973, %v3974, %v3972
  %v3976 = vclz %v3975
  %v3977 = vsub.s32 %v3976, 2
  %vm3978 = vcmp.gt.s32.totalorder 0, %v3977
  %v3979 = vsel %vm3978, 0, %v3977
  %v3980 = vsub.s32 32, %v3979
  %v3981 = vshll.u32 %v3972, %v3979
  %v3982 = vshrl.u32 %v3964, %v3980
  %v3983 = vor.u32 %v3981, %v3982
  %v3984 = vsub.s32 4294967266, %v3979
  %v3985 = vadd.s32 %v3984, 127
  %v3986 = vshll.u32 %v3985, 23
  %v3987 = vor.u32 4788187, %v3986
  %v3988 = vand.u32 2147483647, %v3987
  %v3990 = vcvt.s32.f32 %v3983
  %v3991 = vmul.f32 %v3990, %v3988
  %v3992 = vxor.u32 %v3991, 2147483648
  %v3993 = vsel %vm3910, %v3992, %v3991
  %v3994 = vsub.s32 4, %v3970
  %v3995 = vsel %vm3910, %v3994, %v3970
  %v3996 = vsel %vm3909, %v3692, %v3993
  %v3997 = vsel %vm3909, 0, %v3995
  %v3998 = vcosq.f32.pop %v3996
  %v3999 = vsinq.f32.pop %v3996
  %vm4000 = vweird.f32 %v3692
  %v4001 = vadd.s32 %v3997, 3
  %v4002 = vand.u32 %v4001, 3
  %vm4003 = vcmp.lt.s32.totalorder %v4002, 2
  %vm4004 = vcmp.eq.s32.totalorder %v4002, 0
  %v4005 = vxor.u32 %v3999, 2147483648
  %v4006 = vsel %vm4004, %v3998, %v4005
  %vm4007 = vcmp.eq.s32.totalorder %v4002, 2
  %v4008 = vxor.u32 %v3998, 2147483648
  %v4009 = vsel %vm4007, %v4008, %v3999
  %v4010 = vsel %vm4003, %v4006, %v4009
  %v4011 = vsel %vm4000, nan, %v4010
  %v4012 = vand.u32 2147483647, %v3697
  %vm4013 = vcmp.le.f32.partialorder %v4012, 0.7853982
  %vm4014 = vcmp.lt.s32.totalorder %v3697, 0
  %v4015 = vand.u32 %v3697, 2139095040
  %v4016 = vshrl.u32 %v4015, 23
  %v4017 = vsub.s32 %v4016, 127
  %v4018 = vand.u32 2147483647, %v3697
  %v4019 = vand.u32 %v4018, 8388607
  %v4020 = vor.u32 %v4019, 8388608
  %v4021 = vsub.s32 0, %v4020
  %v4022 = vadd.s32 %v4017, 1
  %vm4023 = vcmp.gt.s32.totalorder %v4022, 0
  %v4024 = vsel %vm4023, %v4022, 0
  %v4025 = vshrl.u32 %v4024, 5
  %v4026 = vand.u32 %v4024, 31
  %v4027 = vsub.s32 32, %v4026
  %v4028 = vshrl.u32 683565275, %v4027
  %v4029 = vshll.u32 683565275, %v4026
  %v4030 = vshrl.u32 2475754826, %v4027
  %v4031 = vor.u32 %v4029, %v4030
  %v4032 = vshll.u32 2475754826, %v4026
  %v4033 = vshrl.u32 2131351028, %v4027
  %v4034 = vor.u32 %v4032, %v4033
  %v4035 = vshll.u32 2131351028, %v4026
  %v4036 = vshrl.u32 2102212464, %v4027
  %v4037 = vor.u32 %v4035, %v4036
  %v4038 = vshll.u32 2102212464, %v4026
  %v4039 = vshrl.u32 920167782, %v4027
  %v4040 = vor.u32 %v4038, %v4039
  %v4041 = vshll.u32 920167782, %v4026
  %v4042 = vshrl.u32 1326507024, %v4027
  %v4043 = vor.u32 %v4041, %v4042
  %vm4044 = vcmp.lt.s32.totalorder %v4025, 1
  %vm4045 = vcmp.lt.s32.totalorder %v4025, 2
  %vm4046 = vcmp.lt.s32.totalorder %v4025, 3
  %vm4047 = vcmp.lt.s32.totalorder %v4025, 4
  %v4048 = vsel %vm4044, %v4028, %v4031
  %v4049 = vsel %vm4047, %v4037, 2102212464
  %v4050 = vsel %vm4046, %v4034, %v4049
  %v4051 = vsel %vm4045, %v4048, %v4050
  %v4052 = vsel %vm4044, %v4031, %v4034
  %v4053 = vsel %vm4047, %v4040, 920167782
  %v4054 = vsel %vm4046, %v4037, %v4053
  %v4055 = vsel %vm4045, %v4052, %v4054
  %v4056 = vsel %vm4044, %v4034, %v4037
  %v4057 = vsel %vm4047, %v4043, 1326507024
  %v4058 = vsel %vm4046, %v4040, %v4057
  %v4059 = vsel %vm4045, %v4056, %v4058
  %v4060 = vshll.u32 %v4020, 8
  %v4061 = vmul.u32.u64.compose %v4060, %v4059
  %v4062 = vextract.low.u32 %v4061
  %v4063 = vextract.high.u32 %v4061
  %v4064 = vmul.u32.u64.compose %v4060, %v4055
  %v4065 = vextract.low.u32 %v4064
  %v4066 = vextract.high.u32 %v4064
  %v4067 = vmul.u32 %v4060, %v4051
  %v4068 = vadd.s32 %v4063, %v4065
  %vm4069 = vc.u32 %v4063, %v4065
  %v4070 = vadd.s32 %v4066, 1
  %v4071 = vsel %vm4069, %v4070, %v4066
  %v4072 = vadd.s32 %v4067, %v4071
  %v4073 = vadd.s32 %v4072, 536870912
  %v4074 = vshrl.u32 %v4073, 30
  %v4075 = vshll.u32 %v4074, 30
  %v4076 = vsub.s32 %v4072, %v4075
  %vm4077 = vcmp.lt.s32.totalorder %v4076, 0
  %v4078 = vsub.s32 0, %v4076
  %v4079 = vsel %vm4077, %v4078, %v4076
  %v4080 = vclz %v4079
  %v4081 = vsub.s32 %v4080, 2
  %vm4082 = vcmp.gt.s32.totalorder 0, %v4081
  %v4083 = vsel %vm4082, 0, %v4081
  %v4084 = vsub.s32 32, %v4083
  %v4085 = vshll.u32 %v4076, %v4083
  %v4086 = vshrl.u32 %v4068, %v4084
  %v4087 = vor.u32 %v4085, %v4086
  %v4088 = vsub.s32 4294967266, %v4083
  %v4089 = vadd.s32 %v4088, 127
  %v4090 = vshll.u32 %v4089, 23
  %v4091 = vor.u32 4788187, %v4090
  %v4092 = vand.u32 2147483647, %v4091
  %v4094 = vcvt.s32.f32 %v4087
  %v4095 = vmul.f32 %v4094, %v4092
  %v4096 = vxor.u32 %v4095, 2147483648
  %v4097 = vsel %vm4014, %v4096, %v4095
  %v4098 = vsub.s32 4, %v4074
  %v4099 = vsel %vm4014, %v4098, %v4074
  %v4100 = vsel %vm4013, %v3697, %v4097
  %v4101 = vsel %vm4013, 0, %v4099
  %v4102 = vcosq.f32.pop %v4100
  %v4103 = vsinq.f32.pop %v4100
  %vm4104 = vweird.f32 %v3697
  %v4105 = vadd.s32 %v4101, 3
  %v4106 = vand.u32 %v4105, 3
  %vm4107 = vcmp.lt.s32.totalorder %v4106, 2
  %vm4108 = vcmp.eq.s32.totalorder %v4106, 0
  %v4109 = vxor.u32 %v4103, 2147483648
  %v4110 = vsel %vm4108, %v4102, %v4109
  %vm4111 = vcmp.eq.s32.totalorder %v4106, 2
  %v4112 = vxor.u32 %v4102, 2147483648
  %v4113 = vsel %vm4111, %v4112, %v4103
  %v4114 = vsel %vm4107, %v4110, %v4113
  %v4115 = vsel %vm4104, nan, %v4114
  %v4116 = vld [vmem:[%s19] sm:$0xff]
  %v4117 = vld [vmem:[%s19 + $0x8] sm:$0xff]
  %v4118 = vld [vmem:[%s19 + $0x10] sm:$0xff]
  %v4119 = vld [vmem:[%s19 + $0x18] sm:$0xff]
  %v4120 = vld [vmem:[%s20] sm:$0xff]
  %v4121 = vld [vmem:[%s20 + $0x8] sm:$0xff]
  %v4122 = vld [vmem:[%s20 + $0x10] sm:$0xff]
  %v4123 = vld [vmem:[%s20 + $0x18] sm:$0xff]
  %4125 = vset.pattern.permute.xlu0 0
  %4126 = vperm.xlu0 %4125, %v4120
  %v4127 = vpop.permute.xlu0 %4126
  %4130 = vset.pattern.permute.xlu0 0
  %4131 = vperm.xlu0 %4130, %v4121
  %v4132 = vpop.permute.xlu0 %4131
  %4135 = vset.pattern.permute.xlu0 0
  %4136 = vperm.xlu0 %4135, %v4122
  %v4137 = vpop.permute.xlu0 %4136
  %4140 = vset.pattern.permute.xlu0 0
  %4141 = vperm.xlu0 %4140, %v4123
  %v4142 = vpop.permute.xlu0 %4141
  %v4145 = vsel %vm344, %v4116, 0
  %v4148 = vsel %vm344, %v4117, 0
  %v4151 = vsel %vm344, %v4118, 0
  %v4154 = vsel %vm344, %v4119, 0
  %4156 = vmatprep.subr.mxu0 0.0
  %4157 = vmatpush1.msra.mxu0 %v3803
  %4158 = vmatprep.subr.mxu0 0.0
  %4159 = vmatpush1.msra.mxu0 %v3907
  %4160 = vmatprep.subr.mxu0 0.0
  %4161 = vmatpush1.msra.mxu0 %v4011
  %4162 = vmatprep.subr.mxu0 0.0
  %4163 = vmatpush1.msra.mxu0 %v4115
  %4164 = vmatprep.subr.mxu0 0.0
  %4165 = vmatpush1.msra.mxu0 0.0
  %4166 = vmatprep.subr.mxu0 0.0
  %4167 = vmatpush1.msra.mxu0 0.0
  %4168 = vmatprep.subr.mxu0 0.0
  %4169 = vmatpush1.msra.mxu0 0.0
  %4170 = vmatprep.subr.mxu0 0.0
  %4171 = vmatpush1.msra.mxu0 0.0
  %4172 = vmatprep.subr.mxu0 0.0
  %4173 = vmatpush1.msra.mxu0 0.0
  %4174 = vmatprep.subr.mxu0 0.0
  %4175 = vmatpush1.msra.mxu0 0.0
  %4176 = vmatprep.subr.mxu0 0.0
  %4177 = vmatpush1.msra.mxu0 0.0
  %4178 = vmatprep.subr.mxu0 0.0
  %4179 = vmatpush1.msra.mxu0 0.0
  %4180 = vmatprep.subr.mxu0 0.0
  %4181 = vmatpush1.msra.mxu0 0.0
  %4182 = vmatprep.subr.mxu0 0.0
  %4183 = vmatpush1.msra.mxu0 0.0
  %4184 = vmatprep.subr.mxu0 0.0
  %4185 = vmatpush1.msra.mxu0 0.0
  %4186 = vmatprep.subr.mxu0 0.0
  %4187 = vmatpush1.msra.mxu0 0.0
  %4188 = vmatprep.subr.mxu0 0.0
  %4189 = vmatpush1.msra.mxu0 0.0
  %4190 = vmatprep.subr.mxu0 0.0
  %4191 = vmatpush1.msra.mxu0 0.0
  %4192 = vmatprep.subr.mxu0 0.0
  %4193 = vmatpush1.msra.mxu0 0.0
  %4194 = vmatprep.subr.mxu0 0.0
  %4195 = vmatpush1.msra.mxu0 0.0
  %4196 = vmatprep.subr.mxu0 0.0
  %4197 = vmatpush1.msra.mxu0 0.0
  %4198 = vmatprep.subr.mxu0 0.0
  %4199 = vmatpush1.msra.mxu0 0.0
  %4200 = vmatprep.subr.mxu0 0.0
  %4201 = vmatpush1.msra.mxu0 0.0
  %4202 = vmatprep.subr.mxu0 0.0
  %4203 = vmatpush1.msra.mxu0 0.0
  %4204 = vmatprep.subr.mxu0 0.0
  %4205 = vmatpush1.msra.mxu0 0.0
  %4206 = vmatprep.subr.mxu0 0.0
  %4207 = vmatpush1.msra.mxu0 0.0
  %4208 = vmatprep.subr.mxu0 0.0
  %4209 = vmatpush1.msra.mxu0 0.0
  %4210 = vmatprep.subr.mxu0 0.0
  %4211 = vmatpush1.msra.mxu0 0.0
  %4212 = vmatprep.subr.mxu0 0.0
  %4213 = vmatpush1.msra.mxu0 0.0
  %4214 = vmatprep.subr.mxu0 0.0
  %4215 = vmatpush1.msra.mxu0 0.0
  %4216 = vmatprep.subr.mxu0 0.0
  %4217 = vmatpush1.msra.mxu0 0.0
  %4218 = vmatprep.subr.mxu0 0.0
  %4219 = vmatpush1.msra.mxu0 0.0
  %4220 = vmatprep.mubr.f32.mxu0 0.0
  %4221 = vmatmul.mubr.f32.gmra.mrb[0].mxu0 %v4145
  %v4222 = vpop.f32.mrb[0].mxu0
  %v4223 = vadd.f32 %v4127, %v4222
  %v4224 = vpop.f32.mrb[0].mxu0
  %4225 = vmatprep.mubr.f32.mxu0 0.0
  %4226 = vmatmul.mubr.f32.gmra.mrb[0].mxu0 %v4148
  %v4227 = vpop.f32.mrb[0].mxu0
  %v4228 = vadd.f32 %v4132, %v4227
  %v4229 = vpop.f32.mrb[0].mxu0
  %4230 = vmatprep.mubr.f32.mxu0 0.0
  %4231 = vmatmul.mubr.f32.gmra.mrb[0].mxu0 %v4151
  %v4232 = vpop.f32.mrb[0].mxu0
  %v4233 = vadd.f32 %v4137, %v4232
  %v4234 = vpop.f32.mrb[0].mxu0
  %4235 = vmatprep.mubr.f32.mxu0 0.0
  %4236 = vmatmul.mubr.f32.gmra.mrb[0].mxu0 %v4154
  %v4237 = vpop.f32.mrb[0].mxu0
  %v4238 = vadd.f32 %v4142, %v4237
  %v4239 = vpop.f32.mrb[0].mxu0
  %4240 = vdwg.mxu0
  %v4241 = vand.u32 2147483647, %v4223
  %vm4242 = vcmp.le.f32.partialorder %v4241, 0.7853982
  %vm4243 = vcmp.lt.s32.totalorder %v4223, 0
  %v4244 = vand.u32 %v4223, 2139095040
  %v4245 = vshrl.u32 %v4244, 23
  %v4246 = vsub.s32 %v4245, 127
  %v4247 = vand.u32 2147483647, %v4223
  %v4248 = vand.u32 %v4247, 8388607
  %v4249 = vor.u32 %v4248, 8388608
  %v4250 = vsub.s32 0, %v4249
  %v4251 = vadd.s32 %v4246, 1
  %vm4252 = vcmp.gt.s32.totalorder %v4251, 0
  %v4253 = vsel %vm4252, %v4251, 0
  %v4254 = vshrl.u32 %v4253, 5
  %v4255 = vand.u32 %v4253, 31
  %v4256 = vsub.s32 32, %v4255
  %v4257 = vshrl.u32 683565275, %v4256
  %v4258 = vshll.u32 683565275, %v4255
  %v4259 = vshrl.u32 2475754826, %v4256
  %v4260 = vor.u32 %v4258, %v4259
  %v4261 = vshll.u32 2475754826, %v4255
  %v4262 = vshrl.u32 2131351028, %v4256
  %v4263 = vor.u32 %v4261, %v4262
  %v4264 = vshll.u32 2131351028, %v4255
  %v4265 = vshrl.u32 2102212464, %v4256
  %v4266 = vor.u32 %v4264, %v4265
  %v4267 = vshll.u32 2102212464, %v4255
  %v4268 = vshrl.u32 920167782, %v4256
  %v4269 = vor.u32 %v4267, %v4268
  %v4270 = vshll.u32 920167782, %v4255
  %v4271 = vshrl.u32 1326507024, %v4256
  %v4272 = vor.u32 %v4270, %v4271
  %vm4273 = vcmp.lt.s32.totalorder %v4254, 1
  %vm4274 = vcmp.lt.s32.totalorder %v4254, 2
  %vm4275 = vcmp.lt.s32.totalorder %v4254, 3
  %vm4276 = vcmp.lt.s32.totalorder %v4254, 4
  %v4277 = vsel %vm4273, %v4257, %v4260
  %v4278 = vsel %vm4276, %v4266, 2102212464
  %v4279 = vsel %vm4275, %v4263, %v4278
  %v4280 = vsel %vm4274, %v4277, %v4279
  %v4281 = vsel %vm4273, %v4260, %v4263
  %v4282 = vsel %vm4276, %v4269, 920167782
  %v4283 = vsel %vm4275, %v4266, %v4282
  %v4284 = vsel %vm4274, %v4281, %v4283
  %v4285 = vsel %vm4273, %v4263, %v4266
  %v4286 = vsel %vm4276, %v4272, 1326507024
  %v4287 = vsel %vm4275, %v4269, %v4286
  %v4288 = vsel %vm4274, %v4285, %v4287
  %v4289 = vshll.u32 %v4249, 8
  %v4290 = vmul.u32.u64.compose %v4289, %v4288
  %v4291 = vextract.low.u32 %v4290
  %v4292 = vextract.high.u32 %v4290
  %v4293 = vmul.u32.u64.compose %v4289, %v4284
  %v4294 = vextract.low.u32 %v4293
  %v4295 = vextract.high.u32 %v4293
  %v4296 = vmul.u32 %v4289, %v4280
  %v4297 = vadd.s32 %v4292, %v4294
  %vm4298 = vc.u32 %v4292, %v4294
  %v4299 = vadd.s32 %v4295, 1
  %v4300 = vsel %vm4298, %v4299, %v4295
  %v4301 = vadd.s32 %v4296, %v4300
  %v4302 = vadd.s32 %v4301, 536870912
  %v4303 = vshrl.u32 %v4302, 30
  %v4304 = vshll.u32 %v4303, 30
  %v4305 = vsub.s32 %v4301, %v4304
  %vm4306 = vcmp.lt.s32.totalorder %v4305, 0
  %v4307 = vsub.s32 0, %v4305
  %v4308 = vsel %vm4306, %v4307, %v4305
  %v4309 = vclz %v4308
  %v4310 = vsub.s32 %v4309, 2
  %vm4311 = vcmp.gt.s32.totalorder 0, %v4310
  %v4312 = vsel %vm4311, 0, %v4310
  %v4313 = vsub.s32 32, %v4312
  %v4314 = vshll.u32 %v4305, %v4312
  %v4315 = vshrl.u32 %v4297, %v4313
  %v4316 = vor.u32 %v4314, %v4315
  %v4317 = vsub.s32 4294967266, %v4312
  %v4318 = vadd.s32 %v4317, 127
  %v4319 = vshll.u32 %v4318, 23
  %v4320 = vor.u32 4788187, %v4319
  %v4321 = vand.u32 2147483647, %v4320
  %v4323 = vcvt.s32.f32 %v4316
  %v4324 = vmul.f32 %v4323, %v4321
  %v4325 = vxor.u32 %v4324, 2147483648
  %v4326 = vsel %vm4243, %v4325, %v4324
  %v4327 = vsub.s32 4, %v4303
  %v4328 = vsel %vm4243, %v4327, %v4303
  %v4329 = vsel %vm4242, %v4223, %v4326
  %v4330 = vsel %vm4242, 0, %v4328
  %v4331 = vcosq.f32.pop %v4329
  %v4332 = vsinq.f32.pop %v4329
  %vm4333 = vweird.f32 %v4223
  %v4334 = vadd.s32 %v4330, 3
  %v4335 = vand.u32 %v4334, 3
  %vm4336 = vcmp.lt.s32.totalorder %v4335, 2
  %vm4337 = vcmp.eq.s32.totalorder %v4335, 0
  %v4338 = vxor.u32 %v4332, 2147483648
  %v4339 = vsel %vm4337, %v4331, %v4338
  %vm4340 = vcmp.eq.s32.totalorder %v4335, 2
  %v4341 = vxor.u32 %v4331, 2147483648
  %v4342 = vsel %vm4340, %v4341, %v4332
  %v4343 = vsel %vm4336, %v4339, %v4342
  %v4344 = vsel %vm4333, nan, %v4343
  %v4345 = vand.u32 2147483647, %v4228
  %vm4346 = vcmp.le.f32.partialorder %v4345, 0.7853982
  %vm4347 = vcmp.lt.s32.totalorder %v4228, 0
  %v4348 = vand.u32 %v4228, 2139095040
  %v4349 = vshrl.u32 %v4348, 23
  %v4350 = vsub.s32 %v4349, 127
  %v4351 = vand.u32 2147483647, %v4228
  %v4352 = vand.u32 %v4351, 8388607
  %v4353 = vor.u32 %v4352, 8388608
  %v4354 = vsub.s32 0, %v4353
  %v4355 = vadd.s32 %v4350, 1
  %vm4356 = vcmp.gt.s32.totalorder %v4355, 0
  %v4357 = vsel %vm4356, %v4355, 0
  %v4358 = vshrl.u32 %v4357, 5
  %v4359 = vand.u32 %v4357, 31
  %v4360 = vsub.s32 32, %v4359
  %v4361 = vshrl.u32 683565275, %v4360
  %v4362 = vshll.u32 683565275, %v4359
  %v4363 = vshrl.u32 2475754826, %v4360
  %v4364 = vor.u32 %v4362, %v4363
  %v4365 = vshll.u32 2475754826, %v4359
  %v4366 = vshrl.u32 2131351028, %v4360
  %v4367 = vor.u32 %v4365, %v4366
  %v4368 = vshll.u32 2131351028, %v4359
  %v4369 = vshrl.u32 2102212464, %v4360
  %v4370 = vor.u32 %v4368, %v4369
  %v4371 = vshll.u32 2102212464, %v4359
  %v4372 = vshrl.u32 920167782, %v4360
  %v4373 = vor.u32 %v4371, %v4372
  %v4374 = vshll.u32 920167782, %v4359
  %v4375 = vshrl.u32 1326507024, %v4360
  %v4376 = vor.u32 %v4374, %v4375
  %vm4377 = vcmp.lt.s32.totalorder %v4358, 1
  %vm4378 = vcmp.lt.s32.totalorder %v4358, 2
  %vm4379 = vcmp.lt.s32.totalorder %v4358, 3
  %vm4380 = vcmp.lt.s32.totalorder %v4358, 4
  %v4381 = vsel %vm4377, %v4361, %v4364
  %v4382 = vsel %vm4380, %v4370, 2102212464
  %v4383 = vsel %vm4379, %v4367, %v4382
  %v4384 = vsel %vm4378, %v4381, %v4383
  %v4385 = vsel %vm4377, %v4364, %v4367
  %v4386 = vsel %vm4380, %v4373, 920167782
  %v4387 = vsel %vm4379, %v4370, %v4386
  %v4388 = vsel %vm4378, %v4385, %v4387
  %v4389 = vsel %vm4377, %v4367, %v4370
  %v4390 = vsel %vm4380, %v4376, 1326507024
  %v4391 = vsel %vm4379, %v4373, %v4390
  %v4392 = vsel %vm4378, %v4389, %v4391
  %v4393 = vshll.u32 %v4353, 8
  %v4394 = vmul.u32.u64.compose %v4393, %v4392
  %v4395 = vextract.low.u32 %v4394
  %v4396 = vextract.high.u32 %v4394
  %v4397 = vmul.u32.u64.compose %v4393, %v4388
  %v4398 = vextract.low.u32 %v4397
  %v4399 = vextract.high.u32 %v4397
  %v4400 = vmul.u32 %v4393, %v4384
  %v4401 = vadd.s32 %v4396, %v4398
  %vm4402 = vc.u32 %v4396, %v4398
  %v4403 = vadd.s32 %v4399, 1
  %v4404 = vsel %vm4402, %v4403, %v4399
  %v4405 = vadd.s32 %v4400, %v4404
  %v4406 = vadd.s32 %v4405, 536870912
  %v4407 = vshrl.u32 %v4406, 30
  %v4408 = vshll.u32 %v4407, 30
  %v4409 = vsub.s32 %v4405, %v4408
  %vm4410 = vcmp.lt.s32.totalorder %v4409, 0
  %v4411 = vsub.s32 0, %v4409
  %v4412 = vsel %vm4410, %v4411, %v4409
  %v4413 = vclz %v4412
  %v4414 = vsub.s32 %v4413, 2
  %vm4415 = vcmp.gt.s32.totalorder 0, %v4414
  %v4416 = vsel %vm4415, 0, %v4414
  %v4417 = vsub.s32 32, %v4416
  %v4418 = vshll.u32 %v4409, %v4416
  %v4419 = vshrl.u32 %v4401, %v4417
  %v4420 = vor.u32 %v4418, %v4419
  %v4421 = vsub.s32 4294967266, %v4416
  %v4422 = vadd.s32 %v4421, 127
  %v4423 = vshll.u32 %v4422, 23
  %v4424 = vor.u32 4788187, %v4423
  %v4425 = vand.u32 2147483647, %v4424
  %v4427 = vcvt.s32.f32 %v4420
  %v4428 = vmul.f32 %v4427, %v4425
  %v4429 = vxor.u32 %v4428, 2147483648
  %v4430 = vsel %vm4347, %v4429, %v4428
  %v4431 = vsub.s32 4, %v4407
  %v4432 = vsel %vm4347, %v4431, %v4407
  %v4433 = vsel %vm4346, %v4228, %v4430
  %v4434 = vsel %vm4346, 0, %v4432
  %v4435 = vcosq.f32.pop %v4433
  %v4436 = vsinq.f32.pop %v4433
  %vm4437 = vweird.f32 %v4228
  %v4438 = vadd.s32 %v4434, 3
  %v4439 = vand.u32 %v4438, 3
  %vm4440 = vcmp.lt.s32.totalorder %v4439, 2
  %vm4441 = vcmp.eq.s32.totalorder %v4439, 0
  %v4442 = vxor.u32 %v4436, 2147483648
  %v4443 = vsel %vm4441, %v4435, %v4442
  %vm4444 = vcmp.eq.s32.totalorder %v4439, 2
  %v4445 = vxor.u32 %v4435, 2147483648
  %v4446 = vsel %vm4444, %v4445, %v4436
  %v4447 = vsel %vm4440, %v4443, %v4446
  %v4448 = vsel %vm4437, nan, %v4447
  %v4449 = vand.u32 2147483647, %v4233
  %vm4450 = vcmp.le.f32.partialorder %v4449, 0.7853982
  %vm4451 = vcmp.lt.s32.totalorder %v4233, 0
  %v4452 = vand.u32 %v4233, 2139095040
  %v4453 = vshrl.u32 %v4452, 23
  %v4454 = vsub.s32 %v4453, 127
  %v4455 = vand.u32 2147483647, %v4233
  %v4456 = vand.u32 %v4455, 8388607
  %v4457 = vor.u32 %v4456, 8388608
  %v4458 = vsub.s32 0, %v4457
  %v4459 = vadd.s32 %v4454, 1
  %vm4460 = vcmp.gt.s32.totalorder %v4459, 0
  %v4461 = vsel %vm4460, %v4459, 0
  %v4462 = vshrl.u32 %v4461, 5
  %v4463 = vand.u32 %v4461, 31
  %v4464 = vsub.s32 32, %v4463
  %v4465 = vshrl.u32 683565275, %v4464
  %v4466 = vshll.u32 683565275, %v4463
  %v4467 = vshrl.u32 2475754826, %v4464
  %v4468 = vor.u32 %v4466, %v4467
  %v4469 = vshll.u32 2475754826, %v4463
  %v4470 = vshrl.u32 2131351028, %v4464
  %v4471 = vor.u32 %v4469, %v4470
  %v4472 = vshll.u32 2131351028, %v4463
  %v4473 = vshrl.u32 2102212464, %v4464
  %v4474 = vor.u32 %v4472, %v4473
  %v4475 = vshll.u32 2102212464, %v4463
  %v4476 = vshrl.u32 920167782, %v4464
  %v4477 = vor.u32 %v4475, %v4476
  %v4478 = vshll.u32 920167782, %v4463
  %v4479 = vshrl.u32 1326507024, %v4464
  %v4480 = vor.u32 %v4478, %v4479
  %vm4481 = vcmp.lt.s32.totalorder %v4462, 1
  %vm4482 = vcmp.lt.s32.totalorder %v4462, 2
  %vm4483 = vcmp.lt.s32.totalorder %v4462, 3
  %vm4484 = vcmp.lt.s32.totalorder %v4462, 4
  %v4485 = vsel %vm4481, %v4465, %v4468
  %v4486 = vsel %vm4484, %v4474, 2102212464
  %v4487 = vsel %vm4483, %v4471, %v4486
  %v4488 = vsel %vm4482, %v4485, %v4487
  %v4489 = vsel %vm4481, %v4468, %v4471
  %v4490 = vsel %vm4484, %v4477, 920167782
  %v4491 = vsel %vm4483, %v4474, %v4490
  %v4492 = vsel %vm4482, %v4489, %v4491
  %v4493 = vsel %vm4481, %v4471, %v4474
  %v4494 = vsel %vm4484, %v4480, 1326507024
  %v4495 = vsel %vm4483, %v4477, %v4494
  %v4496 = vsel %vm4482, %v4493, %v4495
  %v4497 = vshll.u32 %v4457, 8
  %v4498 = vmul.u32.u64.compose %v4497, %v4496
  %v4499 = vextract.low.u32 %v4498
  %v4500 = vextract.high.u32 %v4498
  %v4501 = vmul.u32.u64.compose %v4497, %v4492
  %v4502 = vextract.low.u32 %v4501
  %v4503 = vextract.high.u32 %v4501
  %v4504 = vmul.u32 %v4497, %v4488
  %v4505 = vadd.s32 %v4500, %v4502
  %vm4506 = vc.u32 %v4500, %v4502
  %v4507 = vadd.s32 %v4503, 1
  %v4508 = vsel %vm4506, %v4507, %v4503
  %v4509 = vadd.s32 %v4504, %v4508
  %v4510 = vadd.s32 %v4509, 536870912
  %v4511 = vshrl.u32 %v4510, 30
  %v4512 = vshll.u32 %v4511, 30
  %v4513 = vsub.s32 %v4509, %v4512
  %vm4514 = vcmp.lt.s32.totalorder %v4513, 0
  %v4515 = vsub.s32 0, %v4513
  %v4516 = vsel %vm4514, %v4515, %v4513
  %v4517 = vclz %v4516
  %v4518 = vsub.s32 %v4517, 2
  %vm4519 = vcmp.gt.s32.totalorder 0, %v4518
  %v4520 = vsel %vm4519, 0, %v4518
  %v4521 = vsub.s32 32, %v4520
  %v4522 = vshll.u32 %v4513, %v4520
  %v4523 = vshrl.u32 %v4505, %v4521
  %v4524 = vor.u32 %v4522, %v4523
  %v4525 = vsub.s32 4294967266, %v4520
  %v4526 = vadd.s32 %v4525, 127
  %v4527 = vshll.u32 %v4526, 23
  %v4528 = vor.u32 4788187, %v4527
  %v4529 = vand.u32 2147483647, %v4528
  %v4531 = vcvt.s32.f32 %v4524
  %v4532 = vmul.f32 %v4531, %v4529
  %v4533 = vxor.u32 %v4532, 2147483648
  %v4534 = vsel %vm4451, %v4533, %v4532
  %v4535 = vsub.s32 4, %v4511
  %v4536 = vsel %vm4451, %v4535, %v4511
  %v4537 = vsel %vm4450, %v4233, %v4534
  %v4538 = vsel %vm4450, 0, %v4536
  %v4539 = vcosq.f32.pop %v4537
  %v4540 = vsinq.f32.pop %v4537
  %vm4541 = vweird.f32 %v4233
  %v4542 = vadd.s32 %v4538, 3
  %v4543 = vand.u32 %v4542, 3
  %vm4544 = vcmp.lt.s32.totalorder %v4543, 2
  %vm4545 = vcmp.eq.s32.totalorder %v4543, 0
  %v4546 = vxor.u32 %v4540, 2147483648
  %v4547 = vsel %vm4545, %v4539, %v4546
  %vm4548 = vcmp.eq.s32.totalorder %v4543, 2
  %v4549 = vxor.u32 %v4539, 2147483648
  %v4550 = vsel %vm4548, %v4549, %v4540
  %v4551 = vsel %vm4544, %v4547, %v4550
  %v4552 = vsel %vm4541, nan, %v4551
  %v4553 = vand.u32 2147483647, %v4238
  %vm4554 = vcmp.le.f32.partialorder %v4553, 0.7853982
  %vm4555 = vcmp.lt.s32.totalorder %v4238, 0
  %v4556 = vand.u32 %v4238, 2139095040
  %v4557 = vshrl.u32 %v4556, 23
  %v4558 = vsub.s32 %v4557, 127
  %v4559 = vand.u32 2147483647, %v4238
  %v4560 = vand.u32 %v4559, 8388607
  %v4561 = vor.u32 %v4560, 8388608
  %v4562 = vsub.s32 0, %v4561
  %v4563 = vadd.s32 %v4558, 1
  %vm4564 = vcmp.gt.s32.totalorder %v4563, 0
  %v4565 = vsel %vm4564, %v4563, 0
  %v4566 = vshrl.u32 %v4565, 5
  %v4567 = vand.u32 %v4565, 31
  %v4568 = vsub.s32 32, %v4567
  %v4569 = vshrl.u32 683565275, %v4568
  %v4570 = vshll.u32 683565275, %v4567
  %v4571 = vshrl.u32 2475754826, %v4568
  %v4572 = vor.u32 %v4570, %v4571
  %v4573 = vshll.u32 2475754826, %v4567
  %v4574 = vshrl.u32 2131351028, %v4568
  %v4575 = vor.u32 %v4573, %v4574
  %v4576 = vshll.u32 2131351028, %v4567
  %v4577 = vshrl.u32 2102212464, %v4568
  %v4578 = vor.u32 %v4576, %v4577
  %v4579 = vshll.u32 2102212464, %v4567
  %v4580 = vshrl.u32 920167782, %v4568
  %v4581 = vor.u32 %v4579, %v4580
  %v4582 = vshll.u32 920167782, %v4567
  %v4583 = vshrl.u32 1326507024, %v4568
  %v4584 = vor.u32 %v4582, %v4583
  %vm4585 = vcmp.lt.s32.totalorder %v4566, 1
  %vm4586 = vcmp.lt.s32.totalorder %v4566, 2
  %vm4587 = vcmp.lt.s32.totalorder %v4566, 3
  %vm4588 = vcmp.lt.s32.totalorder %v4566, 4
  %v4589 = vsel %vm4585, %v4569, %v4572
  %v4590 = vsel %vm4588, %v4578, 2102212464
  %v4591 = vsel %vm4587, %v4575, %v4590
  %v4592 = vsel %vm4586, %v4589, %v4591
  %v4593 = vsel %vm4585, %v4572, %v4575
  %v4594 = vsel %vm4588, %v4581, 920167782
  %v4595 = vsel %vm4587, %v4578, %v4594
  %v4596 = vsel %vm4586, %v4593, %v4595
  %v4597 = vsel %vm4585, %v4575, %v4578
  %v4598 = vsel %vm4588, %v4584, 1326507024
  %v4599 = vsel %vm4587, %v4581, %v4598
  %v4600 = vsel %vm4586, %v4597, %v4599
  %v4601 = vshll.u32 %v4561, 8
  %v4602 = vmul.u32.u64.compose %v4601, %v4600
  %v4603 = vextract.low.u32 %v4602
  %v4604 = vextract.high.u32 %v4602
  %v4605 = vmul.u32.u64.compose %v4601, %v4596
  %v4606 = vextract.low.u32 %v4605
  %v4607 = vextract.high.u32 %v4605
  %v4608 = vmul.u32 %v4601, %v4592
  %v4609 = vadd.s32 %v4604, %v4606
  %vm4610 = vc.u32 %v4604, %v4606
  %v4611 = vadd.s32 %v4607, 1
  %v4612 = vsel %vm4610, %v4611, %v4607
  %v4613 = vadd.s32 %v4608, %v4612
  %v4614 = vadd.s32 %v4613, 536870912
  %v4615 = vshrl.u32 %v4614, 30
  %v4616 = vshll.u32 %v4615, 30
  %v4617 = vsub.s32 %v4613, %v4616
  %vm4618 = vcmp.lt.s32.totalorder %v4617, 0
  %v4619 = vsub.s32 0, %v4617
  %v4620 = vsel %vm4618, %v4619, %v4617
  %v4621 = vclz %v4620
  %v4622 = vsub.s32 %v4621, 2
  %vm4623 = vcmp.gt.s32.totalorder 0, %v4622
  %v4624 = vsel %vm4623, 0, %v4622
  %v4625 = vsub.s32 32, %v4624
  %v4626 = vshll.u32 %v4617, %v4624
  %v4627 = vshrl.u32 %v4609, %v4625
  %v4628 = vor.u32 %v4626, %v4627
  %v4629 = vsub.s32 4294967266, %v4624
  %v4630 = vadd.s32 %v4629, 127
  %v4631 = vshll.u32 %v4630, 23
  %v4632 = vor.u32 4788187, %v4631
  %v4633 = vand.u32 2147483647, %v4632
  %v4635 = vcvt.s32.f32 %v4628
  %v4636 = vmul.f32 %v4635, %v4633
  %v4637 = vxor.u32 %v4636, 2147483648
  %v4638 = vsel %vm4555, %v4637, %v4636
  %v4639 = vsub.s32 4, %v4615
  %v4640 = vsel %vm4555, %v4639, %v4615
  %v4641 = vsel %vm4554, %v4238, %v4638
  %v4642 = vsel %vm4554, 0, %v4640
  %v4643 = vcosq.f32.pop %v4641
  %v4644 = vsinq.f32.pop %v4641
  %vm4645 = vweird.f32 %v4238
  %v4646 = vadd.s32 %v4642, 3
  %v4647 = vand.u32 %v4646, 3
  %vm4648 = vcmp.lt.s32.totalorder %v4647, 2
  %vm4649 = vcmp.eq.s32.totalorder %v4647, 0
  %v4650 = vxor.u32 %v4644, 2147483648
  %v4651 = vsel %vm4649, %v4643, %v4650
  %vm4652 = vcmp.eq.s32.totalorder %v4647, 2
  %v4653 = vxor.u32 %v4643, 2147483648
  %v4654 = vsel %vm4652, %v4653, %v4644
  %v4655 = vsel %vm4648, %v4651, %v4654
  %v4656 = vsel %vm4645, nan, %v4655
  %v4657 = vadd.f32 %v3571, %v4344
  %v4658 = vadd.f32 %v3572, %v4448
  %v4659 = vadd.f32 %v3573, %v4552
  %v4660 = vadd.f32 %v3574, %v4656
  %v4661 = vld [vmem:[%s21] sm:$0x7]
  %v4662 = vld [vmem:[%s22] sm:$0x7]
  %4664 = vset.pattern.permute.xlu0 0
  %4665 = vperm.xlu0 %4664, %v4662
  %v4666 = vpop.permute.xlu0 %4665
  %v4669 = vsel %vm344, %v4661, 0
  %4671 = vmatprep.subr.mxu0 0.0
  %4672 = vmatpush1.msra.mxu0 %v4657
  %4673 = vmatprep.subr.mxu0 0.0
  %4674 = vmatpush1.msra.mxu0 %v4658
  %4675 = vmatprep.subr.mxu0 0.0
  %4676 = vmatpush1.msra.mxu0 %v4659
  %4677 = vmatprep.subr.mxu0 0.0
  %4678 = vmatpush1.msra.mxu0 %v4660
  %4679 = vmatprep.subr.mxu0 0.0
  %4680 = vmatpush1.msra.mxu0 0.0
  %4681 = vmatprep.subr.mxu0 0.0
  %4682 = vmatpush1.msra.mxu0 0.0
  %4683 = vmatprep.subr.mxu0 0.0
  %4684 = vmatpush1.msra.mxu0 0.0
  %4685 = vmatprep.subr.mxu0 0.0
  %4686 = vmatpush1.msra.mxu0 0.0
  %4687 = vmatprep.subr.mxu0 0.0
  %4688 = vmatpush1.msra.mxu0 0.0
  %4689 = vmatprep.subr.mxu0 0.0
  %4690 = vmatpush1.msra.mxu0 0.0
  %4691 = vmatprep.subr.mxu0 0.0
  %4692 = vmatpush1.msra.mxu0 0.0
  %4693 = vmatprep.subr.mxu0 0.0
  %4694 = vmatpush1.msra.mxu0 0.0
  %4695 = vmatprep.subr.mxu0 0.0
  %4696 = vmatpush1.msra.mxu0 0.0
  %4697 = vmatprep.subr.mxu0 0.0
  %4698 = vmatpush1.msra.mxu0 0.0
  %4699 = vmatprep.subr.mxu0 0.0
  %4700 = vmatpush1.msra.mxu0 0.0
  %4701 = vmatprep.subr.mxu0 0.0
  %4702 = vmatpush1.msra.mxu0 0.0
  %4703 = vmatprep.subr.mxu0 0.0
  %4704 = vmatpush1.msra.mxu0 0.0
  %4705 = vmatprep.subr.mxu0 0.0
  %4706 = vmatpush1.msra.mxu0 0.0
  %4707 = vmatprep.subr.mxu0 0.0
  %4708 = vmatpush1.msra.mxu0 0.0
  %4709 = vmatprep.subr.mxu0 0.0
  %4710 = vmatpush1.msra.mxu0 0.0
  %4711 = vmatprep.subr.mxu0 0.0
  %4712 = vmatpush1.msra.mxu0 0.0
  %4713 = vmatprep.subr.mxu0 0.0
  %4714 = vmatpush1.msra.mxu0 0.0
  %4715 = vmatprep.subr.mxu0 0.0
  %4716 = vmatpush1.msra.mxu0 0.0
  %4717 = vmatprep.subr.mxu0 0.0
  %4718 = vmatpush1.msra.mxu0 0.0
  %4719 = vmatprep.subr.mxu0 0.0
  %4720 = vmatpush1.msra.mxu0 0.0
  %4721 = vmatprep.subr.mxu0 0.0
  %4722 = vmatpush1.msra.mxu0 0.0
  %4723 = vmatprep.subr.mxu0 0.0
  %4724 = vmatpush1.msra.mxu0 0.0
  %4725 = vmatprep.subr.mxu0 0.0
  %4726 = vmatpush1.msra.mxu0 0.0
  %4727 = vmatprep.subr.mxu0 0.0
  %4728 = vmatpush1.msra.mxu0 0.0
  %4729 = vmatprep.subr.mxu0 0.0
  %4730 = vmatpush1.msra.mxu0 0.0
  %4731 = vmatprep.subr.mxu0 0.0
  %4732 = vmatpush1.msra.mxu0 0.0
  %4733 = vmatprep.subr.mxu0 0.0
  %4734 = vmatpush1.msra.mxu0 0.0
  %4735 = vmatprep.mubr.f32.mxu0 0.0
  %4736 = vmatmul.mubr.f32.gmra.mrb[0].mxu0 %v4669
  %v4737 = vpop.f32.mrb[0].mxu0
  %v4738 = vadd.f32 %v4666, %v4737
  %v4739 = vpop.f32.mrb[0].mxu0
  %4740 = vdwg.mxu0
  %4741 = vst [vmem:[%s23] sm:$0x7] %v4738
  // Predicated region
  $region94: #{pinn_forward.1} parent=0 // pred_check
    _
  $region95: #{pinn_forward.1} parent=0 // pred_check_branch
    %4743 = sbr.rel (0) target = $region97
  $region96: #{pinn_forward.1} parent=0 // pred_region
    _
  $region97: #{pinn_forward.1} parent=0 // pred_fallthru
    _
  // Predicated region
  $region98: #{pinn_forward.1} parent=0 // pred_check
    _
  $region99: #{pinn_forward.1} parent=0 // pred_check_branch
    %4745 = sbr.rel (0) target = $region101
  $region100: #{pinn_forward.1} parent=0 // pred_region
    _
  $region101: #{pinn_forward.1} parent=0 // pred_fallthru
    _

</llo_original>
